<compile_context>
chip_gen: v7x
topology: tpu7x:2x2x1
jax: 0.10.0
libtpu: 0.0.40
codegen_flags: <defaults>
</compile_context>

<pallas_src>
import jax
import jax.numpy as jnp
from jax.experimental import pallas as pl
from jax.experimental.pallas import tpu as pltpu


def _mlp_head_kernel(d_ref, p_ref,
                     w1d_ref, w1p_ref, b1_ref,
                     w2_ref, b2_ref,
                     w3_ref, b3_ref,
                     w4_ref, b4_ref,
                     out_ref):
    """Head MLP on one batch tile.

    d_ref, p_ref : (TM, Dd), (TM, Dp) f32 drug / protein embeddings
    w1d/w1p      : (Dd,1024)/(Dp,1024) bf16 split of dense_1 weight (fused concat)
    w2           : (1024,1024) bf16, w3: (1024,512) bf16
    b1,b2,b3     : (1, N) f32 biases
    w4_ref       : (1, 512) f32 prediction weight row
    b4_ref       : (1, 1) f32 scalar in SMEM
    out_ref      : (TM, 128) f32 lane-dense output (scalar broadcast over lanes)
    """
    d = d_ref[...].astype(jnp.bfloat16)
    p = p_ref[...].astype(jnp.bfloat16)

    # dense_1 on the fused concat: cat([d, p]) @ w1 == d @ w1_d + p @ w1_p
    h1 = (jnp.dot(d, w1d_ref[...], preferred_element_type=jnp.float32)
          + jnp.dot(p, w1p_ref[...], preferred_element_type=jnp.float32)
          + b1_ref[...])
    h1 = jnp.maximum(h1, 0.0)
    # dropout_1: identity at inference (p=0.1 only active in training)

    h2 = jnp.dot(h1.astype(jnp.bfloat16), w2_ref[...],
                 preferred_element_type=jnp.float32) + b2_ref[...]
    h2 = jnp.maximum(h2, 0.0)
    # dropout_2: identity at inference

    h3 = jnp.dot(h2.astype(jnp.bfloat16), w3_ref[...],
                 preferred_element_type=jnp.float32) + b3_ref[...]
    h3 = jnp.maximum(h3, 0.0)

    # prediction (512 -> 1): VPU multiply + lane reduction instead of an
    # N=1 MXU matmul (which would use 1 of 256 output columns and force
    # masked width-1 stores).
    val = jnp.sum(h3 * w4_ref[...], axis=-1, keepdims=True) + b4_ref[0, 0]

    # Lane-dense store: broadcast the scalar across 128 lanes; wrapper slices [:, :1].
    out_ref[...] = jnp.broadcast_to(val, out_ref.shape).astype(out_ref.dtype)


def make_params(key, data_size):
    """Deterministic f32 parameter init (matches the nn.Linear shapes in __init__).

    Weights stored transposed vs PyTorch, i.e. W has shape (in, out) so that
    y = x @ W + b reproduces nn.Linear exactly.
    """
    ks = jax.random.split(key, 8)

    def lin(kw, kb, fan_in, fan_out):
        bound = 1.0 / jnp.sqrt(fan_in)
        w = jax.random.uniform(kw, (fan_in, fan_out), jnp.float32, -bound, bound)
        b = jax.random.uniform(kb, (1, fan_out), jnp.float32, -bound, bound)
        return w, b

    w1, b1 = lin(ks[0], ks[1], data_size, 1024)   # dense_1
    w2, b2 = lin(ks[2], ks[3], 1024, 1024)        # dense_2
    w3, b3 = lin(ks[4], ks[5], 1024, 512)         # dense_3
    w4, b4 = lin(ks[6], ks[7], 512, 1)            # prediction
    return (w1, b1, w2, b2, w3, b3, w4, b4)


def pack_head_params(params, drug_output_size):
    """Split w1 for the fused concat, cast big weights to bf16, reshape w4/b4."""
    w1, b1, w2, b2, w3, b3, w4, b4 = params
    w1d = w1[:drug_output_size].astype(jnp.bfloat16)
    w1p = w1[drug_output_size:].astype(jnp.bfloat16)
    w2b = w2.astype(jnp.bfloat16)
    w3b = w3.astype(jnp.bfloat16)
    w4row = jnp.reshape(w4, (1, -1)).astype(jnp.float32)   # (1, 512) for VPU reduction
    b4s = jnp.reshape(b4, (1, 1)).astype(jnp.float32)      # SMEM scalar
    return (w1d, w1p, b1, w2b, b2, w3b, b3, w4row, b4s)


def interaction_head(drug_emb, protein_emb, packed):
    """Run the Pallas MLP head on the (separately passed) drug/protein embeddings."""
    B, Dd = drug_emb.shape
    _, Dp = protein_emb.shape
    w1d, w1p, b1, w2, b2, w3, b3, w4row, b4 = packed

    # Batch tile: multiple of 8 sublanes, capped at 128 rows per MXU pass.
    tm = min(128, ((B + 7) // 8) * 8)
    bp = ((B + tm - 1) // tm) * tm
    if bp != B:
        pad = bp - B
        drug_emb = jnp.pad(drug_emb, ((0, pad), (0, 0)))
        protein_emb = jnp.pad(protein_emb, ((0, pad), (0, 0)))

    grid = (bp // tm,)

    def batch_spec(feat):
        return pl.BlockSpec((tm, feat), lambda i: (i, 0))

    def const_spec(shape):
        # Constant block index -> weights are DMA'd once and stay VMEM-resident.
        return pl.BlockSpec(shape, lambda i: (0,) * len(shape))

    out = pl.pallas_call(
        _mlp_head_kernel,
        out_shape=jax.ShapeDtypeStruct((bp, 128), jnp.float32),
        grid=grid,
        in_specs=[
            batch_spec(Dd),
            batch_spec(Dp),
            const_spec(w1d.shape), const_spec(w1p.shape), const_spec(b1.shape),
            const_spec(w2.shape), const_spec(b2.shape),
            const_spec(w3.shape), const_spec(b3.shape),
            const_spec(w4row.shape),
            pl.BlockSpec(memory_space=pltpu.MemorySpace.SMEM),   # b4 scalar
        ],
        out_specs=pl.BlockSpec((tm, 128), lambda i: (i, 0)),
        compiler_params=pltpu.CompilerParams(
            dimension_semantics=("parallel",)),
    )(drug_emb, protein_emb, w1d, w1p, b1, w2, b2, w3, b3, w4row, b4)

    return out[:B, :1]


def interaction_network_forward(drug, protein, encoder_params, packed_head):
    """Full forward: drug_model / protein_model (plain-JAX glue encoders),
    squeeze, then the Pallas MLP head (concat is fused into the kernel)."""
    (dw, db), (pw, pb) = encoder_params
    # TODO(synk): drug_model / protein_model are arbitrary external submodules in
    # the PyTorch code; represented here as deterministic linear encoders.
    drug_emb = jnp.squeeze(drug @ dw + db, axis=1)        # (B, drug_output_size)
    protein_emb = jnp.squeeze(protein @ pw + pb, axis=1)  # (B, protein_output_size)
    return interaction_head(drug_emb, protein_emb, packed_head)


if __name__ == "__main__":
    key = jax.random.PRNGKey(0)
    k_drug, k_prot, k_dw, k_db, k_pw, k_pb, k_head = jax.random.split(key, 7)

    B = 8
    drug_in_feat, protein_in_feat = 32, 48
    drug_output_size, protein_output_size = 64, 64
    data_size = drug_output_size + protein_output_size

    # Raw inputs to the (stand-in) drug/protein encoders; extra size-1 axis so
    # that .squeeze() in the reference forward is meaningful.
    drug = jax.random.normal(k_drug, (B, 1, drug_in_feat), jnp.float32)
    protein = jax.random.normal(k_prot, (B, 1, protein_in_feat), jnp.float32)

    enc_params = (
        (jax.random.normal(k_dw, (drug_in_feat, drug_output_size), jnp.float32) * 0.05,
         jax.random.normal(k_db, (drug_output_size,), jnp.float32) * 0.05),
        (jax.random.normal(k_pw, (protein_in_feat, protein_output_size), jnp.float32) * 0.05,
         jax.random.normal(k_pb, (protein_output_size,), jnp.float32) * 0.05),
    )
    head_params = make_params(k_head, data_size)
    packed_head = pack_head_params(head_params, drug_output_size)

    out = interaction_network_forward(drug, protein, enc_params, packed_head)
    out = jax.block_until_ready(out)
    assert out.shape == (B, 1), out.shape

    # Reference check in plain JAX with the same bf16-weight / f32-accumulate
    # numerics as the kernel.
    (dw, db), (pw, pb) = enc_params
    emb = jnp.concatenate([jnp.squeeze(drug @ dw + db, 1),
                           jnp.squeeze(protein @ pw + pb, 1)], axis=1)
    w1, b1, w2, b2, w3, b3, w4, b4 = head_params

    def bdot(x, w):
        return jnp.dot(x.astype(jnp.bfloat16), w.astype(jnp.bfloat16),
                       preferred_element_type=jnp.float32)

    r = jnp.maximum(bdot(emb, w1) + b1, 0.0)
    r = jnp.maximum(bdot(r, w2) + b2, 0.0)
    r = jnp.maximum(bdot(r, w3) + b3, 0.0)
    ref = jnp.sum(r * jnp.reshape(w4, (1, -1)), axis=-1, keepdims=True) + b4

    assert jnp.allclose(out, ref, atol=1e-2, rtol=1e-2), (out, ref)

    print("KERNEL_OK")
</pallas_src>

<mosaic_0001>
module attributes {stable_mosaic.version = 11 : i64} {
  func.func @_mlp_head_kernel(%arg0: i32, %arg1: memref<8x64xf32, #tpu.memory_space<vmem>>, %arg2: memref<8x64xf32, #tpu.memory_space<vmem>>, %arg3: memref<64x1024xbf16, #tpu.memory_space<vmem>>, %arg4: memref<64x1024xbf16, #tpu.memory_space<vmem>>, %arg5: memref<1x1024xf32, #tpu.memory_space<vmem>>, %arg6: memref<1024x1024xbf16, #tpu.memory_space<vmem>>, %arg7: memref<1x1024xf32, #tpu.memory_space<vmem>>, %arg8: memref<1024x512xbf16, #tpu.memory_space<vmem>>, %arg9: memref<1x512xf32, #tpu.memory_space<vmem>>, %arg10: memref<1x512xf32, #tpu.memory_space<vmem>>, %arg11: memref<1x1xf32, #tpu.memory_space<smem>>, %arg12: memref<8x128xf32, #tpu.memory_space<vmem>>) attributes {dimension_semantics = [#tpu.dimension_semantics<parallel>], iteration_bounds = array<i64: 1>, scalar_prefetch = 0 : i64, scratch_operands = 0 : i64, tpu.core_type = #tpu.core_type<tc>, window_params = [{transform_indices = @transform_0, window_bounds = array<i64: 8, 64>}, {transform_indices = @transform_1, window_bounds = array<i64: 8, 64>}, {pipeline_mode = #tpu.pipeline_mode<synchronous>, transform_indices = @transform_2, window_bounds = array<i64: 64, 1024>}, {pipeline_mode = #tpu.pipeline_mode<synchronous>, transform_indices = @transform_3, window_bounds = array<i64: 64, 1024>}, {pipeline_mode = #tpu.pipeline_mode<synchronous>, transform_indices = @transform_4, window_bounds = array<i64: 1, 1024>}, {pipeline_mode = #tpu.pipeline_mode<synchronous>, transform_indices = @transform_5, window_bounds = array<i64: 1024, 1024>}, {pipeline_mode = #tpu.pipeline_mode<synchronous>, transform_indices = @transform_6, window_bounds = array<i64: 1, 1024>}, {pipeline_mode = #tpu.pipeline_mode<synchronous>, transform_indices = @transform_7, window_bounds = array<i64: 1024, 512>}, {pipeline_mode = #tpu.pipeline_mode<synchronous>, transform_indices = @transform_8, window_bounds = array<i64: 1, 512>}, {pipeline_mode = #tpu.pipeline_mode<synchronous>, transform_indices = @transform_9, window_bounds = array<i64: 1, 512>}, {transform_indices = @transform_10, window_bounds = array<i64: 1, 1>}, {transform_indices = @transform_11, window_bounds = array<i64: 8, 128>}]} {
    %c0 = arith.constant 0 : index
    %c0_0 = arith.constant 0 : index
    %0 = vector.load %arg1[%c0, %c0_0] : memref<8x64xf32, #tpu.memory_space<vmem>>, vector<8x64xf32>
    %1 = arith.truncf %0 : vector<8x64xf32> to vector<8x64xbf16>
    %c0_1 = arith.constant 0 : index
    %c0_2 = arith.constant 0 : index
    %2 = vector.load %arg2[%c0_1, %c0_2] : memref<8x64xf32, #tpu.memory_space<vmem>>, vector<8x64xf32>
    %3 = arith.truncf %2 : vector<8x64xf32> to vector<8x64xbf16>
    %c0_3 = arith.constant 0 : index
    %c0_4 = arith.constant 0 : index
    %4 = vector.load %arg3[%c0_3, %c0_4] : memref<64x1024xbf16, #tpu.memory_space<vmem>>, vector<64x1024xbf16>
    %cst = arith.constant dense<0.000000e+00> : vector<8x1024xf32>
    %5 = tpu.matmul %1, %4, %cst {dimension_numbers = #tpu.dot_dimension_numbers<[1], [0], [0], [1], [0, 0, 1, 1], [], []>} : vector<8x64xbf16>, vector<64x1024xbf16>, vector<8x1024xf32> -> vector<8x1024xf32>
    %c0_5 = arith.constant 0 : index
    %c0_6 = arith.constant 0 : index
    %6 = vector.load %arg4[%c0_5, %c0_6] : memref<64x1024xbf16, #tpu.memory_space<vmem>>, vector<64x1024xbf16>
    %cst_7 = arith.constant dense<0.000000e+00> : vector<8x1024xf32>
    %7 = tpu.matmul %3, %6, %cst_7 {dimension_numbers = #tpu.dot_dimension_numbers<[1], [0], [0], [1], [0, 0, 1, 1], [], []>} : vector<8x64xbf16>, vector<64x1024xbf16>, vector<8x1024xf32> -> vector<8x1024xf32>
    %8 = arith.addf %5, %7 : vector<8x1024xf32>
    %c0_8 = arith.constant 0 : index
    %c0_9 = arith.constant 0 : index
    %9 = vector.load %arg5[%c0_8, %c0_9] : memref<1x1024xf32, #tpu.memory_space<vmem>>, vector<1x1024xf32>
    %10 = vector.broadcast %9 : vector<1x1024xf32> to vector<8x1024xf32>
    %11 = arith.addf %8, %10 : vector<8x1024xf32>
    %cst_10 = arith.constant 0.000000e+00 : f32
    %12 = vector.broadcast %cst_10 : f32 to vector<8x1024xf32>
    %13 = arith.maximumf %11, %12 : vector<8x1024xf32>
    %14 = arith.truncf %13 : vector<8x1024xf32> to vector<8x1024xbf16>
    %c0_11 = arith.constant 0 : index
    %c0_12 = arith.constant 0 : index
    %15 = vector.load %arg6[%c0_11, %c0_12] : memref<1024x1024xbf16, #tpu.memory_space<vmem>>, vector<1024x1024xbf16>
    %cst_13 = arith.constant dense<0.000000e+00> : vector<8x1024xf32>
    %16 = tpu.matmul %14, %15, %cst_13 {dimension_numbers = #tpu.dot_dimension_numbers<[1], [0], [0], [1], [0, 0, 1, 1], [], []>} : vector<8x1024xbf16>, vector<1024x1024xbf16>, vector<8x1024xf32> -> vector<8x1024xf32>
    %c0_14 = arith.constant 0 : index
    %c0_15 = arith.constant 0 : index
    %17 = vector.load %arg7[%c0_14, %c0_15] : memref<1x1024xf32, #tpu.memory_space<vmem>>, vector<1x1024xf32>
    %18 = vector.broadcast %17 : vector<1x1024xf32> to vector<8x1024xf32>
    %19 = arith.addf %16, %18 : vector<8x1024xf32>
    %cst_16 = arith.constant 0.000000e+00 : f32
    %20 = vector.broadcast %cst_16 : f32 to vector<8x1024xf32>
    %21 = arith.maximumf %19, %20 : vector<8x1024xf32>
    %22 = arith.truncf %21 : vector<8x1024xf32> to vector<8x1024xbf16>
    %c0_17 = arith.constant 0 : index
    %c0_18 = arith.constant 0 : index
    %23 = vector.load %arg8[%c0_17, %c0_18] : memref<1024x512xbf16, #tpu.memory_space<vmem>>, vector<1024x512xbf16>
    %cst_19 = arith.constant dense<0.000000e+00> : vector<8x512xf32>
    %24 = tpu.matmul %22, %23, %cst_19 {dimension_numbers = #tpu.dot_dimension_numbers<[1], [0], [0], [1], [0, 0, 1, 1], [], []>} : vector<8x1024xbf16>, vector<1024x512xbf16>, vector<8x512xf32> -> vector<8x512xf32>
    %c0_20 = arith.constant 0 : index
    %c0_21 = arith.constant 0 : index
    %25 = vector.load %arg9[%c0_20, %c0_21] : memref<1x512xf32, #tpu.memory_space<vmem>>, vector<1x512xf32>
    %26 = vector.broadcast %25 : vector<1x512xf32> to vector<8x512xf32>
    %27 = arith.addf %24, %26 : vector<8x512xf32>
    %cst_22 = arith.constant 0.000000e+00 : f32
    %28 = vector.broadcast %cst_22 : f32 to vector<8x512xf32>
    %29 = arith.maximumf %27, %28 : vector<8x512xf32>
    %c0_23 = arith.constant 0 : index
    %c0_24 = arith.constant 0 : index
    %30 = vector.load %arg10[%c0_23, %c0_24] : memref<1x512xf32, #tpu.memory_space<vmem>>, vector<1x512xf32>
    %31 = vector.broadcast %30 : vector<1x512xf32> to vector<8x512xf32>
    %32 = arith.mulf %29, %31 : vector<8x512xf32>
    %cst_25 = arith.constant dense<0.000000e+00> : vector<8xf32>
    %33 = vector.multi_reduction <add>, %32, %cst_25 [1] : vector<8x512xf32> to vector<8xf32>
    %34 = vector.shape_cast %33 : vector<8xf32> to vector<8x1xf32>
    %c0_26 = arith.constant 0 : index
    %c0_27 = arith.constant 0 : index
    %35 = memref.load %arg11[%c0_26, %c0_27] : memref<1x1xf32, #tpu.memory_space<smem>>
    %36 = vector.broadcast %35 : f32 to vector<8x1xf32>
    %37 = arith.addf %34, %36 : vector<8x1xf32>
    %38 = vector.shape_cast %37 : vector<8x1xf32> to vector<8x1xf32>
    %39 = vector.broadcast %38 : vector<8x1xf32> to vector<8x128xf32>
    %c0_28 = arith.constant 0 : index
    %c0_29 = arith.constant 0 : index
    %40 = vector.load %arg12[%c0_28, %c0_29] : memref<8x128xf32, #tpu.memory_space<vmem>>, vector<8x128xf32>
    tpu.vector_store %arg12[%c0_28, %c0_29], %39 {strides = array<i32>} : memref<8x128xf32, #tpu.memory_space<vmem>>, vector<8x128xf32>,
    return
  }
  func.func @transform_0(%arg0: i32) -> (i32, i32) {
    %c0_i32 = arith.constant 0 : i32
    %c0_i32_0 = arith.constant 0 : i32
    return %arg0, %c0_i32 : i32, i32
  }
  func.func @transform_1(%arg0: i32) -> (i32, i32) {
    %c0_i32 = arith.constant 0 : i32
    %c0_i32_0 = arith.constant 0 : i32
    return %arg0, %c0_i32 : i32, i32
  }
  func.func @transform_2(%arg0: i32) -> (i32, i32) {
    %c0_i32 = arith.constant 0 : i32
    %c0_i32_0 = arith.constant 0 : i32
    %c0_i32_1 = arith.constant 0 : i32
    return %c0_i32, %c0_i32_0 : i32, i32
  }
  func.func @transform_3(%arg0: i32) -> (i32, i32) {
    %c0_i32 = arith.constant 0 : i32
    %c0_i32_0 = arith.constant 0 : i32
    %c0_i32_1 = arith.constant 0 : i32
    return %c0_i32, %c0_i32_0 : i32, i32
  }
  func.func @transform_4(%arg0: i32) -> (i32, i32) {
    %c0_i32 = arith.constant 0 : i32
    %c0_i32_0 = arith.constant 0 : i32
    %c0_i32_1 = arith.constant 0 : i32
    return %c0_i32, %c0_i32_0 : i32, i32
  }
  func.func @transform_5(%arg0: i32) -> (i32, i32) {
    %c0_i32 = arith.constant 0 : i32
    %c0_i32_0 = arith.constant 0 : i32
    %c0_i32_1 = arith.constant 0 : i32
    return %c0_i32, %c0_i32_0 : i32, i32
  }
  func.func @transform_6(%arg0: i32) -> (i32, i32) {
    %c0_i32 = arith.constant 0 : i32
    %c0_i32_0 = arith.constant 0 : i32
    %c0_i32_1 = arith.constant 0 : i32
    return %c0_i32, %c0_i32_0 : i32, i32
  }
  func.func @transform_7(%arg0: i32) -> (i32, i32) {
    %c0_i32 = arith.constant 0 : i32
    %c0_i32_0 = arith.constant 0 : i32
    %c0_i32_1 = arith.constant 0 : i32
    return %c0_i32, %c0_i32_0 : i32, i32
  }
  func.func @transform_8(%arg0: i32) -> (i32, i32) {
    %c0_i32 = arith.constant 0 : i32
    %c0_i32_0 = arith.constant 0 : i32
    %c0_i32_1 = arith.constant 0 : i32
    return %c0_i32, %c0_i32_0 : i32, i32
  }
  func.func @transform_9(%arg0: i32) -> (i32, i32) {
    %c0_i32 = arith.constant 0 : i32
    %c0_i32_0 = arith.constant 0 : i32
    %c0_i32_1 = arith.constant 0 : i32
    return %c0_i32, %c0_i32_0 : i32, i32
  }
  func.func @transform_10(%arg0: i32) -> (i32, i32) {
    %c0_i32 = arith.constant 0 : i32
    %c0_i32_0 = arith.constant 0 : i32
    %c0_i32_1 = arith.constant 0 : i32
    return %c0_i32, %c0_i32_0 : i32, i32
  }
  func.func @transform_11(%arg0: i32) -> (i32, i32) {
    %c0_i32 = arith.constant 0 : i32
    %c0_i32_0 = arith.constant 0 : i32
    return %arg0, %c0_i32 : i32, i32
  }
}

</mosaic_0001>

<llo_original>
// kernel: tpu_custom_call.1
$region0: #{tpu_custom_call.1}
  #allocation0 [shape = 'u32[]', space=smem, size = 0x4, offset = 0x4, fixed_abs, tag = 'smem constant byte address 0x4 - core index']
  #allocation1 [shape = 'u32[144,128]{1,0:T(1,128)}', space=vmem, size = 0x12000, scoped, tag = 'internal scratch']
  #allocation2 [shape = 'f32[1,1]{1,0:T(1,128)S(6)}', space=smem, size = 0x200, scoped, tag = 'scoped memory for tpu_custom_call.1']
  %s0 = inlined_call_operand.hbm [shape: f32[8,64], index: 0, kind: input, shape index: {}]
  %s1 = inlined_call_operand.hbm [shape: f32[8,64], index: 1, kind: input, shape index: {}]
  %s2 = inlined_call_operand.hbm [shape: bf16[64,1024], index: 2, kind: input, shape index: {}]
  %s3 = inlined_call_operand.hbm [shape: bf16[64,1024], index: 3, kind: input, shape index: {}]
  %s4 = inlined_call_operand.hbm [shape: f32[1,1024], index: 4, kind: input, shape index: {}]
  %s5 = inlined_call_operand.hbm [shape: bf16[1024,1024], index: 5, kind: input, shape index: {}]
  %s6 = inlined_call_operand.hbm [shape: f32[1,1024], index: 6, kind: input, shape index: {}]
  %s7 = inlined_call_operand.hbm [shape: bf16[1024,512], index: 7, kind: input, shape index: {}]
  %s8 = inlined_call_operand.hbm [shape: f32[1,512], index: 8, kind: input, shape index: {}]
  %s9 = inlined_call_operand.hbm [shape: f32[1,512], index: 9, kind: input, shape index: {}]
  %s10 = inlined_call_operand.<no memory space> [shape: f32[1,1], index: 10, kind: input, shape index: {}]
  %s11 = inlined_call_operand.hbm [shape: f32[8,128], index: 11, kind: output, shape index: {}]
  %s12 = sld [smem:[#allocation0]]
  $region94: #{tpu_custom_call.1} parent=0
    _
  %s14 = ssub.s32 1, %s12
  %s15 = scalar_select 0, %s14, %s12
  %16 = sst [smem:[#allocation2]] %s10
  $region1: #{tpu_custom_call.1} parent=0
    #allocation3 [shape = 'u8[4096]{0}', space=vmem, size = 0x1000, scoped, tag = 'input window, operand 0, single buffered']
    #allocation4 [shape = 's32[1]{0}', space=sflag, size = 0x4, scoped, tag = 'scoped memory for tpu_custom_call.1']
    #allocation5 [shape = 's32[1]{0}', space=sflag, size = 0x4, scoped, tag = 'scoped memory for tpu_custom_call.1']
    #allocation6 [shape = 'u8[4096]{0}', space=vmem, size = 0x1000, scoped, tag = 'input window, operand 1, single buffered']
    #allocation7 [shape = 's32[1]{0}', space=sflag, size = 0x4, scoped, tag = 'scoped memory for tpu_custom_call.1']
    #allocation8 [shape = 'u8[131072]{0}', space=vmem, size = 0x20000, scoped, tag = 'input window, operand 2, single buffered']
    #allocation9 [shape = 'u8[131072]{0}', space=vmem, size = 0x20000, scoped, tag = 'input window, operand 3, single buffered']
    #allocation10 [shape = 's32[1]{0}', space=sflag, size = 0x4, scoped, tag = 'scoped memory for tpu_custom_call.1']
    #allocation11 [shape = 'u8[4096]{0}', space=vmem, size = 0x1000, scoped, tag = 'input window, operand 4, single buffered']
    #allocation12 [shape = 'u8[2097152]{0}', space=vmem, size = 0x200000, scoped, tag = 'input window, operand 5, single buffered']
    #allocation13 [shape = 's32[1]{0}', space=sflag, size = 0x4, scoped, tag = 'scoped memory for tpu_custom_call.1']
    #allocation14 [shape = 'u8[4096]{0}', space=vmem, size = 0x1000, scoped, tag = 'input window, operand 6, single buffered']
    #allocation15 [shape = 'u8[1048576]{0}', space=vmem, size = 0x100000, scoped, tag = 'input window, operand 7, single buffered']
    #allocation16 [shape = 's32[1]{0}', space=sflag, size = 0x4, scoped, tag = 'scoped memory for tpu_custom_call.1']
    #allocation17 [shape = 'u8[2048]{0}', space=vmem, size = 0x800, scoped, tag = 'input window, operand 8, single buffered']
    #allocation18 [shape = 'u8[2048]{0}', space=vmem, size = 0x800, scoped, tag = 'input window, operand 9, single buffered']
    #allocation19 [shape = 's32[1]{0}', space=sflag, size = 0x4, scoped, tag = 'scoped memory for tpu_custom_call.1']
    #allocation20 [shape = 'u8[4096]{0}', space=vmem, size = 0x1000, scoped, tag = 'output window, operand 0, single buffered']
    %17 = vsyncpa [#allocation4], 0
    %18 = vsyncpa [#allocation7], 0
    %19 = vsyncpa [#allocation10], 0
    %20 = vsyncpa [#allocation13], 0
    %21 = vsyncpa [#allocation16], 0
    %22 = vsyncpa [#allocation19], 0
    %23 = vsyncpa [#allocation5], 0
    // Predicated region
    $region2: #{tpu_custom_call.1} parent=1 // pred_check
      _
    $region3: #{tpu_custom_call.1} parent=1 // pred_check_branch
      %25 = sbr.rel (0) target = $region5
    $region4: #{tpu_custom_call.1} parent=1 // pred_region
      %s27 = ssub.s32 128, 128
      %28 = vsyncadd [#allocation4], %s27
      %s30 = sshll.u32 [#allocation3], 4
      %s31 = int_to_ptr.vmem [resolvable:$true] %s30
      %33 = dma.hbm_to_vmem [thread:$0]  %s0, 128, %s31, [#allocation4]
    $region5: #{tpu_custom_call.1} parent=1 // pred_fallthru
      _
    // Predicated region
    $region6: #{tpu_custom_call.1} parent=1 // pred_check
      _
    $region7: #{tpu_custom_call.1} parent=1 // pred_check_branch
      %35 = sbr.rel (0) target = $region9
    $region8: #{tpu_custom_call.1} parent=1 // pred_region
      %s37 = ssub.s32 128, 128
      %38 = vsyncadd [#allocation7], %s37
      %s40 = sshll.u32 [#allocation6], 4
      %s41 = int_to_ptr.vmem [resolvable:$true] %s40
      %43 = dma.hbm_to_vmem [thread:$0]  %s1, 128, %s41, [#allocation7]
    $region9: #{tpu_custom_call.1} parent=1 // pred_fallthru
      _
    // Predicated region
    $region10: #{tpu_custom_call.1} parent=1 // pred_check
      _
    $region11: #{tpu_custom_call.1} parent=1 // pred_check_branch
      %45 = sbr.rel (0) target = $region13
    $region12: #{tpu_custom_call.1} parent=1 // pred_region
      %s47 = ssub.s32 4096, 4096
      %48 = vsyncadd [#allocation7], %s47
      %s49 = sshll.u32 [#allocation8], 4
      %s50 = int_to_ptr.vmem [resolvable:$true] %s49
      %55 = dma.hbm_to_vmem [thread:$0]  %s2, 4096, %s50, [#allocation7], 512, 512, 32
    $region13: #{tpu_custom_call.1} parent=1 // pred_fallthru
      _
    // Predicated region
    $region14: #{tpu_custom_call.1} parent=1 // pred_check
      _
    $region15: #{tpu_custom_call.1} parent=1 // pred_check_branch
      %57 = sbr.rel (0) target = $region17
    $region16: #{tpu_custom_call.1} parent=1 // pred_region
      %s59 = ssub.s32 4096, 4096
      %60 = vsyncadd [#allocation10], %s59
      %s61 = sshll.u32 [#allocation9], 4
      %s62 = int_to_ptr.vmem [resolvable:$true] %s61
      %67 = dma.hbm_to_vmem [thread:$0]  %s3, 4096, %s62, [#allocation10], 512, 512, 32
    $region17: #{tpu_custom_call.1} parent=1 // pred_fallthru
      _
    // Predicated region
    $region18: #{tpu_custom_call.1} parent=1 // pred_check
      _
    $region19: #{tpu_custom_call.1} parent=1 // pred_check_branch
      %69 = sbr.rel (0) target = $region21
    $region20: #{tpu_custom_call.1} parent=1 // pred_region
      %s71 = ssub.s32 128, 128
      %72 = vsyncadd [#allocation10], %s71
      %s74 = sshll.u32 [#allocation11], 4
      %s75 = int_to_ptr.vmem [resolvable:$true] %s74
      %77 = dma.hbm_to_vmem [thread:$0]  %s4, 128, %s75, [#allocation10]
    $region21: #{tpu_custom_call.1} parent=1 // pred_fallthru
      _
    // Predicated region
    $region22: #{tpu_custom_call.1} parent=1 // pred_check
      _
    $region23: #{tpu_custom_call.1} parent=1 // pred_check_branch
      %79 = sbr.rel (0) target = $region25
    $region24: #{tpu_custom_call.1} parent=1 // pred_region
      %s81 = ssub.s32 65536, 65536
      %82 = vsyncadd [#allocation13], %s81
      %s83 = sshll.u32 [#allocation12], 4
      %s84 = int_to_ptr.vmem [resolvable:$true] %s83
      %89 = dma.hbm_to_vmem [thread:$0]  %s5, 65536, %s84, [#allocation13], 512, 512, 32
    $region25: #{tpu_custom_call.1} parent=1 // pred_fallthru
      _
    // Predicated region
    $region26: #{tpu_custom_call.1} parent=1 // pred_check
      _
    $region27: #{tpu_custom_call.1} parent=1 // pred_check_branch
      %91 = sbr.rel (0) target = $region29
    $region28: #{tpu_custom_call.1} parent=1 // pred_region
      %s93 = ssub.s32 128, 128
      %94 = vsyncadd [#allocation13], %s93
      %s96 = sshll.u32 [#allocation14], 4
      %s97 = int_to_ptr.vmem [resolvable:$true] %s96
      %99 = dma.hbm_to_vmem [thread:$0]  %s6, 128, %s97, [#allocation13]
    $region29: #{tpu_custom_call.1} parent=1 // pred_fallthru
      _
    // Predicated region
    $region30: #{tpu_custom_call.1} parent=1 // pred_check
      _
    $region31: #{tpu_custom_call.1} parent=1 // pred_check_branch
      %101 = sbr.rel (0) target = $region33
    $region32: #{tpu_custom_call.1} parent=1 // pred_region
      %s103 = ssub.s32 32768, 32768
      %104 = vsyncadd [#allocation16], %s103
      %s105 = sshll.u32 [#allocation15], 4
      %s106 = int_to_ptr.vmem [resolvable:$true] %s105
      %111 = dma.hbm_to_vmem [thread:$0]  %s7, 32768, %s106, [#allocation16], 256, 256, 16
    $region33: #{tpu_custom_call.1} parent=1 // pred_fallthru
      _
    // Predicated region
    $region34: #{tpu_custom_call.1} parent=1 // pred_check
      _
    $region35: #{tpu_custom_call.1} parent=1 // pred_check_branch
      %113 = sbr.rel (0) target = $region37
    $region36: #{tpu_custom_call.1} parent=1 // pred_region
      %s115 = ssub.s32 64, 64
      %116 = vsyncadd [#allocation16], %s115
      %s118 = sshll.u32 [#allocation17], 4
      %s119 = int_to_ptr.vmem [resolvable:$true] %s118
      %121 = dma.hbm_to_vmem [thread:$0]  %s8, 64, %s119, [#allocation16]
    $region37: #{tpu_custom_call.1} parent=1 // pred_fallthru
      _
    // Predicated region
    $region38: #{tpu_custom_call.1} parent=1 // pred_check
      _
    $region39: #{tpu_custom_call.1} parent=1 // pred_check_branch
      %123 = sbr.rel (0) target = $region41
    $region40: #{tpu_custom_call.1} parent=1 // pred_region
      %s125 = ssub.s32 64, 64
      %126 = vsyncadd [#allocation19], %s125
      %s128 = sshll.u32 [#allocation18], 4
      %s129 = int_to_ptr.vmem [resolvable:$true] %s128
      %131 = dma.hbm_to_vmem [thread:$0]  %s9, 64, %s129, [#allocation19]
    $region41: #{tpu_custom_call.1} parent=1 // pred_fallthru
      _
    // Predicated region
    $region42: #{tpu_custom_call.1} parent=1 // pred_check
      _
    $region43: #{tpu_custom_call.1} parent=1 // pred_check_branch
      %133 = sbr.rel (0) target = $region45
    $region44: #{tpu_custom_call.1} parent=1 // pred_region
      _
    $region45: #{tpu_custom_call.1} parent=1 // pred_fallthru
      _
    // Predicated region
    $region46: #{tpu_custom_call.1} parent=1 // pred_check
      _
    $region47: #{tpu_custom_call.1} parent=1 // pred_check_branch
      %135 = sbr.rel (0) target = $region49
    $region48: #{tpu_custom_call.1} parent=1 // pred_region
      %136 = dma.done [#allocation4], 128
    $region49: #{tpu_custom_call.1} parent=1 // pred_fallthru
      _
    // Predicated region
    $region50: #{tpu_custom_call.1} parent=1 // pred_check
      _
    $region51: #{tpu_custom_call.1} parent=1 // pred_check_branch
      %138 = sbr.rel (0) target = $region53
    $region52: #{tpu_custom_call.1} parent=1 // pred_region
      %139 = dma.done [#allocation7], 128
    $region53: #{tpu_custom_call.1} parent=1 // pred_fallthru
      _
    // Predicated region
    $region54: #{tpu_custom_call.1} parent=1 // pred_check
      _
    $region55: #{tpu_custom_call.1} parent=1 // pred_check_branch
      %141 = sbr.rel (0) target = $region57
    $region56: #{tpu_custom_call.1} parent=1 // pred_region
      %142 = dma.done [#allocation7], 4096
    $region57: #{tpu_custom_call.1} parent=1 // pred_fallthru
      _
    // Predicated region
    $region58: #{tpu_custom_call.1} parent=1 // pred_check
      _
    $region59: #{tpu_custom_call.1} parent=1 // pred_check_branch
      %144 = sbr.rel (0) target = $region61
    $region60: #{tpu_custom_call.1} parent=1 // pred_region
      %145 = dma.done [#allocation10], 4096
    $region61: #{tpu_custom_call.1} parent=1 // pred_fallthru
      _
    // Predicated region
    $region62: #{tpu_custom_call.1} parent=1 // pred_check
      _
    $region63: #{tpu_custom_call.1} parent=1 // pred_check_branch
      %147 = sbr.rel (0) target = $region65
    $region64: #{tpu_custom_call.1} parent=1 // pred_region
      %148 = dma.done [#allocation10], 128
    $region65: #{tpu_custom_call.1} parent=1 // pred_fallthru
      _
    // Predicated region
    $region66: #{tpu_custom_call.1} parent=1 // pred_check
      _
    $region67: #{tpu_custom_call.1} parent=1 // pred_check_branch
      %150 = sbr.rel (0) target = $region69
    $region68: #{tpu_custom_call.1} parent=1 // pred_region
      %151 = dma.done [#allocation13], 65536
    $region69: #{tpu_custom_call.1} parent=1 // pred_fallthru
      _
    // Predicated region
    $region70: #{tpu_custom_call.1} parent=1 // pred_check
      _
    $region71: #{tpu_custom_call.1} parent=1 // pred_check_branch
      %153 = sbr.rel (0) target = $region73
    $region72: #{tpu_custom_call.1} parent=1 // pred_region
      %154 = dma.done [#allocation13], 128
    $region73: #{tpu_custom_call.1} parent=1 // pred_fallthru
      _
    // Predicated region
    $region74: #{tpu_custom_call.1} parent=1 // pred_check
      _
    $region75: #{tpu_custom_call.1} parent=1 // pred_check_branch
      %156 = sbr.rel (0) target = $region77
    $region76: #{tpu_custom_call.1} parent=1 // pred_region
      %157 = dma.done [#allocation16], 32768
    $region77: #{tpu_custom_call.1} parent=1 // pred_fallthru
      _
    // Predicated region
    $region78: #{tpu_custom_call.1} parent=1 // pred_check
      _
    $region79: #{tpu_custom_call.1} parent=1 // pred_check_branch
      %159 = sbr.rel (0) target = $region81
    $region80: #{tpu_custom_call.1} parent=1 // pred_region
      %160 = dma.done [#allocation16], 64
    $region81: #{tpu_custom_call.1} parent=1 // pred_fallthru
      _
    // Predicated region
    $region82: #{tpu_custom_call.1} parent=1 // pred_check
      _
    $region83: #{tpu_custom_call.1} parent=1 // pred_check_branch
      %162 = sbr.rel (0) target = $region85
    $region84: #{tpu_custom_call.1} parent=1 // pred_region
      %163 = dma.done [#allocation19], 64
    $region85: #{tpu_custom_call.1} parent=1 // pred_fallthru
      _
    %v165 = vld [vmem:[#allocation3] sm:$0xff]
    %v166 = vpack.c.bf16 %v165, %v165
    %v167 = vld [vmem:[#allocation6] sm:$0xff]
    %v168 = vpack.c.bf16 %v167, %v167
    %v169 = vld [vmem:[#allocation8] sm:$0xff]
    %v170 = vld [vmem:[#allocation8 + $0x8] sm:$0xff]
    %v171 = vld [vmem:[#allocation8 + $0x10] sm:$0xff]
    %v172 = vld [vmem:[#allocation8 + $0x18] sm:$0xff]
    %v173 = vld [vmem:[#allocation8 + $0x20] sm:$0xff]
    %v174 = vld [vmem:[#allocation8 + $0x28] sm:$0xff]
    %v175 = vld [vmem:[#allocation8 + $0x30] sm:$0xff]
    %v176 = vld [vmem:[#allocation8 + $0x38] sm:$0xff]
    %v177 = vld [vmem:[#allocation8 + $0x40] sm:$0xff]
    %v178 = vld [vmem:[#allocation8 + $0x48] sm:$0xff]
    %v179 = vld [vmem:[#allocation8 + $0x50] sm:$0xff]
    %v180 = vld [vmem:[#allocation8 + $0x58] sm:$0xff]
    %v181 = vld [vmem:[#allocation8 + $0x60] sm:$0xff]
    %v182 = vld [vmem:[#allocation8 + $0x68] sm:$0xff]
    %v183 = vld [vmem:[#allocation8 + $0x70] sm:$0xff]
    %v184 = vld [vmem:[#allocation8 + $0x78] sm:$0xff]
    %v185 = vld [vmem:[#allocation8 + $0x80] sm:$0xff]
    %v186 = vld [vmem:[#allocation8 + $0x88] sm:$0xff]
    %v187 = vld [vmem:[#allocation8 + $0x90] sm:$0xff]
    %v188 = vld [vmem:[#allocation8 + $0x98] sm:$0xff]
    %v189 = vld [vmem:[#allocation8 + $0xa0] sm:$0xff]
    %v190 = vld [vmem:[#allocation8 + $0xa8] sm:$0xff]
    %v191 = vld [vmem:[#allocation8 + $0xb0] sm:$0xff]
    %v192 = vld [vmem:[#allocation8 + $0xb8] sm:$0xff]
    %v193 = vld [vmem:[#allocation8 + $0xc0] sm:$0xff]
    %v194 = vld [vmem:[#allocation8 + $0xc8] sm:$0xff]
    %v195 = vld [vmem:[#allocation8 + $0xd0] sm:$0xff]
    %v196 = vld [vmem:[#allocation8 + $0xd8] sm:$0xff]
    %v197 = vld [vmem:[#allocation8 + $0xe0] sm:$0xff]
    %v198 = vld [vmem:[#allocation8 + $0xe8] sm:$0xff]
    %v199 = vld [vmem:[#allocation8 + $0xf0] sm:$0xff]
    %v200 = vld [vmem:[#allocation8 + $0xf8] sm:$0xff]
    %v201 = vld [vmem:[#allocation9] sm:$0xff]
    %v202 = vld [vmem:[#allocation9 + $0x8] sm:$0xff]
    %v203 = vld [vmem:[#allocation9 + $0x10] sm:$0xff]
    %v204 = vld [vmem:[#allocation9 + $0x18] sm:$0xff]
    %v205 = vld [vmem:[#allocation9 + $0x20] sm:$0xff]
    %v206 = vld [vmem:[#allocation9 + $0x28] sm:$0xff]
    %v207 = vld [vmem:[#allocation9 + $0x30] sm:$0xff]
    %v208 = vld [vmem:[#allocation9 + $0x38] sm:$0xff]
    %v209 = vld [vmem:[#allocation9 + $0x40] sm:$0xff]
    %v210 = vld [vmem:[#allocation9 + $0x48] sm:$0xff]
    %v211 = vld [vmem:[#allocation9 + $0x50] sm:$0xff]
    %v212 = vld [vmem:[#allocation9 + $0x58] sm:$0xff]
    %v213 = vld [vmem:[#allocation9 + $0x60] sm:$0xff]
    %v214 = vld [vmem:[#allocation9 + $0x68] sm:$0xff]
    %v215 = vld [vmem:[#allocation9 + $0x70] sm:$0xff]
    %v216 = vld [vmem:[#allocation9 + $0x78] sm:$0xff]
    %v217 = vld [vmem:[#allocation9 + $0x80] sm:$0xff]
    %v218 = vld [vmem:[#allocation9 + $0x88] sm:$0xff]
    %v219 = vld [vmem:[#allocation9 + $0x90] sm:$0xff]
    %v220 = vld [vmem:[#allocation9 + $0x98] sm:$0xff]
    %v221 = vld [vmem:[#allocation9 + $0xa0] sm:$0xff]
    %v222 = vld [vmem:[#allocation9 + $0xa8] sm:$0xff]
    %v223 = vld [vmem:[#allocation9 + $0xb0] sm:$0xff]
    %v224 = vld [vmem:[#allocation9 + $0xb8] sm:$0xff]
    %v225 = vld [vmem:[#allocation9 + $0xc0] sm:$0xff]
    %v226 = vld [vmem:[#allocation9 + $0xc8] sm:$0xff]
    %v227 = vld [vmem:[#allocation9 + $0xd0] sm:$0xff]
    %v228 = vld [vmem:[#allocation9 + $0xd8] sm:$0xff]
    %v229 = vld [vmem:[#allocation9 + $0xe0] sm:$0xff]
    %v230 = vld [vmem:[#allocation9 + $0xe8] sm:$0xff]
    %v231 = vld [vmem:[#allocation9 + $0xf0] sm:$0xff]
    %v232 = vld [vmem:[#allocation9 + $0xf8] sm:$0xff]
    %v265 = vunpack.c.l.b16 %v201
    %v266 = vunpack.c.h.b16 %v201
    %v267 = vunpack.c.l.b16 %v202
    %v268 = vunpack.c.h.b16 %v202
    %v269 = vunpack.c.l.b16 %v203
    %v270 = vunpack.c.h.b16 %v203
    %v271 = vunpack.c.l.b16 %v204
    %v272 = vunpack.c.h.b16 %v204
    %v273 = vunpack.c.l.b16 %v205
    %v274 = vunpack.c.h.b16 %v205
    %v275 = vunpack.c.l.b16 %v206
    %v276 = vunpack.c.h.b16 %v206
    %v277 = vunpack.c.l.b16 %v207
    %v278 = vunpack.c.h.b16 %v207
    %v279 = vunpack.c.l.b16 %v208
    %v280 = vunpack.c.h.b16 %v208
    %v281 = vunpack.c.l.b16 %v209
    %v282 = vunpack.c.h.b16 %v209
    %v283 = vunpack.c.l.b16 %v210
    %v284 = vunpack.c.h.b16 %v210
    %v285 = vunpack.c.l.b16 %v211
    %v286 = vunpack.c.h.b16 %v211
    %v287 = vunpack.c.l.b16 %v212
    %v288 = vunpack.c.h.b16 %v212
    %v289 = vunpack.c.l.b16 %v213
    %v290 = vunpack.c.h.b16 %v213
    %v291 = vunpack.c.l.b16 %v214
    %v292 = vunpack.c.h.b16 %v214
    %v293 = vunpack.c.l.b16 %v215
    %v294 = vunpack.c.h.b16 %v215
    %v295 = vunpack.c.l.b16 %v216
    %v296 = vunpack.c.h.b16 %v216
    %v297 = vunpack.c.l.b16 %v217
    %v298 = vunpack.c.h.b16 %v217
    %v299 = vunpack.c.l.b16 %v218
    %v300 = vunpack.c.h.b16 %v218
    %v301 = vunpack.c.l.b16 %v219
    %v302 = vunpack.c.h.b16 %v219
    %v303 = vunpack.c.l.b16 %v220
    %v304 = vunpack.c.h.b16 %v220
    %v305 = vunpack.c.l.b16 %v221
    %v306 = vunpack.c.h.b16 %v221
    %v307 = vunpack.c.l.b16 %v222
    %v308 = vunpack.c.h.b16 %v222
    %v309 = vunpack.c.l.b16 %v223
    %v310 = vunpack.c.h.b16 %v223
    %v311 = vunpack.c.l.b16 %v224
    %v312 = vunpack.c.h.b16 %v224
    %v313 = vunpack.c.l.b16 %v225
    %v314 = vunpack.c.h.b16 %v225
    %v315 = vunpack.c.l.b16 %v226
    %v316 = vunpack.c.h.b16 %v226
    %v317 = vunpack.c.l.b16 %v227
    %v318 = vunpack.c.h.b16 %v227
    %v319 = vunpack.c.l.b16 %v228
    %v320 = vunpack.c.h.b16 %v228
    %v321 = vunpack.c.l.b16 %v229
    %v322 = vunpack.c.h.b16 %v229
    %v323 = vunpack.c.l.b16 %v230
    %v324 = vunpack.c.h.b16 %v230
    %v325 = vunpack.c.l.b16 %v231
    %v326 = vunpack.c.h.b16 %v231
    %v327 = vunpack.c.l.b16 %v232
    %v328 = vunpack.c.h.b16 %v232
    %v329 = vpack.c.b16 %v273, %v265
    %v330 = vpack.c.b16 %v274, %v266
    %v331 = vpack.c.b16 %v275, %v267
    %v332 = vpack.c.b16 %v276, %v268
    %v333 = vpack.c.b16 %v277, %v269
    %v334 = vpack.c.b16 %v278, %v270
    %v335 = vpack.c.b16 %v279, %v271
    %v336 = vpack.c.b16 %v280, %v272
    %v337 = vpack.c.b16 %v289, %v281
    %v338 = vpack.c.b16 %v290, %v282
    %v339 = vpack.c.b16 %v291, %v283
    %v340 = vpack.c.b16 %v292, %v284
    %v341 = vpack.c.b16 %v293, %v285
    %v342 = vpack.c.b16 %v294, %v286
    %v343 = vpack.c.b16 %v295, %v287
    %v344 = vpack.c.b16 %v296, %v288
    %v345 = vpack.c.b16 %v305, %v297
    %v346 = vpack.c.b16 %v306, %v298
    %v347 = vpack.c.b16 %v307, %v299
    %v348 = vpack.c.b16 %v308, %v300
    %v349 = vpack.c.b16 %v309, %v301
    %v350 = vpack.c.b16 %v310, %v302
    %v351 = vpack.c.b16 %v311, %v303
    %v352 = vpack.c.b16 %v312, %v304
    %v353 = vpack.c.b16 %v321, %v313
    %v354 = vpack.c.b16 %v322, %v314
    %v355 = vpack.c.b16 %v323, %v315
    %v356 = vpack.c.b16 %v324, %v316
    %v357 = vpack.c.b16 %v325, %v317
    %v358 = vpack.c.b16 %v326, %v318
    %v359 = vpack.c.b16 %v327, %v319
    %v360 = vpack.c.b16 %v328, %v320
    %vm393 = vcmask 523264
    %v395 = vsel %vm393, %v168, 0
    %397 = vmatprep.subr.bf16.mxu0 %v330
    %398 = vmatpush1.bf16.msra.mxu0 %v329
    %399 = vmatprep.subr.bf16.mxu0 %v338
    %400 = vmatpush1.bf16.msra.mxu0 %v337
    %401 = vmatprep.subr.bf16.mxu0 %v346
    %402 = vmatpush1.bf16.msra.mxu0 %v345
    %403 = vmatprep.subr.bf16.mxu0 %v354
    %404 = vmatpush1.bf16.msra.mxu0 %v353
    %405 = vmatprep.subr.bf16.mxu0 0
    %406 = vmatpush1.bf16.msra.mxu0 0
    %407 = vmatprep.subr.bf16.mxu0 0
    %408 = vmatpush1.bf16.msra.mxu0 0
    %409 = vmatprep.subr.bf16.mxu0 0
    %410 = vmatpush1.bf16.msra.mxu0 0
    %411 = vmatprep.subr.bf16.mxu0 0
    %412 = vmatpush1.bf16.msra.mxu0 0
    %413 = vmatprep.subr.bf16.mxu0 0
    %414 = vmatpush1.bf16.msra.mxu0 0
    %415 = vmatprep.subr.bf16.mxu0 0
    %416 = vmatpush1.bf16.msra.mxu0 0
    %417 = vmatprep.subr.bf16.mxu0 0
    %418 = vmatpush1.bf16.msra.mxu0 0
    %419 = vmatprep.subr.bf16.mxu0 0
    %420 = vmatpush1.bf16.msra.mxu0 0
    %421 = vmatprep.subr.bf16.mxu0 0
    %422 = vmatpush1.bf16.msra.mxu0 0
    %423 = vmatprep.subr.bf16.mxu0 0
    %424 = vmatpush1.bf16.msra.mxu0 0
    %425 = vmatprep.subr.bf16.mxu0 0
    %426 = vmatpush1.bf16.msra.mxu0 0
    %427 = vmatprep.subr.bf16.mxu0 0
    %428 = vmatpush1.bf16.msra.mxu0 0
    %429 = vmatprep.mubr.bf16.mxu0 0
    %430 = vmatmul.mubr.bf16.gmra.mrb[0].mxu0 %v395
    %v431 = vpop.f32.mrb[0].mxu0
    %v432 = vadd.f32 0.0, %v431
    %v433 = vpop.f32.mrb[0].mxu0
    %v434 = vadd.f32 0.0, %v433
    %v435 = vpop.f32.mrb[0].mxu0
    %v436 = vpop.f32.mrb[0].mxu0
    %437 = vdwg.mxu0
    %438 = vmatprep.subr.bf16.mxu0 %v332
    %439 = vmatpush1.bf16.msra.mxu0 %v331
    %440 = vmatprep.subr.bf16.mxu0 %v340
    %441 = vmatpush1.bf16.msra.mxu0 %v339
    %442 = vmatprep.subr.bf16.mxu0 %v348
    %443 = vmatpush1.bf16.msra.mxu0 %v347
    %444 = vmatprep.subr.bf16.mxu0 %v356
    %445 = vmatpush1.bf16.msra.mxu0 %v355
    %446 = vmatprep.subr.bf16.mxu0 0
    %447 = vmatpush1.bf16.msra.mxu0 0
    %448 = vmatprep.subr.bf16.mxu0 0
    %449 = vmatpush1.bf16.msra.mxu0 0
    %450 = vmatprep.subr.bf16.mxu0 0
    %451 = vmatpush1.bf16.msra.mxu0 0
    %452 = vmatprep.subr.bf16.mxu0 0
    %453 = vmatpush1.bf16.msra.mxu0 0
    %454 = vmatprep.subr.bf16.mxu0 0
    %455 = vmatpush1.bf16.msra.mxu0 0
    %456 = vmatprep.subr.bf16.mxu0 0
    %457 = vmatpush1.bf16.msra.mxu0 0
    %458 = vmatprep.subr.bf16.mxu0 0
    %459 = vmatpush1.bf16.msra.mxu0 0
    %460 = vmatprep.subr.bf16.mxu0 0
    %461 = vmatpush1.bf16.msra.mxu0 0
    %462 = vmatprep.subr.bf16.mxu0 0
    %463 = vmatpush1.bf16.msra.mxu0 0
    %464 = vmatprep.subr.bf16.mxu0 0
    %465 = vmatpush1.bf16.msra.mxu0 0
    %466 = vmatprep.subr.bf16.mxu0 0
    %467 = vmatpush1.bf16.msra.mxu0 0
    %468 = vmatprep.subr.bf16.mxu0 0
    %469 = vmatpush1.bf16.msra.mxu0 0
    %470 = vmatprep.mubr.bf16.mxu0 0
    %471 = vmatmul.mubr.bf16.gmra.mrb[0].mxu0 %v395
    %v472 = vpop.f32.mrb[0].mxu0
    %v473 = vadd.f32 0.0, %v472
    %v474 = vpop.f32.mrb[0].mxu0
    %v475 = vadd.f32 0.0, %v474
    %v476 = vpop.f32.mrb[0].mxu0
    %v477 = vpop.f32.mrb[0].mxu0
    %478 = vdwg.mxu0
    %479 = vmatprep.subr.bf16.mxu0 %v334
    %480 = vmatpush1.bf16.msra.mxu0 %v333
    %481 = vmatprep.subr.bf16.mxu0 %v342
    %482 = vmatpush1.bf16.msra.mxu0 %v341
    %483 = vmatprep.subr.bf16.mxu0 %v350
    %484 = vmatpush1.bf16.msra.mxu0 %v349
    %485 = vmatprep.subr.bf16.mxu0 %v358
    %486 = vmatpush1.bf16.msra.mxu0 %v357
    %487 = vmatprep.subr.bf16.mxu0 0
    %488 = vmatpush1.bf16.msra.mxu0 0
    %489 = vmatprep.subr.bf16.mxu0 0
    %490 = vmatpush1.bf16.msra.mxu0 0
    %491 = vmatprep.subr.bf16.mxu0 0
    %492 = vmatpush1.bf16.msra.mxu0 0
    %493 = vmatprep.subr.bf16.mxu0 0
    %494 = vmatpush1.bf16.msra.mxu0 0
    %495 = vmatprep.subr.bf16.mxu0 0
    %496 = vmatpush1.bf16.msra.mxu0 0
    %497 = vmatprep.subr.bf16.mxu0 0
    %498 = vmatpush1.bf16.msra.mxu0 0
    %499 = vmatprep.subr.bf16.mxu0 0
    %500 = vmatpush1.bf16.msra.mxu0 0
    %501 = vmatprep.subr.bf16.mxu0 0
    %502 = vmatpush1.bf16.msra.mxu0 0
    %503 = vmatprep.subr.bf16.mxu0 0
    %504 = vmatpush1.bf16.msra.mxu0 0
    %505 = vmatprep.subr.bf16.mxu0 0
    %506 = vmatpush1.bf16.msra.mxu0 0
    %507 = vmatprep.subr.bf16.mxu0 0
    %508 = vmatpush1.bf16.msra.mxu0 0
    %509 = vmatprep.subr.bf16.mxu0 0
    %510 = vmatpush1.bf16.msra.mxu0 0
    %511 = vmatprep.mubr.bf16.mxu0 0
    %512 = vmatmul.mubr.bf16.gmra.mrb[0].mxu0 %v395
    %v513 = vpop.f32.mrb[0].mxu0
    %v514 = vadd.f32 0.0, %v513
    %v515 = vpop.f32.mrb[0].mxu0
    %v516 = vadd.f32 0.0, %v515
    %v517 = vpop.f32.mrb[0].mxu0
    %v518 = vpop.f32.mrb[0].mxu0
    %519 = vdwg.mxu0
    %520 = vmatprep.subr.bf16.mxu0 %v336
    %521 = vmatpush1.bf16.msra.mxu0 %v335
    %522 = vmatprep.subr.bf16.mxu0 %v344
    %523 = vmatpush1.bf16.msra.mxu0 %v343
    %524 = vmatprep.subr.bf16.mxu0 %v352
    %525 = vmatpush1.bf16.msra.mxu0 %v351
    %526 = vmatprep.subr.bf16.mxu0 %v360
    %527 = vmatpush1.bf16.msra.mxu0 %v359
    %528 = vmatprep.subr.bf16.mxu0 0
    %529 = vmatpush1.bf16.msra.mxu0 0
    %530 = vmatprep.subr.bf16.mxu0 0
    %531 = vmatpush1.bf16.msra.mxu0 0
    %532 = vmatprep.subr.bf16.mxu0 0
    %533 = vmatpush1.bf16.msra.mxu0 0
    %534 = vmatprep.subr.bf16.mxu0 0
    %535 = vmatpush1.bf16.msra.mxu0 0
    %536 = vmatprep.subr.bf16.mxu0 0
    %537 = vmatpush1.bf16.msra.mxu0 0
    %538 = vmatprep.subr.bf16.mxu0 0
    %539 = vmatpush1.bf16.msra.mxu0 0
    %540 = vmatprep.subr.bf16.mxu0 0
    %541 = vmatpush1.bf16.msra.mxu0 0
    %542 = vmatprep.subr.bf16.mxu0 0
    %543 = vmatpush1.bf16.msra.mxu0 0
    %544 = vmatprep.subr.bf16.mxu0 0
    %545 = vmatpush1.bf16.msra.mxu0 0
    %546 = vmatprep.subr.bf16.mxu0 0
    %547 = vmatpush1.bf16.msra.mxu0 0
    %548 = vmatprep.subr.bf16.mxu0 0
    %549 = vmatpush1.bf16.msra.mxu0 0
    %550 = vmatprep.subr.bf16.mxu0 0
    %551 = vmatpush1.bf16.msra.mxu0 0
    %552 = vmatprep.mubr.bf16.mxu0 0
    %553 = vmatmul.mubr.bf16.gmra.mrb[0].mxu0 %v395
    %v554 = vpop.f32.mrb[0].mxu0
    %v555 = vadd.f32 0.0, %v554
    %v556 = vpop.f32.mrb[0].mxu0
    %v557 = vadd.f32 0.0, %v556
    %v558 = vpop.f32.mrb[0].mxu0
    %v559 = vpop.f32.mrb[0].mxu0
    %560 = vdwg.mxu0
    %v593 = vunpack.c.l.b16 %v169
    %v594 = vunpack.c.h.b16 %v169
    %v595 = vunpack.c.l.b16 %v170
    %v596 = vunpack.c.h.b16 %v170
    %v597 = vunpack.c.l.b16 %v171
    %v598 = vunpack.c.h.b16 %v171
    %v599 = vunpack.c.l.b16 %v172
    %v600 = vunpack.c.h.b16 %v172
    %v601 = vunpack.c.l.b16 %v173
    %v602 = vunpack.c.h.b16 %v173
    %v603 = vunpack.c.l.b16 %v174
    %v604 = vunpack.c.h.b16 %v174
    %v605 = vunpack.c.l.b16 %v175
    %v606 = vunpack.c.h.b16 %v175
    %v607 = vunpack.c.l.b16 %v176
    %v608 = vunpack.c.h.b16 %v176
    %v609 = vunpack.c.l.b16 %v177
    %v610 = vunpack.c.h.b16 %v177
    %v611 = vunpack.c.l.b16 %v178
    %v612 = vunpack.c.h.b16 %v178
    %v613 = vunpack.c.l.b16 %v179
    %v614 = vunpack.c.h.b16 %v179
    %v615 = vunpack.c.l.b16 %v180
    %v616 = vunpack.c.h.b16 %v180
    %v617 = vunpack.c.l.b16 %v181
    %v618 = vunpack.c.h.b16 %v181
    %v619 = vunpack.c.l.b16 %v182
    %v620 = vunpack.c.h.b16 %v182
    %v621 = vunpack.c.l.b16 %v183
    %v622 = vunpack.c.h.b16 %v183
    %v623 = vunpack.c.l.b16 %v184
    %v624 = vunpack.c.h.b16 %v184
    %v625 = vunpack.c.l.b16 %v185
    %v626 = vunpack.c.h.b16 %v185
    %v627 = vunpack.c.l.b16 %v186
    %v628 = vunpack.c.h.b16 %v186
    %v629 = vunpack.c.l.b16 %v187
    %v630 = vunpack.c.h.b16 %v187
    %v631 = vunpack.c.l.b16 %v188
    %v632 = vunpack.c.h.b16 %v188
    %v633 = vunpack.c.l.b16 %v189
    %v634 = vunpack.c.h.b16 %v189
    %v635 = vunpack.c.l.b16 %v190
    %v636 = vunpack.c.h.b16 %v190
    %v637 = vunpack.c.l.b16 %v191
    %v638 = vunpack.c.h.b16 %v191
    %v639 = vunpack.c.l.b16 %v192
    %v640 = vunpack.c.h.b16 %v192
    %v641 = vunpack.c.l.b16 %v193
    %v642 = vunpack.c.h.b16 %v193
    %v643 = vunpack.c.l.b16 %v194
    %v644 = vunpack.c.h.b16 %v194
    %v645 = vunpack.c.l.b16 %v195
    %v646 = vunpack.c.h.b16 %v195
    %v647 = vunpack.c.l.b16 %v196
    %v648 = vunpack.c.h.b16 %v196
    %v649 = vunpack.c.l.b16 %v197
    %v650 = vunpack.c.h.b16 %v197
    %v651 = vunpack.c.l.b16 %v198
    %v652 = vunpack.c.h.b16 %v198
    %v653 = vunpack.c.l.b16 %v199
    %v654 = vunpack.c.h.b16 %v199
    %v655 = vunpack.c.l.b16 %v200
    %v656 = vunpack.c.h.b16 %v200
    %v657 = vpack.c.b16 %v601, %v593
    %v658 = vpack.c.b16 %v602, %v594
    %v659 = vpack.c.b16 %v603, %v595
    %v660 = vpack.c.b16 %v604, %v596
    %v661 = vpack.c.b16 %v605, %v597
    %v662 = vpack.c.b16 %v606, %v598
    %v663 = vpack.c.b16 %v607, %v599
    %v664 = vpack.c.b16 %v608, %v600
    %v665 = vpack.c.b16 %v617, %v609
    %v666 = vpack.c.b16 %v618, %v610
    %v667 = vpack.c.b16 %v619, %v611
    %v668 = vpack.c.b16 %v620, %v612
    %v669 = vpack.c.b16 %v621, %v613
    %v670 = vpack.c.b16 %v622, %v614
    %v671 = vpack.c.b16 %v623, %v615
    %v672 = vpack.c.b16 %v624, %v616
    %v673 = vpack.c.b16 %v633, %v625
    %v674 = vpack.c.b16 %v634, %v626
    %v675 = vpack.c.b16 %v635, %v627
    %v676 = vpack.c.b16 %v636, %v628
    %v677 = vpack.c.b16 %v637, %v629
    %v678 = vpack.c.b16 %v638, %v630
    %v679 = vpack.c.b16 %v639, %v631
    %v680 = vpack.c.b16 %v640, %v632
    %v681 = vpack.c.b16 %v649, %v641
    %v682 = vpack.c.b16 %v650, %v642
    %v683 = vpack.c.b16 %v651, %v643
    %v684 = vpack.c.b16 %v652, %v644
    %v685 = vpack.c.b16 %v653, %v645
    %v686 = vpack.c.b16 %v654, %v646
    %v687 = vpack.c.b16 %v655, %v647
    %v688 = vpack.c.b16 %v656, %v648
    %v722 = vsel %vm393, %v166, 0
    %724 = vmatprep.subr.bf16.mxu0 %v658
    %725 = vmatpush1.bf16.msra.mxu0 %v657
    %726 = vmatprep.subr.bf16.mxu0 %v666
    %727 = vmatpush1.bf16.msra.mxu0 %v665
    %728 = vmatprep.subr.bf16.mxu0 %v674
    %729 = vmatpush1.bf16.msra.mxu0 %v673
    %730 = vmatprep.subr.bf16.mxu0 %v682
    %731 = vmatpush1.bf16.msra.mxu0 %v681
    %732 = vmatprep.subr.bf16.mxu0 0
    %733 = vmatpush1.bf16.msra.mxu0 0
    %734 = vmatprep.subr.bf16.mxu0 0
    %735 = vmatpush1.bf16.msra.mxu0 0
    %736 = vmatprep.subr.bf16.mxu0 0
    %737 = vmatpush1.bf16.msra.mxu0 0
    %738 = vmatprep.subr.bf16.mxu0 0
    %739 = vmatpush1.bf16.msra.mxu0 0
    %740 = vmatprep.subr.bf16.mxu0 0
    %741 = vmatpush1.bf16.msra.mxu0 0
    %742 = vmatprep.subr.bf16.mxu0 0
    %743 = vmatpush1.bf16.msra.mxu0 0
    %744 = vmatprep.subr.bf16.mxu0 0
    %745 = vmatpush1.bf16.msra.mxu0 0
    %746 = vmatprep.subr.bf16.mxu0 0
    %747 = vmatpush1.bf16.msra.mxu0 0
    %748 = vmatprep.subr.bf16.mxu0 0
    %749 = vmatpush1.bf16.msra.mxu0 0
    %750 = vmatprep.subr.bf16.mxu0 0
    %751 = vmatpush1.bf16.msra.mxu0 0
    %752 = vmatprep.subr.bf16.mxu0 0
    %753 = vmatpush1.bf16.msra.mxu0 0
    %754 = vmatprep.subr.bf16.mxu0 0
    %755 = vmatpush1.bf16.msra.mxu0 0
    %756 = vmatprep.mubr.bf16.mxu0 0
    %757 = vmatmul.mubr.bf16.gmra.mrb[0].mxu0 %v722
    %v758 = vpop.f32.mrb[0].mxu0
    %v759 = vadd.f32 %v432, %v758
    %v760 = vpop.f32.mrb[0].mxu0
    %v761 = vadd.f32 %v434, %v760
    %v762 = vpop.f32.mrb[0].mxu0
    %v763 = vpop.f32.mrb[0].mxu0
    %764 = vdwg.mxu0
    %765 = vmatprep.subr.bf16.mxu0 %v660
    %766 = vmatpush1.bf16.msra.mxu0 %v659
    %767 = vmatprep.subr.bf16.mxu0 %v668
    %768 = vmatpush1.bf16.msra.mxu0 %v667
    %769 = vmatprep.subr.bf16.mxu0 %v676
    %770 = vmatpush1.bf16.msra.mxu0 %v675
    %771 = vmatprep.subr.bf16.mxu0 %v684
    %772 = vmatpush1.bf16.msra.mxu0 %v683
    %773 = vmatprep.subr.bf16.mxu0 0
    %774 = vmatpush1.bf16.msra.mxu0 0
    %775 = vmatprep.subr.bf16.mxu0 0
    %776 = vmatpush1.bf16.msra.mxu0 0
    %777 = vmatprep.subr.bf16.mxu0 0
    %778 = vmatpush1.bf16.msra.mxu0 0
    %779 = vmatprep.subr.bf16.mxu0 0
    %780 = vmatpush1.bf16.msra.mxu0 0
    %781 = vmatprep.subr.bf16.mxu0 0
    %782 = vmatpush1.bf16.msra.mxu0 0
    %783 = vmatprep.subr.bf16.mxu0 0
    %784 = vmatpush1.bf16.msra.mxu0 0
    %785 = vmatprep.subr.bf16.mxu0 0
    %786 = vmatpush1.bf16.msra.mxu0 0
    %787 = vmatprep.subr.bf16.mxu0 0
    %788 = vmatpush1.bf16.msra.mxu0 0
    %789 = vmatprep.subr.bf16.mxu0 0
    %790 = vmatpush1.bf16.msra.mxu0 0
    %791 = vmatprep.subr.bf16.mxu0 0
    %792 = vmatpush1.bf16.msra.mxu0 0
    %793 = vmatprep.subr.bf16.mxu0 0
    %794 = vmatpush1.bf16.msra.mxu0 0
    %795 = vmatprep.subr.bf16.mxu0 0
    %796 = vmatpush1.bf16.msra.mxu0 0
    %797 = vmatprep.mubr.bf16.mxu0 0
    %798 = vmatmul.mubr.bf16.gmra.mrb[0].mxu0 %v722
    %v799 = vpop.f32.mrb[0].mxu0
    %v800 = vadd.f32 %v473, %v799
    %v801 = vpop.f32.mrb[0].mxu0
    %v802 = vadd.f32 %v475, %v801
    %v803 = vpop.f32.mrb[0].mxu0
    %v804 = vpop.f32.mrb[0].mxu0
    %805 = vdwg.mxu0
    %806 = vmatprep.subr.bf16.mxu0 %v662
    %807 = vmatpush1.bf16.msra.mxu0 %v661
    %808 = vmatprep.subr.bf16.mxu0 %v670
    %809 = vmatpush1.bf16.msra.mxu0 %v669
    %810 = vmatprep.subr.bf16.mxu0 %v678
    %811 = vmatpush1.bf16.msra.mxu0 %v677
    %812 = vmatprep.subr.bf16.mxu0 %v686
    %813 = vmatpush1.bf16.msra.mxu0 %v685
    %814 = vmatprep.subr.bf16.mxu0 0
    %815 = vmatpush1.bf16.msra.mxu0 0
    %816 = vmatprep.subr.bf16.mxu0 0
    %817 = vmatpush1.bf16.msra.mxu0 0
    %818 = vmatprep.subr.bf16.mxu0 0
    %819 = vmatpush1.bf16.msra.mxu0 0
    %820 = vmatprep.subr.bf16.mxu0 0
    %821 = vmatpush1.bf16.msra.mxu0 0
    %822 = vmatprep.subr.bf16.mxu0 0
    %823 = vmatpush1.bf16.msra.mxu0 0
    %824 = vmatprep.subr.bf16.mxu0 0
    %825 = vmatpush1.bf16.msra.mxu0 0
    %826 = vmatprep.subr.bf16.mxu0 0
    %827 = vmatpush1.bf16.msra.mxu0 0
    %828 = vmatprep.subr.bf16.mxu0 0
    %829 = vmatpush1.bf16.msra.mxu0 0
    %830 = vmatprep.subr.bf16.mxu0 0
    %831 = vmatpush1.bf16.msra.mxu0 0
    %832 = vmatprep.subr.bf16.mxu0 0
    %833 = vmatpush1.bf16.msra.mxu0 0
    %834 = vmatprep.subr.bf16.mxu0 0
    %835 = vmatpush1.bf16.msra.mxu0 0
    %836 = vmatprep.subr.bf16.mxu0 0
    %837 = vmatpush1.bf16.msra.mxu0 0
    %838 = vmatprep.mubr.bf16.mxu0 0
    %839 = vmatmul.mubr.bf16.gmra.mrb[0].mxu0 %v722
    %v840 = vpop.f32.mrb[0].mxu0
    %v841 = vadd.f32 %v514, %v840
    %v842 = vpop.f32.mrb[0].mxu0
    %v843 = vadd.f32 %v516, %v842
    %v844 = vpop.f32.mrb[0].mxu0
    %v845 = vpop.f32.mrb[0].mxu0
    %846 = vdwg.mxu0
    %847 = vmatprep.subr.bf16.mxu0 %v664
    %848 = vmatpush1.bf16.msra.mxu0 %v663
    %849 = vmatprep.subr.bf16.mxu0 %v672
    %850 = vmatpush1.bf16.msra.mxu0 %v671
    %851 = vmatprep.subr.bf16.mxu0 %v680
    %852 = vmatpush1.bf16.msra.mxu0 %v679
    %853 = vmatprep.subr.bf16.mxu0 %v688
    %854 = vmatpush1.bf16.msra.mxu0 %v687
    %855 = vmatprep.subr.bf16.mxu0 0
    %856 = vmatpush1.bf16.msra.mxu0 0
    %857 = vmatprep.subr.bf16.mxu0 0
    %858 = vmatpush1.bf16.msra.mxu0 0
    %859 = vmatprep.subr.bf16.mxu0 0
    %860 = vmatpush1.bf16.msra.mxu0 0
    %861 = vmatprep.subr.bf16.mxu0 0
    %862 = vmatpush1.bf16.msra.mxu0 0
    %863 = vmatprep.subr.bf16.mxu0 0
    %864 = vmatpush1.bf16.msra.mxu0 0
    %865 = vmatprep.subr.bf16.mxu0 0
    %866 = vmatpush1.bf16.msra.mxu0 0
    %867 = vmatprep.subr.bf16.mxu0 0
    %868 = vmatpush1.bf16.msra.mxu0 0
    %869 = vmatprep.subr.bf16.mxu0 0
    %870 = vmatpush1.bf16.msra.mxu0 0
    %871 = vmatprep.subr.bf16.mxu0 0
    %872 = vmatpush1.bf16.msra.mxu0 0
    %873 = vmatprep.subr.bf16.mxu0 0
    %874 = vmatpush1.bf16.msra.mxu0 0
    %875 = vmatprep.subr.bf16.mxu0 0
    %876 = vmatpush1.bf16.msra.mxu0 0
    %877 = vmatprep.subr.bf16.mxu0 0
    %878 = vmatpush1.bf16.msra.mxu0 0
    %879 = vmatprep.mubr.bf16.mxu0 0
    %880 = vmatmul.mubr.bf16.gmra.mrb[0].mxu0 %v722
    %v881 = vpop.f32.mrb[0].mxu0
    %v882 = vadd.f32 %v555, %v881
    %v883 = vpop.f32.mrb[0].mxu0
    %v884 = vadd.f32 %v557, %v883
    %v885 = vpop.f32.mrb[0].mxu0
    %v886 = vpop.f32.mrb[0].mxu0
    %887 = vdwg.mxu0
    %v888 = vld [vmem:[#allocation11] sm:$0xff]
    %v890 = vlaneseq
    %v891 = vshrl.u32 %v890, 7
    %v892 = vsub.s32 0, %v891
    %v893 = vrot.slane %v888, %v892
    %v894 = vlaneseq
    %v895 = vshrl.u32 %v894, 7
    %v896 = vsub.s32 1, %v895
    %v897 = vrot.slane %v888, %v896
    %v898 = vlaneseq
    %v899 = vshrl.u32 %v898, 7
    %v900 = vsub.s32 2, %v899
    %v901 = vrot.slane %v888, %v900
    %v902 = vlaneseq
    %v903 = vshrl.u32 %v902, 7
    %v904 = vsub.s32 3, %v903
    %v905 = vrot.slane %v888, %v904
    %v906 = vlaneseq
    %v907 = vshrl.u32 %v906, 7
    %v908 = vsub.s32 4, %v907
    %v909 = vrot.slane %v888, %v908
    %v910 = vlaneseq
    %v911 = vshrl.u32 %v910, 7
    %v912 = vsub.s32 5, %v911
    %v913 = vrot.slane %v888, %v912
    %v914 = vlaneseq
    %v915 = vshrl.u32 %v914, 7
    %v916 = vsub.s32 6, %v915
    %v917 = vrot.slane %v888, %v916
    %v918 = vlaneseq
    %v919 = vshrl.u32 %v918, 7
    %v920 = vsub.s32 7, %v919
    %v921 = vrot.slane %v888, %v920
    %v930 = vadd.f32 %v759, %v893
    %v931 = vadd.f32 %v761, %v897
    %v932 = vadd.f32 %v800, %v901
    %v933 = vadd.f32 %v802, %v905
    %v934 = vadd.f32 %v841, %v909
    %v935 = vadd.f32 %v843, %v913
    %v936 = vadd.f32 %v882, %v917
    %v937 = vadd.f32 %v884, %v921
    %v938 = vmax.f32 %v930, 0.0
    %v939 = vmax.f32 %v931, 0.0
    %v940 = vmax.f32 %v932, 0.0
    %v941 = vmax.f32 %v933, 0.0
    %v942 = vmax.f32 %v934, 0.0
    %v943 = vmax.f32 %v935, 0.0
    %v944 = vmax.f32 %v936, 0.0
    %v945 = vmax.f32 %v937, 0.0
    %v946 = vpack.c.bf16 %v938, %v938
    %v947 = vpack.c.bf16 %v939, %v939
    %v948 = vpack.c.bf16 %v940, %v940
    %v949 = vpack.c.bf16 %v941, %v941
    %v950 = vpack.c.bf16 %v942, %v942
    %v951 = vpack.c.bf16 %v943, %v943
    %v952 = vpack.c.bf16 %v944, %v944
    %v953 = vpack.c.bf16 %v945, %v945
    %v954 = vld [vmem:[#allocation12] sm:$0xff]
    %v955 = vld [vmem:[#allocation12 + $0x8] sm:$0xff]
    %v956 = vld [vmem:[#allocation12 + $0x10] sm:$0xff]
    %v957 = vld [vmem:[#allocation12 + $0x18] sm:$0xff]
    %v958 = vld [vmem:[#allocation12 + $0x20] sm:$0xff]
    %v959 = vld [vmem:[#allocation12 + $0x28] sm:$0xff]
    %v960 = vld [vmem:[#allocation12 + $0x30] sm:$0xff]
    %v961 = vld [vmem:[#allocation12 + $0x38] sm:$0xff]
    %v962 = vld [vmem:[#allocation12 + $0x40] sm:$0xff]
    %v963 = vld [vmem:[#allocation12 + $0x48] sm:$0xff]
    %v964 = vld [vmem:[#allocation12 + $0x50] sm:$0xff]
    %v965 = vld [vmem:[#allocation12 + $0x58] sm:$0xff]
    %v966 = vld [vmem:[#allocation12 + $0x60] sm:$0xff]
    %v967 = vld [vmem:[#allocation12 + $0x68] sm:$0xff]
    %v968 = vld [vmem:[#allocation12 + $0x70] sm:$0xff]
    %v969 = vld [vmem:[#allocation12 + $0x78] sm:$0xff]
    %v970 = vld [vmem:[#allocation12 + $0x80] sm:$0xff]
    %v971 = vld [vmem:[#allocation12 + $0x88] sm:$0xff]
    %v972 = vld [vmem:[#allocation12 + $0x90] sm:$0xff]
    %v973 = vld [vmem:[#allocation12 + $0x98] sm:$0xff]
    %v974 = vld [vmem:[#allocation12 + $0xa0] sm:$0xff]
    %v975 = vld [vmem:[#allocation12 + $0xa8] sm:$0xff]
    %v976 = vld [vmem:[#allocation12 + $0xb0] sm:$0xff]
    %v977 = vld [vmem:[#allocation12 + $0xb8] sm:$0xff]
    %v978 = vld [vmem:[#allocation12 + $0xc0] sm:$0xff]
    %v979 = vld [vmem:[#allocation12 + $0xc8] sm:$0xff]
    %v980 = vld [vmem:[#allocation12 + $0xd0] sm:$0xff]
    %v981 = vld [vmem:[#allocation12 + $0xd8] sm:$0xff]
    %v982 = vld [vmem:[#allocation12 + $0xe0] sm:$0xff]
    %v983 = vld [vmem:[#allocation12 + $0xe8] sm:$0xff]
    %v984 = vld [vmem:[#allocation12 + $0xf0] sm:$0xff]
    %v985 = vld [vmem:[#allocation12 + $0xf8] sm:$0xff]
    %v986 = vld [vmem:[#allocation12 + $0x100] sm:$0xff]
    %v987 = vld [vmem:[#allocation12 + $0x108] sm:$0xff]
    %v988 = vld [vmem:[#allocation12 + $0x110] sm:$0xff]
    %v989 = vld [vmem:[#allocation12 + $0x118] sm:$0xff]
    %v990 = vld [vmem:[#allocation12 + $0x120] sm:$0xff]
    %v991 = vld [vmem:[#allocation12 + $0x128] sm:$0xff]
    %v992 = vld [vmem:[#allocation12 + $0x130] sm:$0xff]
    %v993 = vld [vmem:[#allocation12 + $0x138] sm:$0xff]
    %v994 = vld [vmem:[#allocation12 + $0x140] sm:$0xff]
    %v995 = vld [vmem:[#allocation12 + $0x148] sm:$0xff]
    %v996 = vld [vmem:[#allocation12 + $0x150] sm:$0xff]
    %v997 = vld [vmem:[#allocation12 + $0x158] sm:$0xff]
    %v998 = vld [vmem:[#allocation12 + $0x160] sm:$0xff]
    %v999 = vld [vmem:[#allocation12 + $0x168] sm:$0xff]
    %v1000 = vld [vmem:[#allocation12 + $0x170] sm:$0xff]
    %v1001 = vld [vmem:[#allocation12 + $0x178] sm:$0xff]
    %v1002 = vld [vmem:[#allocation12 + $0x180] sm:$0xff]
    %v1003 = vld [vmem:[#allocation12 + $0x188] sm:$0xff]
    %v1004 = vld [vmem:[#allocation12 + $0x190] sm:$0xff]
    %v1005 = vld [vmem:[#allocation12 + $0x198] sm:$0xff]
    %v1006 = vld [vmem:[#allocation12 + $0x1a0] sm:$0xff]
    %v1007 = vld [vmem:[#allocation12 + $0x1a8] sm:$0xff]
    %v1008 = vld [vmem:[#allocation12 + $0x1b0] sm:$0xff]
    %v1009 = vld [vmem:[#allocation12 + $0x1b8] sm:$0xff]
    %v1010 = vld [vmem:[#allocation12 + $0x1c0] sm:$0xff]
    %v1011 = vld [vmem:[#allocation12 + $0x1c8] sm:$0xff]
    %v1012 = vld [vmem:[#allocation12 + $0x1d0] sm:$0xff]
    %v1013 = vld [vmem:[#allocation12 + $0x1d8] sm:$0xff]
    %v1014 = vld [vmem:[#allocation12 + $0x1e0] sm:$0xff]
    %v1015 = vld [vmem:[#allocation12 + $0x1e8] sm:$0xff]
    %v1016 = vld [vmem:[#allocation12 + $0x1f0] sm:$0xff]
    %v1017 = vld [vmem:[#allocation12 + $0x1f8] sm:$0xff]
    %v1018 = vld [vmem:[#allocation12 + $0x200] sm:$0xff]
    %v1019 = vld [vmem:[#allocation12 + $0x208] sm:$0xff]
    %v1020 = vld [vmem:[#allocation12 + $0x210] sm:$0xff]
    %v1021 = vld [vmem:[#allocation12 + $0x218] sm:$0xff]
    %v1022 = vld [vmem:[#allocation12 + $0x220] sm:$0xff]
    %v1023 = vld [vmem:[#allocation12 + $0x228] sm:$0xff]
    %v1024 = vld [vmem:[#allocation12 + $0x230] sm:$0xff]
    %v1025 = vld [vmem:[#allocation12 + $0x238] sm:$0xff]
    %v1026 = vld [vmem:[#allocation12 + $0x240] sm:$0xff]
    %v1027 = vld [vmem:[#allocation12 + $0x248] sm:$0xff]
    %v1028 = vld [vmem:[#allocation12 + $0x250] sm:$0xff]
    %v1029 = vld [vmem:[#allocation12 + $0x258] sm:$0xff]
    %v1030 = vld [vmem:[#allocation12 + $0x260] sm:$0xff]
    %v1031 = vld [vmem:[#allocation12 + $0x268] sm:$0xff]
    %v1032 = vld [vmem:[#allocation12 + $0x270] sm:$0xff]
    %v1033 = vld [vmem:[#allocation12 + $0x278] sm:$0xff]
    %v1034 = vld [vmem:[#allocation12 + $0x280] sm:$0xff]
    %v1035 = vld [vmem:[#allocation12 + $0x288] sm:$0xff]
    %v1036 = vld [vmem:[#allocation12 + $0x290] sm:$0xff]
    %v1037 = vld [vmem:[#allocation12 + $0x298] sm:$0xff]
    %v1038 = vld [vmem:[#allocation12 + $0x2a0] sm:$0xff]
    %v1039 = vld [vmem:[#allocation12 + $0x2a8] sm:$0xff]
    %v1040 = vld [vmem:[#allocation12 + $0x2b0] sm:$0xff]
    %v1041 = vld [vmem:[#allocation12 + $0x2b8] sm:$0xff]
    %v1042 = vld [vmem:[#allocation12 + $0x2c0] sm:$0xff]
    %v1043 = vld [vmem:[#allocation12 + $0x2c8] sm:$0xff]
    %v1044 = vld [vmem:[#allocation12 + $0x2d0] sm:$0xff]
    %v1045 = vld [vmem:[#allocation12 + $0x2d8] sm:$0xff]
    %v1046 = vld [vmem:[#allocation12 + $0x2e0] sm:$0xff]
    %v1047 = vld [vmem:[#allocation12 + $0x2e8] sm:$0xff]
    %v1048 = vld [vmem:[#allocation12 + $0x2f0] sm:$0xff]
    %v1049 = vld [vmem:[#allocation12 + $0x2f8] sm:$0xff]
    %v1050 = vld [vmem:[#allocation12 + $0x300] sm:$0xff]
    %v1051 = vld [vmem:[#allocation12 + $0x308] sm:$0xff]
    %v1052 = vld [vmem:[#allocation12 + $0x310] sm:$0xff]
    %v1053 = vld [vmem:[#allocation12 + $0x318] sm:$0xff]
    %v1054 = vld [vmem:[#allocation12 + $0x320] sm:$0xff]
    %v1055 = vld [vmem:[#allocation12 + $0x328] sm:$0xff]
    %v1056 = vld [vmem:[#allocation12 + $0x330] sm:$0xff]
    %v1057 = vld [vmem:[#allocation12 + $0x338] sm:$0xff]
    %v1058 = vld [vmem:[#allocation12 + $0x340] sm:$0xff]
    %v1059 = vld [vmem:[#allocation12 + $0x348] sm:$0xff]
    %v1060 = vld [vmem:[#allocation12 + $0x350] sm:$0xff]
    %v1061 = vld [vmem:[#allocation12 + $0x358] sm:$0xff]
    %v1062 = vld [vmem:[#allocation12 + $0x360] sm:$0xff]
    %v1063 = vld [vmem:[#allocation12 + $0x368] sm:$0xff]
    %v1064 = vld [vmem:[#allocation12 + $0x370] sm:$0xff]
    %v1065 = vld [vmem:[#allocation12 + $0x378] sm:$0xff]
    %v1066 = vld [vmem:[#allocation12 + $0x380] sm:$0xff]
    %v1067 = vld [vmem:[#allocation12 + $0x388] sm:$0xff]
    %v1068 = vld [vmem:[#allocation12 + $0x390] sm:$0xff]
    %v1069 = vld [vmem:[#allocation12 + $0x398] sm:$0xff]
    %v1070 = vld [vmem:[#allocation12 + $0x3a0] sm:$0xff]
    %v1071 = vld [vmem:[#allocation12 + $0x3a8] sm:$0xff]
    %v1072 = vld [vmem:[#allocation12 + $0x3b0] sm:$0xff]
    %v1073 = vld [vmem:[#allocation12 + $0x3b8] sm:$0xff]
    %v1074 = vld [vmem:[#allocation12 + $0x3c0] sm:$0xff]
    %v1075 = vld [vmem:[#allocation12 + $0x3c8] sm:$0xff]
    %v1076 = vld [vmem:[#allocation12 + $0x3d0] sm:$0xff]
    %v1077 = vld [vmem:[#allocation12 + $0x3d8] sm:$0xff]
    %v1078 = vld [vmem:[#allocation12 + $0x3e0] sm:$0xff]
    %v1079 = vld [vmem:[#allocation12 + $0x3e8] sm:$0xff]
    %v1080 = vld [vmem:[#allocation12 + $0x3f0] sm:$0xff]
    %v1081 = vld [vmem:[#allocation12 + $0x3f8] sm:$0xff]
    %v1082 = vld [vmem:[#allocation12 + $0x400] sm:$0xff]
    %v1083 = vld [vmem:[#allocation12 + $0x408] sm:$0xff]
    %v1084 = vld [vmem:[#allocation12 + $0x410] sm:$0xff]
    %v1085 = vld [vmem:[#allocation12 + $0x418] sm:$0xff]
    %v1086 = vld [vmem:[#allocation12 + $0x420] sm:$0xff]
    %v1087 = vld [vmem:[#allocation12 + $0x428] sm:$0xff]
    %v1088 = vld [vmem:[#allocation12 + $0x430] sm:$0xff]
    %v1089 = vld [vmem:[#allocation12 + $0x438] sm:$0xff]
    %v1090 = vld [vmem:[#allocation12 + $0x440] sm:$0xff]
    %v1091 = vld [vmem:[#allocation12 + $0x448] sm:$0xff]
    %v1092 = vld [vmem:[#allocation12 + $0x450] sm:$0xff]
    %v1093 = vld [vmem:[#allocation12 + $0x458] sm:$0xff]
    %v1094 = vld [vmem:[#allocation12 + $0x460] sm:$0xff]
    %v1095 = vld [vmem:[#allocation12 + $0x468] sm:$0xff]
    %v1096 = vld [vmem:[#allocation12 + $0x470] sm:$0xff]
    %v1097 = vld [vmem:[#allocation12 + $0x478] sm:$0xff]
    %v1098 = vld [vmem:[#allocation12 + $0x480] sm:$0xff]
    %v1099 = vld [vmem:[#allocation12 + $0x488] sm:$0xff]
    %v1100 = vld [vmem:[#allocation12 + $0x490] sm:$0xff]
    %v1101 = vld [vmem:[#allocation12 + $0x498] sm:$0xff]
    %v1102 = vld [vmem:[#allocation12 + $0x4a0] sm:$0xff]
    %v1103 = vld [vmem:[#allocation12 + $0x4a8] sm:$0xff]
    %v1104 = vld [vmem:[#allocation12 + $0x4b0] sm:$0xff]
    %v1105 = vld [vmem:[#allocation12 + $0x4b8] sm:$0xff]
    %v1106 = vld [vmem:[#allocation12 + $0x4c0] sm:$0xff]
    %v1107 = vld [vmem:[#allocation12 + $0x4c8] sm:$0xff]
    %v1108 = vld [vmem:[#allocation12 + $0x4d0] sm:$0xff]
    %v1109 = vld [vmem:[#allocation12 + $0x4d8] sm:$0xff]
    %v1110 = vld [vmem:[#allocation12 + $0x4e0] sm:$0xff]
    %v1111 = vld [vmem:[#allocation12 + $0x4e8] sm:$0xff]
    %v1112 = vld [vmem:[#allocation12 + $0x4f0] sm:$0xff]
    %v1113 = vld [vmem:[#allocation12 + $0x4f8] sm:$0xff]
    %v1114 = vld [vmem:[#allocation12 + $0x500] sm:$0xff]
    %v1115 = vld [vmem:[#allocation12 + $0x508] sm:$0xff]
    %v1116 = vld [vmem:[#allocation12 + $0x510] sm:$0xff]
    %v1117 = vld [vmem:[#allocation12 + $0x518] sm:$0xff]
    %v1118 = vld [vmem:[#allocation12 + $0x520] sm:$0xff]
    %v1119 = vld [vmem:[#allocation12 + $0x528] sm:$0xff]
    %v1120 = vld [vmem:[#allocation12 + $0x530] sm:$0xff]
    %v1121 = vld [vmem:[#allocation12 + $0x538] sm:$0xff]
    %v1122 = vld [vmem:[#allocation12 + $0x540] sm:$0xff]
    %v1123 = vld [vmem:[#allocation12 + $0x548] sm:$0xff]
    %v1124 = vld [vmem:[#allocation12 + $0x550] sm:$0xff]
    %v1125 = vld [vmem:[#allocation12 + $0x558] sm:$0xff]
    %v1126 = vld [vmem:[#allocation12 + $0x560] sm:$0xff]
    %v1127 = vld [vmem:[#allocation12 + $0x568] sm:$0xff]
    %v1128 = vld [vmem:[#allocation12 + $0x570] sm:$0xff]
    %v1129 = vld [vmem:[#allocation12 + $0x578] sm:$0xff]
    %v1130 = vld [vmem:[#allocation12 + $0x580] sm:$0xff]
    %v1131 = vld [vmem:[#allocation12 + $0x588] sm:$0xff]
    %v1132 = vld [vmem:[#allocation12 + $0x590] sm:$0xff]
    %v1133 = vld [vmem:[#allocation12 + $0x598] sm:$0xff]
    %v1134 = vld [vmem:[#allocation12 + $0x5a0] sm:$0xff]
    %v1135 = vld [vmem:[#allocation12 + $0x5a8] sm:$0xff]
    %v1136 = vld [vmem:[#allocation12 + $0x5b0] sm:$0xff]
    %v1137 = vld [vmem:[#allocation12 + $0x5b8] sm:$0xff]
    %v1138 = vld [vmem:[#allocation12 + $0x5c0] sm:$0xff]
    %v1139 = vld [vmem:[#allocation12 + $0x5c8] sm:$0xff]
    %v1140 = vld [vmem:[#allocation12 + $0x5d0] sm:$0xff]
    %v1141 = vld [vmem:[#allocation12 + $0x5d8] sm:$0xff]
    %v1142 = vld [vmem:[#allocation12 + $0x5e0] sm:$0xff]
    %v1143 = vld [vmem:[#allocation12 + $0x5e8] sm:$0xff]
    %v1144 = vld [vmem:[#allocation12 + $0x5f0] sm:$0xff]
    %v1145 = vld [vmem:[#allocation12 + $0x5f8] sm:$0xff]
    %v1146 = vld [vmem:[#allocation12 + $0x600] sm:$0xff]
    %v1147 = vld [vmem:[#allocation12 + $0x608] sm:$0xff]
    %v1148 = vld [vmem:[#allocation12 + $0x610] sm:$0xff]
    %v1149 = vld [vmem:[#allocation12 + $0x618] sm:$0xff]
    %v1150 = vld [vmem:[#allocation12 + $0x620] sm:$0xff]
    %v1151 = vld [vmem:[#allocation12 + $0x628] sm:$0xff]
    %v1152 = vld [vmem:[#allocation12 + $0x630] sm:$0xff]
    %v1153 = vld [vmem:[#allocation12 + $0x638] sm:$0xff]
    %v1154 = vld [vmem:[#allocation12 + $0x640] sm:$0xff]
    %v1155 = vld [vmem:[#allocation12 + $0x648] sm:$0xff]
    %v1156 = vld [vmem:[#allocation12 + $0x650] sm:$0xff]
    %v1157 = vld [vmem:[#allocation12 + $0x658] sm:$0xff]
    %v1158 = vld [vmem:[#allocation12 + $0x660] sm:$0xff]
    %v1159 = vld [vmem:[#allocation12 + $0x668] sm:$0xff]
    %v1160 = vld [vmem:[#allocation12 + $0x670] sm:$0xff]
    %v1161 = vld [vmem:[#allocation12 + $0x678] sm:$0xff]
    %v1162 = vld [vmem:[#allocation12 + $0x680] sm:$0xff]
    %v1163 = vld [vmem:[#allocation12 + $0x688] sm:$0xff]
    %v1164 = vld [vmem:[#allocation12 + $0x690] sm:$0xff]
    %v1165 = vld [vmem:[#allocation12 + $0x698] sm:$0xff]
    %v1166 = vld [vmem:[#allocation12 + $0x6a0] sm:$0xff]
    %v1167 = vld [vmem:[#allocation12 + $0x6a8] sm:$0xff]
    %v1168 = vld [vmem:[#allocation12 + $0x6b0] sm:$0xff]
    %v1169 = vld [vmem:[#allocation12 + $0x6b8] sm:$0xff]
    %v1170 = vld [vmem:[#allocation12 + $0x6c0] sm:$0xff]
    %v1171 = vld [vmem:[#allocation12 + $0x6c8] sm:$0xff]
    %v1172 = vld [vmem:[#allocation12 + $0x6d0] sm:$0xff]
    %v1173 = vld [vmem:[#allocation12 + $0x6d8] sm:$0xff]
    %v1174 = vld [vmem:[#allocation12 + $0x6e0] sm:$0xff]
    %v1175 = vld [vmem:[#allocation12 + $0x6e8] sm:$0xff]
    %v1176 = vld [vmem:[#allocation12 + $0x6f0] sm:$0xff]
    %v1177 = vld [vmem:[#allocation12 + $0x6f8] sm:$0xff]
    %v1178 = vld [vmem:[#allocation12 + $0x700] sm:$0xff]
    %v1179 = vld [vmem:[#allocation12 + $0x708] sm:$0xff]
    %v1180 = vld [vmem:[#allocation12 + $0x710] sm:$0xff]
    %v1181 = vld [vmem:[#allocation12 + $0x718] sm:$0xff]
    %v1182 = vld [vmem:[#allocation12 + $0x720] sm:$0xff]
    %v1183 = vld [vmem:[#allocation12 + $0x728] sm:$0xff]
    %v1184 = vld [vmem:[#allocation12 + $0x730] sm:$0xff]
    %v1185 = vld [vmem:[#allocation12 + $0x738] sm:$0xff]
    %v1186 = vld [vmem:[#allocation12 + $0x740] sm:$0xff]
    %v1187 = vld [vmem:[#allocation12 + $0x748] sm:$0xff]
    %v1188 = vld [vmem:[#allocation12 + $0x750] sm:$0xff]
    %v1189 = vld [vmem:[#allocation12 + $0x758] sm:$0xff]
    %v1190 = vld [vmem:[#allocation12 + $0x760] sm:$0xff]
    %v1191 = vld [vmem:[#allocation12 + $0x768] sm:$0xff]
    %v1192 = vld [vmem:[#allocation12 + $0x770] sm:$0xff]
    %v1193 = vld [vmem:[#allocation12 + $0x778] sm:$0xff]
    %v1194 = vld [vmem:[#allocation12 + $0x780] sm:$0xff]
    %v1195 = vld [vmem:[#allocation12 + $0x788] sm:$0xff]
    %v1196 = vld [vmem:[#allocation12 + $0x790] sm:$0xff]
    %v1197 = vld [vmem:[#allocation12 + $0x798] sm:$0xff]
    %v1198 = vld [vmem:[#allocation12 + $0x7a0] sm:$0xff]
    %v1199 = vld [vmem:[#allocation12 + $0x7a8] sm:$0xff]
    %v1200 = vld [vmem:[#allocation12 + $0x7b0] sm:$0xff]
    %v1201 = vld [vmem:[#allocation12 + $0x7b8] sm:$0xff]
    %v1202 = vld [vmem:[#allocation12 + $0x7c0] sm:$0xff]
    %v1203 = vld [vmem:[#allocation12 + $0x7c8] sm:$0xff]
    %v1204 = vld [vmem:[#allocation12 + $0x7d0] sm:$0xff]
    %v1205 = vld [vmem:[#allocation12 + $0x7d8] sm:$0xff]
    %v1206 = vld [vmem:[#allocation12 + $0x7e0] sm:$0xff]
    %v1207 = vld [vmem:[#allocation12 + $0x7e8] sm:$0xff]
    %v1208 = vld [vmem:[#allocation12 + $0x7f0] sm:$0xff]
    %v1209 = vld [vmem:[#allocation12 + $0x7f8] sm:$0xff]
    %v1210 = vld [vmem:[#allocation12 + $0x800] sm:$0xff]
    %v1211 = vld [vmem:[#allocation12 + $0x808] sm:$0xff]
    %v1212 = vld [vmem:[#allocation12 + $0x810] sm:$0xff]
    %v1213 = vld [vmem:[#allocation12 + $0x818] sm:$0xff]
    %v1214 = vld [vmem:[#allocation12 + $0x820] sm:$0xff]
    %v1215 = vld [vmem:[#allocation12 + $0x828] sm:$0xff]
    %v1216 = vld [vmem:[#allocation12 + $0x830] sm:$0xff]
    %v1217 = vld [vmem:[#allocation12 + $0x838] sm:$0xff]
    %v1218 = vld [vmem:[#allocation12 + $0x840] sm:$0xff]
    %v1219 = vld [vmem:[#allocation12 + $0x848] sm:$0xff]
    %v1220 = vld [vmem:[#allocation12 + $0x850] sm:$0xff]
    %v1221 = vld [vmem:[#allocation12 + $0x858] sm:$0xff]
    %v1222 = vld [vmem:[#allocation12 + $0x860] sm:$0xff]
    %v1223 = vld [vmem:[#allocation12 + $0x868] sm:$0xff]
    %v1224 = vld [vmem:[#allocation12 + $0x870] sm:$0xff]
    %v1225 = vld [vmem:[#allocation12 + $0x878] sm:$0xff]
    %v1226 = vld [vmem:[#allocation12 + $0x880] sm:$0xff]
    %v1227 = vld [vmem:[#allocation12 + $0x888] sm:$0xff]
    %v1228 = vld [vmem:[#allocation12 + $0x890] sm:$0xff]
    %v1229 = vld [vmem:[#allocation12 + $0x898] sm:$0xff]
    %v1230 = vld [vmem:[#allocation12 + $0x8a0] sm:$0xff]
    %v1231 = vld [vmem:[#allocation12 + $0x8a8] sm:$0xff]
    %v1232 = vld [vmem:[#allocation12 + $0x8b0] sm:$0xff]
    %v1233 = vld [vmem:[#allocation12 + $0x8b8] sm:$0xff]
    %v1234 = vld [vmem:[#allocation12 + $0x8c0] sm:$0xff]
    %v1235 = vld [vmem:[#allocation12 + $0x8c8] sm:$0xff]
    %v1236 = vld [vmem:[#allocation12 + $0x8d0] sm:$0xff]
    %v1237 = vld [vmem:[#allocation12 + $0x8d8] sm:$0xff]
    %v1238 = vld [vmem:[#allocation12 + $0x8e0] sm:$0xff]
    %v1239 = vld [vmem:[#allocation12 + $0x8e8] sm:$0xff]
    %v1240 = vld [vmem:[#allocation12 + $0x8f0] sm:$0xff]
    %v1241 = vld [vmem:[#allocation12 + $0x8f8] sm:$0xff]
    %v1242 = vld [vmem:[#allocation12 + $0x900] sm:$0xff]
    %v1243 = vld [vmem:[#allocation12 + $0x908] sm:$0xff]
    %v1244 = vld [vmem:[#allocation12 + $0x910] sm:$0xff]
    %v1245 = vld [vmem:[#allocation12 + $0x918] sm:$0xff]
    %v1246 = vld [vmem:[#allocation12 + $0x920] sm:$0xff]
    %v1247 = vld [vmem:[#allocation12 + $0x928] sm:$0xff]
    %v1248 = vld [vmem:[#allocation12 + $0x930] sm:$0xff]
    %v1249 = vld [vmem:[#allocation12 + $0x938] sm:$0xff]
    %v1250 = vld [vmem:[#allocation12 + $0x940] sm:$0xff]
    %v1251 = vld [vmem:[#allocation12 + $0x948] sm:$0xff]
    %v1252 = vld [vmem:[#allocation12 + $0x950] sm:$0xff]
    %v1253 = vld [vmem:[#allocation12 + $0x958] sm:$0xff]
    %v1254 = vld [vmem:[#allocation12 + $0x960] sm:$0xff]
    %v1255 = vld [vmem:[#allocation12 + $0x968] sm:$0xff]
    %v1256 = vld [vmem:[#allocation12 + $0x970] sm:$0xff]
    %v1257 = vld [vmem:[#allocation12 + $0x978] sm:$0xff]
    %v1258 = vld [vmem:[#allocation12 + $0x980] sm:$0xff]
    %v1259 = vld [vmem:[#allocation12 + $0x988] sm:$0xff]
    %v1260 = vld [vmem:[#allocation12 + $0x990] sm:$0xff]
    %v1261 = vld [vmem:[#allocation12 + $0x998] sm:$0xff]
    %v1262 = vld [vmem:[#allocation12 + $0x9a0] sm:$0xff]
    %v1263 = vld [vmem:[#allocation12 + $0x9a8] sm:$0xff]
    %v1264 = vld [vmem:[#allocation12 + $0x9b0] sm:$0xff]
    %v1265 = vld [vmem:[#allocation12 + $0x9b8] sm:$0xff]
    %v1266 = vld [vmem:[#allocation12 + $0x9c0] sm:$0xff]
    %v1267 = vld [vmem:[#allocation12 + $0x9c8] sm:$0xff]
    %v1268 = vld [vmem:[#allocation12 + $0x9d0] sm:$0xff]
    %v1269 = vld [vmem:[#allocation12 + $0x9d8] sm:$0xff]
    %v1270 = vld [vmem:[#allocation12 + $0x9e0] sm:$0xff]
    %v1271 = vld [vmem:[#allocation12 + $0x9e8] sm:$0xff]
    %v1272 = vld [vmem:[#allocation12 + $0x9f0] sm:$0xff]
    %v1273 = vld [vmem:[#allocation12 + $0x9f8] sm:$0xff]
    %v1274 = vld [vmem:[#allocation12 + $0xa00] sm:$0xff]
    %v1275 = vld [vmem:[#allocation12 + $0xa08] sm:$0xff]
    %v1276 = vld [vmem:[#allocation12 + $0xa10] sm:$0xff]
    %v1277 = vld [vmem:[#allocation12 + $0xa18] sm:$0xff]
    %v1278 = vld [vmem:[#allocation12 + $0xa20] sm:$0xff]
    %v1279 = vld [vmem:[#allocation12 + $0xa28] sm:$0xff]
    %v1280 = vld [vmem:[#allocation12 + $0xa30] sm:$0xff]
    %v1281 = vld [vmem:[#allocation12 + $0xa38] sm:$0xff]
    %v1282 = vld [vmem:[#allocation12 + $0xa40] sm:$0xff]
    %v1283 = vld [vmem:[#allocation12 + $0xa48] sm:$0xff]
    %v1284 = vld [vmem:[#allocation12 + $0xa50] sm:$0xff]
    %v1285 = vld [vmem:[#allocation12 + $0xa58] sm:$0xff]
    %v1286 = vld [vmem:[#allocation12 + $0xa60] sm:$0xff]
    %v1287 = vld [vmem:[#allocation12 + $0xa68] sm:$0xff]
    %v1288 = vld [vmem:[#allocation12 + $0xa70] sm:$0xff]
    %v1289 = vld [vmem:[#allocation12 + $0xa78] sm:$0xff]
    %v1290 = vld [vmem:[#allocation12 + $0xa80] sm:$0xff]
    %v1291 = vld [vmem:[#allocation12 + $0xa88] sm:$0xff]
    %v1292 = vld [vmem:[#allocation12 + $0xa90] sm:$0xff]
    %v1293 = vld [vmem:[#allocation12 + $0xa98] sm:$0xff]
    %v1294 = vld [vmem:[#allocation12 + $0xaa0] sm:$0xff]
    %v1295 = vld [vmem:[#allocation12 + $0xaa8] sm:$0xff]
    %v1296 = vld [vmem:[#allocation12 + $0xab0] sm:$0xff]
    %v1297 = vld [vmem:[#allocation12 + $0xab8] sm:$0xff]
    %v1298 = vld [vmem:[#allocation12 + $0xac0] sm:$0xff]
    %v1299 = vld [vmem:[#allocation12 + $0xac8] sm:$0xff]
    %v1300 = vld [vmem:[#allocation12 + $0xad0] sm:$0xff]
    %v1301 = vld [vmem:[#allocation12 + $0xad8] sm:$0xff]
    %v1302 = vld [vmem:[#allocation12 + $0xae0] sm:$0xff]
    %v1303 = vld [vmem:[#allocation12 + $0xae8] sm:$0xff]
    %v1304 = vld [vmem:[#allocation12 + $0xaf0] sm:$0xff]
    %v1305 = vld [vmem:[#allocation12 + $0xaf8] sm:$0xff]
    %v1306 = vld [vmem:[#allocation12 + $0xb00] sm:$0xff]
    %v1307 = vld [vmem:[#allocation12 + $0xb08] sm:$0xff]
    %v1308 = vld [vmem:[#allocation12 + $0xb10] sm:$0xff]
    %v1309 = vld [vmem:[#allocation12 + $0xb18] sm:$0xff]
    %v1310 = vld [vmem:[#allocation12 + $0xb20] sm:$0xff]
    %v1311 = vld [vmem:[#allocation12 + $0xb28] sm:$0xff]
    %v1312 = vld [vmem:[#allocation12 + $0xb30] sm:$0xff]
    %v1313 = vld [vmem:[#allocation12 + $0xb38] sm:$0xff]
    %v1314 = vld [vmem:[#allocation12 + $0xb40] sm:$0xff]
    %v1315 = vld [vmem:[#allocation12 + $0xb48] sm:$0xff]
    %v1316 = vld [vmem:[#allocation12 + $0xb50] sm:$0xff]
    %v1317 = vld [vmem:[#allocation12 + $0xb58] sm:$0xff]
    %v1318 = vld [vmem:[#allocation12 + $0xb60] sm:$0xff]
    %v1319 = vld [vmem:[#allocation12 + $0xb68] sm:$0xff]
    %v1320 = vld [vmem:[#allocation12 + $0xb70] sm:$0xff]
    %v1321 = vld [vmem:[#allocation12 + $0xb78] sm:$0xff]
    %v1322 = vld [vmem:[#allocation12 + $0xb80] sm:$0xff]
    %v1323 = vld [vmem:[#allocation12 + $0xb88] sm:$0xff]
    %v1324 = vld [vmem:[#allocation12 + $0xb90] sm:$0xff]
    %v1325 = vld [vmem:[#allocation12 + $0xb98] sm:$0xff]
    %v1326 = vld [vmem:[#allocation12 + $0xba0] sm:$0xff]
    %v1327 = vld [vmem:[#allocation12 + $0xba8] sm:$0xff]
    %v1328 = vld [vmem:[#allocation12 + $0xbb0] sm:$0xff]
    %v1329 = vld [vmem:[#allocation12 + $0xbb8] sm:$0xff]
    %v1330 = vld [vmem:[#allocation12 + $0xbc0] sm:$0xff]
    %v1331 = vld [vmem:[#allocation12 + $0xbc8] sm:$0xff]
    %v1332 = vld [vmem:[#allocation12 + $0xbd0] sm:$0xff]
    %v1333 = vld [vmem:[#allocation12 + $0xbd8] sm:$0xff]
    %v1334 = vld [vmem:[#allocation12 + $0xbe0] sm:$0xff]
    %v1335 = vld [vmem:[#allocation12 + $0xbe8] sm:$0xff]
    %v1336 = vld [vmem:[#allocation12 + $0xbf0] sm:$0xff]
    %v1337 = vld [vmem:[#allocation12 + $0xbf8] sm:$0xff]
    %v1338 = vld [vmem:[#allocation12 + $0xc00] sm:$0xff]
    %v1339 = vld [vmem:[#allocation12 + $0xc08] sm:$0xff]
    %v1340 = vld [vmem:[#allocation12 + $0xc10] sm:$0xff]
    %v1341 = vld [vmem:[#allocation12 + $0xc18] sm:$0xff]
    %v1342 = vld [vmem:[#allocation12 + $0xc20] sm:$0xff]
    %v1343 = vld [vmem:[#allocation12 + $0xc28] sm:$0xff]
    %v1344 = vld [vmem:[#allocation12 + $0xc30] sm:$0xff]
    %v1345 = vld [vmem:[#allocation12 + $0xc38] sm:$0xff]
    %v1346 = vld [vmem:[#allocation12 + $0xc40] sm:$0xff]
    %v1347 = vld [vmem:[#allocation12 + $0xc48] sm:$0xff]
    %v1348 = vld [vmem:[#allocation12 + $0xc50] sm:$0xff]
    %v1349 = vld [vmem:[#allocation12 + $0xc58] sm:$0xff]
    %v1350 = vld [vmem:[#allocation12 + $0xc60] sm:$0xff]
    %v1351 = vld [vmem:[#allocation12 + $0xc68] sm:$0xff]
    %v1352 = vld [vmem:[#allocation12 + $0xc70] sm:$0xff]
    %v1353 = vld [vmem:[#allocation12 + $0xc78] sm:$0xff]
    %v1354 = vld [vmem:[#allocation12 + $0xc80] sm:$0xff]
    %v1355 = vld [vmem:[#allocation12 + $0xc88] sm:$0xff]
    %v1356 = vld [vmem:[#allocation12 + $0xc90] sm:$0xff]
    %v1357 = vld [vmem:[#allocation12 + $0xc98] sm:$0xff]
    %v1358 = vld [vmem:[#allocation12 + $0xca0] sm:$0xff]
    %v1359 = vld [vmem:[#allocation12 + $0xca8] sm:$0xff]
    %v1360 = vld [vmem:[#allocation12 + $0xcb0] sm:$0xff]
    %v1361 = vld [vmem:[#allocation12 + $0xcb8] sm:$0xff]
    %v1362 = vld [vmem:[#allocation12 + $0xcc0] sm:$0xff]
    %v1363 = vld [vmem:[#allocation12 + $0xcc8] sm:$0xff]
    %v1364 = vld [vmem:[#allocation12 + $0xcd0] sm:$0xff]
    %v1365 = vld [vmem:[#allocation12 + $0xcd8] sm:$0xff]
    %v1366 = vld [vmem:[#allocation12 + $0xce0] sm:$0xff]
    %v1367 = vld [vmem:[#allocation12 + $0xce8] sm:$0xff]
    %v1368 = vld [vmem:[#allocation12 + $0xcf0] sm:$0xff]
    %v1369 = vld [vmem:[#allocation12 + $0xcf8] sm:$0xff]
    %v1370 = vld [vmem:[#allocation12 + $0xd00] sm:$0xff]
    %v1371 = vld [vmem:[#allocation12 + $0xd08] sm:$0xff]
    %v1372 = vld [vmem:[#allocation12 + $0xd10] sm:$0xff]
    %v1373 = vld [vmem:[#allocation12 + $0xd18] sm:$0xff]
    %v1374 = vld [vmem:[#allocation12 + $0xd20] sm:$0xff]
    %v1375 = vld [vmem:[#allocation12 + $0xd28] sm:$0xff]
    %v1376 = vld [vmem:[#allocation12 + $0xd30] sm:$0xff]
    %v1377 = vld [vmem:[#allocation12 + $0xd38] sm:$0xff]
    %v1378 = vld [vmem:[#allocation12 + $0xd40] sm:$0xff]
    %v1379 = vld [vmem:[#allocation12 + $0xd48] sm:$0xff]
    %v1380 = vld [vmem:[#allocation12 + $0xd50] sm:$0xff]
    %v1381 = vld [vmem:[#allocation12 + $0xd58] sm:$0xff]
    %v1382 = vld [vmem:[#allocation12 + $0xd60] sm:$0xff]
    %v1383 = vld [vmem:[#allocation12 + $0xd68] sm:$0xff]
    %v1384 = vld [vmem:[#allocation12 + $0xd70] sm:$0xff]
    %v1385 = vld [vmem:[#allocation12 + $0xd78] sm:$0xff]
    %v1386 = vld [vmem:[#allocation12 + $0xd80] sm:$0xff]
    %v1387 = vld [vmem:[#allocation12 + $0xd88] sm:$0xff]
    %v1388 = vld [vmem:[#allocation12 + $0xd90] sm:$0xff]
    %v1389 = vld [vmem:[#allocation12 + $0xd98] sm:$0xff]
    %v1390 = vld [vmem:[#allocation12 + $0xda0] sm:$0xff]
    %v1391 = vld [vmem:[#allocation12 + $0xda8] sm:$0xff]
    %v1392 = vld [vmem:[#allocation12 + $0xdb0] sm:$0xff]
    %v1393 = vld [vmem:[#allocation12 + $0xdb8] sm:$0xff]
    %v1394 = vld [vmem:[#allocation12 + $0xdc0] sm:$0xff]
    %v1395 = vld [vmem:[#allocation12 + $0xdc8] sm:$0xff]
    %v1396 = vld [vmem:[#allocation12 + $0xdd0] sm:$0xff]
    %v1397 = vld [vmem:[#allocation12 + $0xdd8] sm:$0xff]
    %v1398 = vld [vmem:[#allocation12 + $0xde0] sm:$0xff]
    %v1399 = vld [vmem:[#allocation12 + $0xde8] sm:$0xff]
    %v1400 = vld [vmem:[#allocation12 + $0xdf0] sm:$0xff]
    %v1401 = vld [vmem:[#allocation12 + $0xdf8] sm:$0xff]
    %v1402 = vld [vmem:[#allocation12 + $0xe00] sm:$0xff]
    %v1403 = vld [vmem:[#allocation12 + $0xe08] sm:$0xff]
    %v1404 = vld [vmem:[#allocation12 + $0xe10] sm:$0xff]
    %v1405 = vld [vmem:[#allocation12 + $0xe18] sm:$0xff]
    %v1406 = vld [vmem:[#allocation12 + $0xe20] sm:$0xff]
    %v1407 = vld [vmem:[#allocation12 + $0xe28] sm:$0xff]
    %v1408 = vld [vmem:[#allocation12 + $0xe30] sm:$0xff]
    %v1409 = vld [vmem:[#allocation12 + $0xe38] sm:$0xff]
    %v1410 = vld [vmem:[#allocation12 + $0xe40] sm:$0xff]
    %v1411 = vld [vmem:[#allocation12 + $0xe48] sm:$0xff]
    %v1412 = vld [vmem:[#allocation12 + $0xe50] sm:$0xff]
    %v1413 = vld [vmem:[#allocation12 + $0xe58] sm:$0xff]
    %v1414 = vld [vmem:[#allocation12 + $0xe60] sm:$0xff]
    %v1415 = vld [vmem:[#allocation12 + $0xe68] sm:$0xff]
    %v1416 = vld [vmem:[#allocation12 + $0xe70] sm:$0xff]
    %v1417 = vld [vmem:[#allocation12 + $0xe78] sm:$0xff]
    %v1418 = vld [vmem:[#allocation12 + $0xe80] sm:$0xff]
    %v1419 = vld [vmem:[#allocation12 + $0xe88] sm:$0xff]
    %v1420 = vld [vmem:[#allocation12 + $0xe90] sm:$0xff]
    %v1421 = vld [vmem:[#allocation12 + $0xe98] sm:$0xff]
    %v1422 = vld [vmem:[#allocation12 + $0xea0] sm:$0xff]
    %v1423 = vld [vmem:[#allocation12 + $0xea8] sm:$0xff]
    %v1424 = vld [vmem:[#allocation12 + $0xeb0] sm:$0xff]
    %v1425 = vld [vmem:[#allocation12 + $0xeb8] sm:$0xff]
    %v1426 = vld [vmem:[#allocation12 + $0xec0] sm:$0xff]
    %v1427 = vld [vmem:[#allocation12 + $0xec8] sm:$0xff]
    %v1428 = vld [vmem:[#allocation12 + $0xed0] sm:$0xff]
    %v1429 = vld [vmem:[#allocation12 + $0xed8] sm:$0xff]
    %v1430 = vld [vmem:[#allocation12 + $0xee0] sm:$0xff]
    %v1431 = vld [vmem:[#allocation12 + $0xee8] sm:$0xff]
    %v1432 = vld [vmem:[#allocation12 + $0xef0] sm:$0xff]
    %v1433 = vld [vmem:[#allocation12 + $0xef8] sm:$0xff]
    %v1434 = vld [vmem:[#allocation12 + $0xf00] sm:$0xff]
    %v1435 = vld [vmem:[#allocation12 + $0xf08] sm:$0xff]
    %v1436 = vld [vmem:[#allocation12 + $0xf10] sm:$0xff]
    %v1437 = vld [vmem:[#allocation12 + $0xf18] sm:$0xff]
    %v1438 = vld [vmem:[#allocation12 + $0xf20] sm:$0xff]
    %v1439 = vld [vmem:[#allocation12 + $0xf28] sm:$0xff]
    %v1440 = vld [vmem:[#allocation12 + $0xf30] sm:$0xff]
    %v1441 = vld [vmem:[#allocation12 + $0xf38] sm:$0xff]
    %v1442 = vld [vmem:[#allocation12 + $0xf40] sm:$0xff]
    %v1443 = vld [vmem:[#allocation12 + $0xf48] sm:$0xff]
    %v1444 = vld [vmem:[#allocation12 + $0xf50] sm:$0xff]
    %v1445 = vld [vmem:[#allocation12 + $0xf58] sm:$0xff]
    %v1446 = vld [vmem:[#allocation12 + $0xf60] sm:$0xff]
    %v1447 = vld [vmem:[#allocation12 + $0xf68] sm:$0xff]
    %v1448 = vld [vmem:[#allocation12 + $0xf70] sm:$0xff]
    %v1449 = vld [vmem:[#allocation12 + $0xf78] sm:$0xff]
    %v1450 = vld [vmem:[#allocation12 + $0xf80] sm:$0xff]
    %v1451 = vld [vmem:[#allocation12 + $0xf88] sm:$0xff]
    %v1452 = vld [vmem:[#allocation12 + $0xf90] sm:$0xff]
    %v1453 = vld [vmem:[#allocation12 + $0xf98] sm:$0xff]
    %v1454 = vld [vmem:[#allocation12 + $0xfa0] sm:$0xff]
    %v1455 = vld [vmem:[#allocation12 + $0xfa8] sm:$0xff]
    %v1456 = vld [vmem:[#allocation12 + $0xfb0] sm:$0xff]
    %v1457 = vld [vmem:[#allocation12 + $0xfb8] sm:$0xff]
    %v1458 = vld [vmem:[#allocation12 + $0xfc0] sm:$0xff]
    %v1459 = vld [vmem:[#allocation12 + $0xfc8] sm:$0xff]
    %v1460 = vld [vmem:[#allocation12 + $0xfd0] sm:$0xff]
    %v1461 = vld [vmem:[#allocation12 + $0xfd8] sm:$0xff]
    %v1462 = vld [vmem:[#allocation12 + $0xfe0] sm:$0xff]
    %v1463 = vld [vmem:[#allocation12 + $0xfe8] sm:$0xff]
    %v1464 = vld [vmem:[#allocation12 + $0xff0] sm:$0xff]
    %v1465 = vld [vmem:[#allocation12 + $0xff8] sm:$0xff]
    %v1466 = vld [vmem:[#allocation14] sm:$0xff]
    %v1468 = vlaneseq
    %v1469 = vshrl.u32 %v1468, 7
    %v1470 = vsub.s32 0, %v1469
    %v1471 = vrot.slane %v1466, %v1470
    %v1472 = vlaneseq
    %v1473 = vshrl.u32 %v1472, 7
    %v1474 = vsub.s32 1, %v1473
    %v1475 = vrot.slane %v1466, %v1474
    %v1476 = vlaneseq
    %v1477 = vshrl.u32 %v1476, 7
    %v1478 = vsub.s32 2, %v1477
    %v1479 = vrot.slane %v1466, %v1478
    %v1480 = vlaneseq
    %v1481 = vshrl.u32 %v1480, 7
    %v1482 = vsub.s32 3, %v1481
    %v1483 = vrot.slane %v1466, %v1482
    %v1484 = vlaneseq
    %v1485 = vshrl.u32 %v1484, 7
    %v1486 = vsub.s32 4, %v1485
    %v1487 = vrot.slane %v1466, %v1486
    %v1488 = vlaneseq
    %v1489 = vshrl.u32 %v1488, 7
    %v1490 = vsub.s32 5, %v1489
    %v1491 = vrot.slane %v1466, %v1490
    %v1492 = vlaneseq
    %v1493 = vshrl.u32 %v1492, 7
    %v1494 = vsub.s32 6, %v1493
    %v1495 = vrot.slane %v1466, %v1494
    %v1496 = vlaneseq
    %v1497 = vshrl.u32 %v1496, 7
    %v1498 = vsub.s32 7, %v1497
    %v1499 = vrot.slane %v1466, %v1498
    %v2020 = vunpack.c.l.b16 %v954
    %v2021 = vunpack.c.h.b16 %v954
    %v2022 = vunpack.c.l.b16 %v955
    %v2023 = vunpack.c.h.b16 %v955
    %v2024 = vunpack.c.l.b16 %v956
    %v2025 = vunpack.c.h.b16 %v956
    %v2026 = vunpack.c.l.b16 %v957
    %v2027 = vunpack.c.h.b16 %v957
    %v2028 = vunpack.c.l.b16 %v958
    %v2029 = vunpack.c.h.b16 %v958
    %v2030 = vunpack.c.l.b16 %v959
    %v2031 = vunpack.c.h.b16 %v959
    %v2032 = vunpack.c.l.b16 %v960
    %v2033 = vunpack.c.h.b16 %v960
    %v2034 = vunpack.c.l.b16 %v961
    %v2035 = vunpack.c.h.b16 %v961
    %v2036 = vunpack.c.l.b16 %v962
    %v2037 = vunpack.c.h.b16 %v962
    %v2038 = vunpack.c.l.b16 %v963
    %v2039 = vunpack.c.h.b16 %v963
    %v2040 = vunpack.c.l.b16 %v964
    %v2041 = vunpack.c.h.b16 %v964
    %v2042 = vunpack.c.l.b16 %v965
    %v2043 = vunpack.c.h.b16 %v965
    %v2044 = vunpack.c.l.b16 %v966
    %v2045 = vunpack.c.h.b16 %v966
    %v2046 = vunpack.c.l.b16 %v967
    %v2047 = vunpack.c.h.b16 %v967
    %v2048 = vunpack.c.l.b16 %v968
    %v2049 = vunpack.c.h.b16 %v968
    %v2050 = vunpack.c.l.b16 %v969
    %v2051 = vunpack.c.h.b16 %v969
    %v2052 = vunpack.c.l.b16 %v970
    %v2053 = vunpack.c.h.b16 %v970
    %v2054 = vunpack.c.l.b16 %v971
    %v2055 = vunpack.c.h.b16 %v971
    %v2056 = vunpack.c.l.b16 %v972
    %v2057 = vunpack.c.h.b16 %v972
    %v2058 = vunpack.c.l.b16 %v973
    %v2059 = vunpack.c.h.b16 %v973
    %v2060 = vunpack.c.l.b16 %v974
    %v2061 = vunpack.c.h.b16 %v974
    %v2062 = vunpack.c.l.b16 %v975
    %v2063 = vunpack.c.h.b16 %v975
    %v2064 = vunpack.c.l.b16 %v976
    %v2065 = vunpack.c.h.b16 %v976
    %v2066 = vunpack.c.l.b16 %v977
    %v2067 = vunpack.c.h.b16 %v977
    %v2068 = vunpack.c.l.b16 %v978
    %v2069 = vunpack.c.h.b16 %v978
    %v2070 = vunpack.c.l.b16 %v979
    %v2071 = vunpack.c.h.b16 %v979
    %v2072 = vunpack.c.l.b16 %v980
    %v2073 = vunpack.c.h.b16 %v980
    %v2074 = vunpack.c.l.b16 %v981
    %v2075 = vunpack.c.h.b16 %v981
    %v2076 = vunpack.c.l.b16 %v982
    %v2077 = vunpack.c.h.b16 %v982
    %v2078 = vunpack.c.l.b16 %v983
    %v2079 = vunpack.c.h.b16 %v983
    %v2080 = vunpack.c.l.b16 %v984
    %v2081 = vunpack.c.h.b16 %v984
    %v2082 = vunpack.c.l.b16 %v985
    %v2083 = vunpack.c.h.b16 %v985
    %v2084 = vunpack.c.l.b16 %v986
    %v2085 = vunpack.c.h.b16 %v986
    %v2086 = vunpack.c.l.b16 %v987
    %v2087 = vunpack.c.h.b16 %v987
    %v2088 = vunpack.c.l.b16 %v988
    %v2089 = vunpack.c.h.b16 %v988
    %v2090 = vunpack.c.l.b16 %v989
    %v2091 = vunpack.c.h.b16 %v989
    %v2092 = vunpack.c.l.b16 %v990
    %v2093 = vunpack.c.h.b16 %v990
    %v2094 = vunpack.c.l.b16 %v991
    %v2095 = vunpack.c.h.b16 %v991
    %v2096 = vunpack.c.l.b16 %v992
    %v2097 = vunpack.c.h.b16 %v992
    %v2098 = vunpack.c.l.b16 %v993
    %v2099 = vunpack.c.h.b16 %v993
    %v2100 = vunpack.c.l.b16 %v994
    %v2101 = vunpack.c.h.b16 %v994
    %v2102 = vunpack.c.l.b16 %v995
    %v2103 = vunpack.c.h.b16 %v995
    %v2104 = vunpack.c.l.b16 %v996
    %v2105 = vunpack.c.h.b16 %v996
    %v2106 = vunpack.c.l.b16 %v997
    %v2107 = vunpack.c.h.b16 %v997
    %v2108 = vunpack.c.l.b16 %v998
    %v2109 = vunpack.c.h.b16 %v998
    %v2110 = vunpack.c.l.b16 %v999
    %v2111 = vunpack.c.h.b16 %v999
    %v2112 = vunpack.c.l.b16 %v1000
    %v2113 = vunpack.c.h.b16 %v1000
    %v2114 = vunpack.c.l.b16 %v1001
    %v2115 = vunpack.c.h.b16 %v1001
    %v2116 = vunpack.c.l.b16 %v1002
    %v2117 = vunpack.c.h.b16 %v1002
    %v2118 = vunpack.c.l.b16 %v1003
    %v2119 = vunpack.c.h.b16 %v1003
    %v2120 = vunpack.c.l.b16 %v1004
    %v2121 = vunpack.c.h.b16 %v1004
    %v2122 = vunpack.c.l.b16 %v1005
    %v2123 = vunpack.c.h.b16 %v1005
    %v2124 = vunpack.c.l.b16 %v1006
    %v2125 = vunpack.c.h.b16 %v1006
    %v2126 = vunpack.c.l.b16 %v1007
    %v2127 = vunpack.c.h.b16 %v1007
    %v2128 = vunpack.c.l.b16 %v1008
    %v2129 = vunpack.c.h.b16 %v1008
    %v2130 = vunpack.c.l.b16 %v1009
    %v2131 = vunpack.c.h.b16 %v1009
    %v2132 = vunpack.c.l.b16 %v1010
    %v2133 = vunpack.c.h.b16 %v1010
    %v2134 = vunpack.c.l.b16 %v1011
    %v2135 = vunpack.c.h.b16 %v1011
    %v2136 = vunpack.c.l.b16 %v1012
    %v2137 = vunpack.c.h.b16 %v1012
    %v2138 = vunpack.c.l.b16 %v1013
    %v2139 = vunpack.c.h.b16 %v1013
    %v2140 = vunpack.c.l.b16 %v1014
    %v2141 = vunpack.c.h.b16 %v1014
    %v2142 = vunpack.c.l.b16 %v1015
    %v2143 = vunpack.c.h.b16 %v1015
    %v2144 = vunpack.c.l.b16 %v1016
    %v2145 = vunpack.c.h.b16 %v1016
    %v2146 = vunpack.c.l.b16 %v1017
    %v2147 = vunpack.c.h.b16 %v1017
    %v2148 = vunpack.c.l.b16 %v1018
    %v2149 = vunpack.c.h.b16 %v1018
    %v2150 = vunpack.c.l.b16 %v1019
    %v2151 = vunpack.c.h.b16 %v1019
    %v2152 = vunpack.c.l.b16 %v1020
    %v2153 = vunpack.c.h.b16 %v1020
    %v2154 = vunpack.c.l.b16 %v1021
    %v2155 = vunpack.c.h.b16 %v1021
    %v2156 = vunpack.c.l.b16 %v1022
    %v2157 = vunpack.c.h.b16 %v1022
    %v2158 = vunpack.c.l.b16 %v1023
    %v2159 = vunpack.c.h.b16 %v1023
    %v2160 = vunpack.c.l.b16 %v1024
    %v2161 = vunpack.c.h.b16 %v1024
    %v2162 = vunpack.c.l.b16 %v1025
    %v2163 = vunpack.c.h.b16 %v1025
    %v2164 = vunpack.c.l.b16 %v1026
    %v2165 = vunpack.c.h.b16 %v1026
    %v2166 = vunpack.c.l.b16 %v1027
    %v2167 = vunpack.c.h.b16 %v1027
    %v2168 = vunpack.c.l.b16 %v1028
    %v2169 = vunpack.c.h.b16 %v1028
    %v2170 = vunpack.c.l.b16 %v1029
    %v2171 = vunpack.c.h.b16 %v1029
    %v2172 = vunpack.c.l.b16 %v1030
    %v2173 = vunpack.c.h.b16 %v1030
    %v2174 = vunpack.c.l.b16 %v1031
    %v2175 = vunpack.c.h.b16 %v1031
    %v2176 = vunpack.c.l.b16 %v1032
    %v2177 = vunpack.c.h.b16 %v1032
    %v2178 = vunpack.c.l.b16 %v1033
    %v2179 = vunpack.c.h.b16 %v1033
    %v2180 = vunpack.c.l.b16 %v1034
    %v2181 = vunpack.c.h.b16 %v1034
    %v2182 = vunpack.c.l.b16 %v1035
    %v2183 = vunpack.c.h.b16 %v1035
    %v2184 = vunpack.c.l.b16 %v1036
    %v2185 = vunpack.c.h.b16 %v1036
    %v2186 = vunpack.c.l.b16 %v1037
    %v2187 = vunpack.c.h.b16 %v1037
    %v2188 = vunpack.c.l.b16 %v1038
    %v2189 = vunpack.c.h.b16 %v1038
    %v2190 = vunpack.c.l.b16 %v1039
    %v2191 = vunpack.c.h.b16 %v1039
    %v2192 = vunpack.c.l.b16 %v1040
    %v2193 = vunpack.c.h.b16 %v1040
    %v2194 = vunpack.c.l.b16 %v1041
    %v2195 = vunpack.c.h.b16 %v1041
    %v2196 = vunpack.c.l.b16 %v1042
    %v2197 = vunpack.c.h.b16 %v1042
    %v2198 = vunpack.c.l.b16 %v1043
    %v2199 = vunpack.c.h.b16 %v1043
    %v2200 = vunpack.c.l.b16 %v1044
    %v2201 = vunpack.c.h.b16 %v1044
    %v2202 = vunpack.c.l.b16 %v1045
    %v2203 = vunpack.c.h.b16 %v1045
    %v2204 = vunpack.c.l.b16 %v1046
    %v2205 = vunpack.c.h.b16 %v1046
    %v2206 = vunpack.c.l.b16 %v1047
    %v2207 = vunpack.c.h.b16 %v1047
    %v2208 = vunpack.c.l.b16 %v1048
    %v2209 = vunpack.c.h.b16 %v1048
    %v2210 = vunpack.c.l.b16 %v1049
    %v2211 = vunpack.c.h.b16 %v1049
    %v2212 = vunpack.c.l.b16 %v1050
    %v2213 = vunpack.c.h.b16 %v1050
    %v2214 = vunpack.c.l.b16 %v1051
    %v2215 = vunpack.c.h.b16 %v1051
    %v2216 = vunpack.c.l.b16 %v1052
    %v2217 = vunpack.c.h.b16 %v1052
    %v2218 = vunpack.c.l.b16 %v1053
    %v2219 = vunpack.c.h.b16 %v1053
    %v2220 = vunpack.c.l.b16 %v1054
    %v2221 = vunpack.c.h.b16 %v1054
    %v2222 = vunpack.c.l.b16 %v1055
    %v2223 = vunpack.c.h.b16 %v1055
    %v2224 = vunpack.c.l.b16 %v1056
    %v2225 = vunpack.c.h.b16 %v1056
    %v2226 = vunpack.c.l.b16 %v1057
    %v2227 = vunpack.c.h.b16 %v1057
    %v2228 = vunpack.c.l.b16 %v1058
    %v2229 = vunpack.c.h.b16 %v1058
    %v2230 = vunpack.c.l.b16 %v1059
    %v2231 = vunpack.c.h.b16 %v1059
    %v2232 = vunpack.c.l.b16 %v1060
    %v2233 = vunpack.c.h.b16 %v1060
    %v2234 = vunpack.c.l.b16 %v1061
    %v2235 = vunpack.c.h.b16 %v1061
    %v2236 = vunpack.c.l.b16 %v1062
    %v2237 = vunpack.c.h.b16 %v1062
    %v2238 = vunpack.c.l.b16 %v1063
    %v2239 = vunpack.c.h.b16 %v1063
    %v2240 = vunpack.c.l.b16 %v1064
    %v2241 = vunpack.c.h.b16 %v1064
    %v2242 = vunpack.c.l.b16 %v1065
    %v2243 = vunpack.c.h.b16 %v1065
    %v2244 = vunpack.c.l.b16 %v1066
    %v2245 = vunpack.c.h.b16 %v1066
    %v2246 = vunpack.c.l.b16 %v1067
    %v2247 = vunpack.c.h.b16 %v1067
    %v2248 = vunpack.c.l.b16 %v1068
    %v2249 = vunpack.c.h.b16 %v1068
    %v2250 = vunpack.c.l.b16 %v1069
    %v2251 = vunpack.c.h.b16 %v1069
    %v2252 = vunpack.c.l.b16 %v1070
    %v2253 = vunpack.c.h.b16 %v1070
    %v2254 = vunpack.c.l.b16 %v1071
    %v2255 = vunpack.c.h.b16 %v1071
    %v2256 = vunpack.c.l.b16 %v1072
    %v2257 = vunpack.c.h.b16 %v1072
    %v2258 = vunpack.c.l.b16 %v1073
    %v2259 = vunpack.c.h.b16 %v1073
    %v2260 = vunpack.c.l.b16 %v1074
    %v2261 = vunpack.c.h.b16 %v1074
    %v2262 = vunpack.c.l.b16 %v1075
    %v2263 = vunpack.c.h.b16 %v1075
    %v2264 = vunpack.c.l.b16 %v1076
    %v2265 = vunpack.c.h.b16 %v1076
    %v2266 = vunpack.c.l.b16 %v1077
    %v2267 = vunpack.c.h.b16 %v1077
    %v2268 = vunpack.c.l.b16 %v1078
    %v2269 = vunpack.c.h.b16 %v1078
    %v2270 = vunpack.c.l.b16 %v1079
    %v2271 = vunpack.c.h.b16 %v1079
    %v2272 = vunpack.c.l.b16 %v1080
    %v2273 = vunpack.c.h.b16 %v1080
    %v2274 = vunpack.c.l.b16 %v1081
    %v2275 = vunpack.c.h.b16 %v1081
    %v2276 = vunpack.c.l.b16 %v1082
    %v2277 = vunpack.c.h.b16 %v1082
    %v2278 = vunpack.c.l.b16 %v1083
    %v2279 = vunpack.c.h.b16 %v1083
    %v2280 = vunpack.c.l.b16 %v1084
    %v2281 = vunpack.c.h.b16 %v1084
    %v2282 = vunpack.c.l.b16 %v1085
    %v2283 = vunpack.c.h.b16 %v1085
    %v2284 = vunpack.c.l.b16 %v1086
    %v2285 = vunpack.c.h.b16 %v1086
    %v2286 = vunpack.c.l.b16 %v1087
    %v2287 = vunpack.c.h.b16 %v1087
    %v2288 = vunpack.c.l.b16 %v1088
    %v2289 = vunpack.c.h.b16 %v1088
    %v2290 = vunpack.c.l.b16 %v1089
    %v2291 = vunpack.c.h.b16 %v1089
    %v2292 = vunpack.c.l.b16 %v1090
    %v2293 = vunpack.c.h.b16 %v1090
    %v2294 = vunpack.c.l.b16 %v1091
    %v2295 = vunpack.c.h.b16 %v1091
    %v2296 = vunpack.c.l.b16 %v1092
    %v2297 = vunpack.c.h.b16 %v1092
    %v2298 = vunpack.c.l.b16 %v1093
    %v2299 = vunpack.c.h.b16 %v1093
    %v2300 = vunpack.c.l.b16 %v1094
    %v2301 = vunpack.c.h.b16 %v1094
    %v2302 = vunpack.c.l.b16 %v1095
    %v2303 = vunpack.c.h.b16 %v1095
    %v2304 = vunpack.c.l.b16 %v1096
    %v2305 = vunpack.c.h.b16 %v1096
    %v2306 = vunpack.c.l.b16 %v1097
    %v2307 = vunpack.c.h.b16 %v1097
    %v2308 = vunpack.c.l.b16 %v1098
    %v2309 = vunpack.c.h.b16 %v1098
    %v2310 = vunpack.c.l.b16 %v1099
    %v2311 = vunpack.c.h.b16 %v1099
    %v2312 = vunpack.c.l.b16 %v1100
    %v2313 = vunpack.c.h.b16 %v1100
    %v2314 = vunpack.c.l.b16 %v1101
    %v2315 = vunpack.c.h.b16 %v1101
    %v2316 = vunpack.c.l.b16 %v1102
    %v2317 = vunpack.c.h.b16 %v1102
    %v2318 = vunpack.c.l.b16 %v1103
    %v2319 = vunpack.c.h.b16 %v1103
    %v2320 = vunpack.c.l.b16 %v1104
    %v2321 = vunpack.c.h.b16 %v1104
    %v2322 = vunpack.c.l.b16 %v1105
    %v2323 = vunpack.c.h.b16 %v1105
    %v2324 = vunpack.c.l.b16 %v1106
    %v2325 = vunpack.c.h.b16 %v1106
    %v2326 = vunpack.c.l.b16 %v1107
    %v2327 = vunpack.c.h.b16 %v1107
    %v2328 = vunpack.c.l.b16 %v1108
    %v2329 = vunpack.c.h.b16 %v1108
    %v2330 = vunpack.c.l.b16 %v1109
    %v2331 = vunpack.c.h.b16 %v1109
    %v2332 = vunpack.c.l.b16 %v1110
    %v2333 = vunpack.c.h.b16 %v1110
    %v2334 = vunpack.c.l.b16 %v1111
    %v2335 = vunpack.c.h.b16 %v1111
    %v2336 = vunpack.c.l.b16 %v1112
    %v2337 = vunpack.c.h.b16 %v1112
    %v2338 = vunpack.c.l.b16 %v1113
    %v2339 = vunpack.c.h.b16 %v1113
    %v2340 = vunpack.c.l.b16 %v1114
    %v2341 = vunpack.c.h.b16 %v1114
    %v2342 = vunpack.c.l.b16 %v1115
    %v2343 = vunpack.c.h.b16 %v1115
    %v2344 = vunpack.c.l.b16 %v1116
    %v2345 = vunpack.c.h.b16 %v1116
    %v2346 = vunpack.c.l.b16 %v1117
    %v2347 = vunpack.c.h.b16 %v1117
    %v2348 = vunpack.c.l.b16 %v1118
    %v2349 = vunpack.c.h.b16 %v1118
    %v2350 = vunpack.c.l.b16 %v1119
    %v2351 = vunpack.c.h.b16 %v1119
    %v2352 = vunpack.c.l.b16 %v1120
    %v2353 = vunpack.c.h.b16 %v1120
    %v2354 = vunpack.c.l.b16 %v1121
    %v2355 = vunpack.c.h.b16 %v1121
    %v2356 = vunpack.c.l.b16 %v1122
    %v2357 = vunpack.c.h.b16 %v1122
    %v2358 = vunpack.c.l.b16 %v1123
    %v2359 = vunpack.c.h.b16 %v1123
    %v2360 = vunpack.c.l.b16 %v1124
    %v2361 = vunpack.c.h.b16 %v1124
    %v2362 = vunpack.c.l.b16 %v1125
    %v2363 = vunpack.c.h.b16 %v1125
    %v2364 = vunpack.c.l.b16 %v1126
    %v2365 = vunpack.c.h.b16 %v1126
    %v2366 = vunpack.c.l.b16 %v1127
    %v2367 = vunpack.c.h.b16 %v1127
    %v2368 = vunpack.c.l.b16 %v1128
    %v2369 = vunpack.c.h.b16 %v1128
    %v2370 = vunpack.c.l.b16 %v1129
    %v2371 = vunpack.c.h.b16 %v1129
    %v2372 = vunpack.c.l.b16 %v1130
    %v2373 = vunpack.c.h.b16 %v1130
    %v2374 = vunpack.c.l.b16 %v1131
    %v2375 = vunpack.c.h.b16 %v1131
    %v2376 = vunpack.c.l.b16 %v1132
    %v2377 = vunpack.c.h.b16 %v1132
    %v2378 = vunpack.c.l.b16 %v1133
    %v2379 = vunpack.c.h.b16 %v1133
    %v2380 = vunpack.c.l.b16 %v1134
    %v2381 = vunpack.c.h.b16 %v1134
    %v2382 = vunpack.c.l.b16 %v1135
    %v2383 = vunpack.c.h.b16 %v1135
    %v2384 = vunpack.c.l.b16 %v1136
    %v2385 = vunpack.c.h.b16 %v1136
    %v2386 = vunpack.c.l.b16 %v1137
    %v2387 = vunpack.c.h.b16 %v1137
    %v2388 = vunpack.c.l.b16 %v1138
    %v2389 = vunpack.c.h.b16 %v1138
    %v2390 = vunpack.c.l.b16 %v1139
    %v2391 = vunpack.c.h.b16 %v1139
    %v2392 = vunpack.c.l.b16 %v1140
    %v2393 = vunpack.c.h.b16 %v1140
    %v2394 = vunpack.c.l.b16 %v1141
    %v2395 = vunpack.c.h.b16 %v1141
    %v2396 = vunpack.c.l.b16 %v1142
    %v2397 = vunpack.c.h.b16 %v1142
    %v2398 = vunpack.c.l.b16 %v1143
    %v2399 = vunpack.c.h.b16 %v1143
    %v2400 = vunpack.c.l.b16 %v1144
    %v2401 = vunpack.c.h.b16 %v1144
    %v2402 = vunpack.c.l.b16 %v1145
    %v2403 = vunpack.c.h.b16 %v1145
    %v2404 = vunpack.c.l.b16 %v1146
    %v2405 = vunpack.c.h.b16 %v1146
    %v2406 = vunpack.c.l.b16 %v1147
    %v2407 = vunpack.c.h.b16 %v1147
    %v2408 = vunpack.c.l.b16 %v1148
    %v2409 = vunpack.c.h.b16 %v1148
    %v2410 = vunpack.c.l.b16 %v1149
    %v2411 = vunpack.c.h.b16 %v1149
    %v2412 = vunpack.c.l.b16 %v1150
    %v2413 = vunpack.c.h.b16 %v1150
    %v2414 = vunpack.c.l.b16 %v1151
    %v2415 = vunpack.c.h.b16 %v1151
    %v2416 = vunpack.c.l.b16 %v1152
    %v2417 = vunpack.c.h.b16 %v1152
    %v2418 = vunpack.c.l.b16 %v1153
    %v2419 = vunpack.c.h.b16 %v1153
    %v2420 = vunpack.c.l.b16 %v1154
    %v2421 = vunpack.c.h.b16 %v1154
    %v2422 = vunpack.c.l.b16 %v1155
    %v2423 = vunpack.c.h.b16 %v1155
    %v2424 = vunpack.c.l.b16 %v1156
    %v2425 = vunpack.c.h.b16 %v1156
    %v2426 = vunpack.c.l.b16 %v1157
    %v2427 = vunpack.c.h.b16 %v1157
    %v2428 = vunpack.c.l.b16 %v1158
    %v2429 = vunpack.c.h.b16 %v1158
    %v2430 = vunpack.c.l.b16 %v1159
    %v2431 = vunpack.c.h.b16 %v1159
    %v2432 = vunpack.c.l.b16 %v1160
    %v2433 = vunpack.c.h.b16 %v1160
    %v2434 = vunpack.c.l.b16 %v1161
    %v2435 = vunpack.c.h.b16 %v1161
    %v2436 = vunpack.c.l.b16 %v1162
    %v2437 = vunpack.c.h.b16 %v1162
    %v2438 = vunpack.c.l.b16 %v1163
    %v2439 = vunpack.c.h.b16 %v1163
    %v2440 = vunpack.c.l.b16 %v1164
    %v2441 = vunpack.c.h.b16 %v1164
    %v2442 = vunpack.c.l.b16 %v1165
    %v2443 = vunpack.c.h.b16 %v1165
    %v2444 = vunpack.c.l.b16 %v1166
    %v2445 = vunpack.c.h.b16 %v1166
    %v2446 = vunpack.c.l.b16 %v1167
    %v2447 = vunpack.c.h.b16 %v1167
    %v2448 = vunpack.c.l.b16 %v1168
    %v2449 = vunpack.c.h.b16 %v1168
    %v2450 = vunpack.c.l.b16 %v1169
    %v2451 = vunpack.c.h.b16 %v1169
    %v2452 = vunpack.c.l.b16 %v1170
    %v2453 = vunpack.c.h.b16 %v1170
    %v2454 = vunpack.c.l.b16 %v1171
    %v2455 = vunpack.c.h.b16 %v1171
    %v2456 = vunpack.c.l.b16 %v1172
    %v2457 = vunpack.c.h.b16 %v1172
    %v2458 = vunpack.c.l.b16 %v1173
    %v2459 = vunpack.c.h.b16 %v1173
    %v2460 = vunpack.c.l.b16 %v1174
    %v2461 = vunpack.c.h.b16 %v1174
    %v2462 = vunpack.c.l.b16 %v1175
    %v2463 = vunpack.c.h.b16 %v1175
    %v2464 = vunpack.c.l.b16 %v1176
    %v2465 = vunpack.c.h.b16 %v1176
    %v2466 = vunpack.c.l.b16 %v1177
    %v2467 = vunpack.c.h.b16 %v1177
    %v2468 = vunpack.c.l.b16 %v1178
    %v2469 = vunpack.c.h.b16 %v1178
    %v2470 = vunpack.c.l.b16 %v1179
    %v2471 = vunpack.c.h.b16 %v1179
    %v2472 = vunpack.c.l.b16 %v1180
    %v2473 = vunpack.c.h.b16 %v1180
    %v2474 = vunpack.c.l.b16 %v1181
    %v2475 = vunpack.c.h.b16 %v1181
    %v2476 = vunpack.c.l.b16 %v1182
    %v2477 = vunpack.c.h.b16 %v1182
    %v2478 = vunpack.c.l.b16 %v1183
    %v2479 = vunpack.c.h.b16 %v1183
    %v2480 = vunpack.c.l.b16 %v1184
    %v2481 = vunpack.c.h.b16 %v1184
    %v2482 = vunpack.c.l.b16 %v1185
    %v2483 = vunpack.c.h.b16 %v1185
    %v2484 = vunpack.c.l.b16 %v1186
    %v2485 = vunpack.c.h.b16 %v1186
    %v2486 = vunpack.c.l.b16 %v1187
    %v2487 = vunpack.c.h.b16 %v1187
    %v2488 = vunpack.c.l.b16 %v1188
    %v2489 = vunpack.c.h.b16 %v1188
    %v2490 = vunpack.c.l.b16 %v1189
    %v2491 = vunpack.c.h.b16 %v1189
    %v2492 = vunpack.c.l.b16 %v1190
    %v2493 = vunpack.c.h.b16 %v1190
    %v2494 = vunpack.c.l.b16 %v1191
    %v2495 = vunpack.c.h.b16 %v1191
    %v2496 = vunpack.c.l.b16 %v1192
    %v2497 = vunpack.c.h.b16 %v1192
    %v2498 = vunpack.c.l.b16 %v1193
    %v2499 = vunpack.c.h.b16 %v1193
    %v2500 = vunpack.c.l.b16 %v1194
    %v2501 = vunpack.c.h.b16 %v1194
    %v2502 = vunpack.c.l.b16 %v1195
    %v2503 = vunpack.c.h.b16 %v1195
    %v2504 = vunpack.c.l.b16 %v1196
    %v2505 = vunpack.c.h.b16 %v1196
    %v2506 = vunpack.c.l.b16 %v1197
    %v2507 = vunpack.c.h.b16 %v1197
    %v2508 = vunpack.c.l.b16 %v1198
    %v2509 = vunpack.c.h.b16 %v1198
    %v2510 = vunpack.c.l.b16 %v1199
    %v2511 = vunpack.c.h.b16 %v1199
    %v2512 = vunpack.c.l.b16 %v1200
    %v2513 = vunpack.c.h.b16 %v1200
    %v2514 = vunpack.c.l.b16 %v1201
    %v2515 = vunpack.c.h.b16 %v1201
    %v2516 = vunpack.c.l.b16 %v1202
    %v2517 = vunpack.c.h.b16 %v1202
    %v2518 = vunpack.c.l.b16 %v1203
    %v2519 = vunpack.c.h.b16 %v1203
    %v2520 = vunpack.c.l.b16 %v1204
    %v2521 = vunpack.c.h.b16 %v1204
    %v2522 = vunpack.c.l.b16 %v1205
    %v2523 = vunpack.c.h.b16 %v1205
    %v2524 = vunpack.c.l.b16 %v1206
    %v2525 = vunpack.c.h.b16 %v1206
    %v2526 = vunpack.c.l.b16 %v1207
    %v2527 = vunpack.c.h.b16 %v1207
    %v2528 = vunpack.c.l.b16 %v1208
    %v2529 = vunpack.c.h.b16 %v1208
    %v2530 = vunpack.c.l.b16 %v1209
    %v2531 = vunpack.c.h.b16 %v1209
    %v2532 = vunpack.c.l.b16 %v1210
    %v2533 = vunpack.c.h.b16 %v1210
    %v2534 = vunpack.c.l.b16 %v1211
    %v2535 = vunpack.c.h.b16 %v1211
    %v2536 = vunpack.c.l.b16 %v1212
    %v2537 = vunpack.c.h.b16 %v1212
    %v2538 = vunpack.c.l.b16 %v1213
    %v2539 = vunpack.c.h.b16 %v1213
    %v2540 = vunpack.c.l.b16 %v1214
    %v2541 = vunpack.c.h.b16 %v1214
    %v2542 = vunpack.c.l.b16 %v1215
    %v2543 = vunpack.c.h.b16 %v1215
    %v2544 = vunpack.c.l.b16 %v1216
    %v2545 = vunpack.c.h.b16 %v1216
    %v2546 = vunpack.c.l.b16 %v1217
    %v2547 = vunpack.c.h.b16 %v1217
    %v2548 = vunpack.c.l.b16 %v1218
    %v2549 = vunpack.c.h.b16 %v1218
    %v2550 = vunpack.c.l.b16 %v1219
    %v2551 = vunpack.c.h.b16 %v1219
    %v2552 = vunpack.c.l.b16 %v1220
    %v2553 = vunpack.c.h.b16 %v1220
    %v2554 = vunpack.c.l.b16 %v1221
    %v2555 = vunpack.c.h.b16 %v1221
    %v2556 = vunpack.c.l.b16 %v1222
    %v2557 = vunpack.c.h.b16 %v1222
    %v2558 = vunpack.c.l.b16 %v1223
    %v2559 = vunpack.c.h.b16 %v1223
    %v2560 = vunpack.c.l.b16 %v1224
    %v2561 = vunpack.c.h.b16 %v1224
    %v2562 = vunpack.c.l.b16 %v1225
    %v2563 = vunpack.c.h.b16 %v1225
    %v2564 = vunpack.c.l.b16 %v1226
    %v2565 = vunpack.c.h.b16 %v1226
    %v2566 = vunpack.c.l.b16 %v1227
    %v2567 = vunpack.c.h.b16 %v1227
    %v2568 = vunpack.c.l.b16 %v1228
    %v2569 = vunpack.c.h.b16 %v1228
    %v2570 = vunpack.c.l.b16 %v1229
    %v2571 = vunpack.c.h.b16 %v1229
    %v2572 = vunpack.c.l.b16 %v1230
    %v2573 = vunpack.c.h.b16 %v1230
    %v2574 = vunpack.c.l.b16 %v1231
    %v2575 = vunpack.c.h.b16 %v1231
    %v2576 = vunpack.c.l.b16 %v1232
    %v2577 = vunpack.c.h.b16 %v1232
    %v2578 = vunpack.c.l.b16 %v1233
    %v2579 = vunpack.c.h.b16 %v1233
    %v2580 = vunpack.c.l.b16 %v1234
    %v2581 = vunpack.c.h.b16 %v1234
    %v2582 = vunpack.c.l.b16 %v1235
    %v2583 = vunpack.c.h.b16 %v1235
    %v2584 = vunpack.c.l.b16 %v1236
    %v2585 = vunpack.c.h.b16 %v1236
    %v2586 = vunpack.c.l.b16 %v1237
    %v2587 = vunpack.c.h.b16 %v1237
    %v2588 = vunpack.c.l.b16 %v1238
    %v2589 = vunpack.c.h.b16 %v1238
    %v2590 = vunpack.c.l.b16 %v1239
    %v2591 = vunpack.c.h.b16 %v1239
    %v2592 = vunpack.c.l.b16 %v1240
    %v2593 = vunpack.c.h.b16 %v1240
    %v2594 = vunpack.c.l.b16 %v1241
    %v2595 = vunpack.c.h.b16 %v1241
    %v2596 = vunpack.c.l.b16 %v1242
    %v2597 = vunpack.c.h.b16 %v1242
    %v2598 = vunpack.c.l.b16 %v1243
    %v2599 = vunpack.c.h.b16 %v1243
    %v2600 = vunpack.c.l.b16 %v1244
    %v2601 = vunpack.c.h.b16 %v1244
    %v2602 = vunpack.c.l.b16 %v1245
    %v2603 = vunpack.c.h.b16 %v1245
    %v2604 = vunpack.c.l.b16 %v1246
    %v2605 = vunpack.c.h.b16 %v1246
    %v2606 = vunpack.c.l.b16 %v1247
    %v2607 = vunpack.c.h.b16 %v1247
    %v2608 = vunpack.c.l.b16 %v1248
    %v2609 = vunpack.c.h.b16 %v1248
    %v2610 = vunpack.c.l.b16 %v1249
    %v2611 = vunpack.c.h.b16 %v1249
    %v2612 = vunpack.c.l.b16 %v1250
    %v2613 = vunpack.c.h.b16 %v1250
    %v2614 = vunpack.c.l.b16 %v1251
    %v2615 = vunpack.c.h.b16 %v1251
    %v2616 = vunpack.c.l.b16 %v1252
    %v2617 = vunpack.c.h.b16 %v1252
    %v2618 = vunpack.c.l.b16 %v1253
    %v2619 = vunpack.c.h.b16 %v1253
    %v2620 = vunpack.c.l.b16 %v1254
    %v2621 = vunpack.c.h.b16 %v1254
    %v2622 = vunpack.c.l.b16 %v1255
    %v2623 = vunpack.c.h.b16 %v1255
    %v2624 = vunpack.c.l.b16 %v1256
    %v2625 = vunpack.c.h.b16 %v1256
    %v2626 = vunpack.c.l.b16 %v1257
    %v2627 = vunpack.c.h.b16 %v1257
    %v2628 = vunpack.c.l.b16 %v1258
    %v2629 = vunpack.c.h.b16 %v1258
    %v2630 = vunpack.c.l.b16 %v1259
    %v2631 = vunpack.c.h.b16 %v1259
    %v2632 = vunpack.c.l.b16 %v1260
    %v2633 = vunpack.c.h.b16 %v1260
    %v2634 = vunpack.c.l.b16 %v1261
    %v2635 = vunpack.c.h.b16 %v1261
    %v2636 = vunpack.c.l.b16 %v1262
    %v2637 = vunpack.c.h.b16 %v1262
    %v2638 = vunpack.c.l.b16 %v1263
    %v2639 = vunpack.c.h.b16 %v1263
    %v2640 = vunpack.c.l.b16 %v1264
    %v2641 = vunpack.c.h.b16 %v1264
    %v2642 = vunpack.c.l.b16 %v1265
    %v2643 = vunpack.c.h.b16 %v1265
    %v2644 = vunpack.c.l.b16 %v1266
    %v2645 = vunpack.c.h.b16 %v1266
    %v2646 = vunpack.c.l.b16 %v1267
    %v2647 = vunpack.c.h.b16 %v1267
    %v2648 = vunpack.c.l.b16 %v1268
    %v2649 = vunpack.c.h.b16 %v1268
    %v2650 = vunpack.c.l.b16 %v1269
    %v2651 = vunpack.c.h.b16 %v1269
    %v2652 = vunpack.c.l.b16 %v1270
    %v2653 = vunpack.c.h.b16 %v1270
    %v2654 = vunpack.c.l.b16 %v1271
    %v2655 = vunpack.c.h.b16 %v1271
    %v2656 = vunpack.c.l.b16 %v1272
    %v2657 = vunpack.c.h.b16 %v1272
    %v2658 = vunpack.c.l.b16 %v1273
    %v2659 = vunpack.c.h.b16 %v1273
    %v2660 = vunpack.c.l.b16 %v1274
    %v2661 = vunpack.c.h.b16 %v1274
    %v2662 = vunpack.c.l.b16 %v1275
    %v2663 = vunpack.c.h.b16 %v1275
    %v2664 = vunpack.c.l.b16 %v1276
    %v2665 = vunpack.c.h.b16 %v1276
    %v2666 = vunpack.c.l.b16 %v1277
    %v2667 = vunpack.c.h.b16 %v1277
    %v2668 = vunpack.c.l.b16 %v1278
    %v2669 = vunpack.c.h.b16 %v1278
    %v2670 = vunpack.c.l.b16 %v1279
    %v2671 = vunpack.c.h.b16 %v1279
    %v2672 = vunpack.c.l.b16 %v1280
    %v2673 = vunpack.c.h.b16 %v1280
    %v2674 = vunpack.c.l.b16 %v1281
    %v2675 = vunpack.c.h.b16 %v1281
    %v2676 = vunpack.c.l.b16 %v1282
    %v2677 = vunpack.c.h.b16 %v1282
    %v2678 = vunpack.c.l.b16 %v1283
    %v2679 = vunpack.c.h.b16 %v1283
    %v2680 = vunpack.c.l.b16 %v1284
    %v2681 = vunpack.c.h.b16 %v1284
    %v2682 = vunpack.c.l.b16 %v1285
    %v2683 = vunpack.c.h.b16 %v1285
    %v2684 = vunpack.c.l.b16 %v1286
    %v2685 = vunpack.c.h.b16 %v1286
    %v2686 = vunpack.c.l.b16 %v1287
    %v2687 = vunpack.c.h.b16 %v1287
    %v2688 = vunpack.c.l.b16 %v1288
    %v2689 = vunpack.c.h.b16 %v1288
    %v2690 = vunpack.c.l.b16 %v1289
    %v2691 = vunpack.c.h.b16 %v1289
    %v2692 = vunpack.c.l.b16 %v1290
    %v2693 = vunpack.c.h.b16 %v1290
    %v2694 = vunpack.c.l.b16 %v1291
    %v2695 = vunpack.c.h.b16 %v1291
    %v2696 = vunpack.c.l.b16 %v1292
    %v2697 = vunpack.c.h.b16 %v1292
    %v2698 = vunpack.c.l.b16 %v1293
    %v2699 = vunpack.c.h.b16 %v1293
    %v2700 = vunpack.c.l.b16 %v1294
    %v2701 = vunpack.c.h.b16 %v1294
    %v2702 = vunpack.c.l.b16 %v1295
    %v2703 = vunpack.c.h.b16 %v1295
    %v2704 = vunpack.c.l.b16 %v1296
    %v2705 = vunpack.c.h.b16 %v1296
    %v2706 = vunpack.c.l.b16 %v1297
    %v2707 = vunpack.c.h.b16 %v1297
    %v2708 = vunpack.c.l.b16 %v1298
    %v2709 = vunpack.c.h.b16 %v1298
    %v2710 = vunpack.c.l.b16 %v1299
    %v2711 = vunpack.c.h.b16 %v1299
    %v2712 = vunpack.c.l.b16 %v1300
    %v2713 = vunpack.c.h.b16 %v1300
    %v2714 = vunpack.c.l.b16 %v1301
    %v2715 = vunpack.c.h.b16 %v1301
    %v2716 = vunpack.c.l.b16 %v1302
    %v2717 = vunpack.c.h.b16 %v1302
    %v2718 = vunpack.c.l.b16 %v1303
    %v2719 = vunpack.c.h.b16 %v1303
    %v2720 = vunpack.c.l.b16 %v1304
    %v2721 = vunpack.c.h.b16 %v1304
    %v2722 = vunpack.c.l.b16 %v1305
    %v2723 = vunpack.c.h.b16 %v1305
    %v2724 = vunpack.c.l.b16 %v1306
    %v2725 = vunpack.c.h.b16 %v1306
    %v2726 = vunpack.c.l.b16 %v1307
    %v2727 = vunpack.c.h.b16 %v1307
    %v2728 = vunpack.c.l.b16 %v1308
    %v2729 = vunpack.c.h.b16 %v1308
    %v2730 = vunpack.c.l.b16 %v1309
    %v2731 = vunpack.c.h.b16 %v1309
    %v2732 = vunpack.c.l.b16 %v1310
    %v2733 = vunpack.c.h.b16 %v1310
    %v2734 = vunpack.c.l.b16 %v1311
    %v2735 = vunpack.c.h.b16 %v1311
    %v2736 = vunpack.c.l.b16 %v1312
    %v2737 = vunpack.c.h.b16 %v1312
    %v2738 = vunpack.c.l.b16 %v1313
    %v2739 = vunpack.c.h.b16 %v1313
    %v2740 = vunpack.c.l.b16 %v1314
    %v2741 = vunpack.c.h.b16 %v1314
    %v2742 = vunpack.c.l.b16 %v1315
    %v2743 = vunpack.c.h.b16 %v1315
    %v2744 = vunpack.c.l.b16 %v1316
    %v2745 = vunpack.c.h.b16 %v1316
    %v2746 = vunpack.c.l.b16 %v1317
    %v2747 = vunpack.c.h.b16 %v1317
    %v2748 = vunpack.c.l.b16 %v1318
    %v2749 = vunpack.c.h.b16 %v1318
    %v2750 = vunpack.c.l.b16 %v1319
    %v2751 = vunpack.c.h.b16 %v1319
    %v2752 = vunpack.c.l.b16 %v1320
    %v2753 = vunpack.c.h.b16 %v1320
    %v2754 = vunpack.c.l.b16 %v1321
    %v2755 = vunpack.c.h.b16 %v1321
    %v2756 = vunpack.c.l.b16 %v1322
    %v2757 = vunpack.c.h.b16 %v1322
    %v2758 = vunpack.c.l.b16 %v1323
    %v2759 = vunpack.c.h.b16 %v1323
    %v2760 = vunpack.c.l.b16 %v1324
    %v2761 = vunpack.c.h.b16 %v1324
    %v2762 = vunpack.c.l.b16 %v1325
    %v2763 = vunpack.c.h.b16 %v1325
    %v2764 = vunpack.c.l.b16 %v1326
    %v2765 = vunpack.c.h.b16 %v1326
    %v2766 = vunpack.c.l.b16 %v1327
    %v2767 = vunpack.c.h.b16 %v1327
    %v2768 = vunpack.c.l.b16 %v1328
    %v2769 = vunpack.c.h.b16 %v1328
    %v2770 = vunpack.c.l.b16 %v1329
    %v2771 = vunpack.c.h.b16 %v1329
    %v2772 = vunpack.c.l.b16 %v1330
    %v2773 = vunpack.c.h.b16 %v1330
    %v2774 = vunpack.c.l.b16 %v1331
    %v2775 = vunpack.c.h.b16 %v1331
    %v2776 = vunpack.c.l.b16 %v1332
    %v2777 = vunpack.c.h.b16 %v1332
    %v2778 = vunpack.c.l.b16 %v1333
    %v2779 = vunpack.c.h.b16 %v1333
    %v2780 = vunpack.c.l.b16 %v1334
    %v2781 = vunpack.c.h.b16 %v1334
    %v2782 = vunpack.c.l.b16 %v1335
    %v2783 = vunpack.c.h.b16 %v1335
    %v2784 = vunpack.c.l.b16 %v1336
    %v2785 = vunpack.c.h.b16 %v1336
    %v2786 = vunpack.c.l.b16 %v1337
    %v2787 = vunpack.c.h.b16 %v1337
    %v2788 = vunpack.c.l.b16 %v1338
    %v2789 = vunpack.c.h.b16 %v1338
    %v2790 = vunpack.c.l.b16 %v1339
    %v2791 = vunpack.c.h.b16 %v1339
    %v2792 = vunpack.c.l.b16 %v1340
    %v2793 = vunpack.c.h.b16 %v1340
    %v2794 = vunpack.c.l.b16 %v1341
    %v2795 = vunpack.c.h.b16 %v1341
    %v2796 = vunpack.c.l.b16 %v1342
    %v2797 = vunpack.c.h.b16 %v1342
    %v2798 = vunpack.c.l.b16 %v1343
    %v2799 = vunpack.c.h.b16 %v1343
    %v2800 = vunpack.c.l.b16 %v1344
    %v2801 = vunpack.c.h.b16 %v1344
    %v2802 = vunpack.c.l.b16 %v1345
    %v2803 = vunpack.c.h.b16 %v1345
    %v2804 = vunpack.c.l.b16 %v1346
    %v2805 = vunpack.c.h.b16 %v1346
    %v2806 = vunpack.c.l.b16 %v1347
    %v2807 = vunpack.c.h.b16 %v1347
    %v2808 = vunpack.c.l.b16 %v1348
    %v2809 = vunpack.c.h.b16 %v1348
    %v2810 = vunpack.c.l.b16 %v1349
    %v2811 = vunpack.c.h.b16 %v1349
    %v2812 = vunpack.c.l.b16 %v1350
    %v2813 = vunpack.c.h.b16 %v1350
    %v2814 = vunpack.c.l.b16 %v1351
    %v2815 = vunpack.c.h.b16 %v1351
    %v2816 = vunpack.c.l.b16 %v1352
    %v2817 = vunpack.c.h.b16 %v1352
    %v2818 = vunpack.c.l.b16 %v1353
    %v2819 = vunpack.c.h.b16 %v1353
    %v2820 = vunpack.c.l.b16 %v1354
    %v2821 = vunpack.c.h.b16 %v1354
    %v2822 = vunpack.c.l.b16 %v1355
    %v2823 = vunpack.c.h.b16 %v1355
    %v2824 = vunpack.c.l.b16 %v1356
    %v2825 = vunpack.c.h.b16 %v1356
    %v2826 = vunpack.c.l.b16 %v1357
    %v2827 = vunpack.c.h.b16 %v1357
    %v2828 = vunpack.c.l.b16 %v1358
    %v2829 = vunpack.c.h.b16 %v1358
    %v2830 = vunpack.c.l.b16 %v1359
    %v2831 = vunpack.c.h.b16 %v1359
    %v2832 = vunpack.c.l.b16 %v1360
    %v2833 = vunpack.c.h.b16 %v1360
    %v2834 = vunpack.c.l.b16 %v1361
    %v2835 = vunpack.c.h.b16 %v1361
    %v2836 = vunpack.c.l.b16 %v1362
    %v2837 = vunpack.c.h.b16 %v1362
    %v2838 = vunpack.c.l.b16 %v1363
    %v2839 = vunpack.c.h.b16 %v1363
    %v2840 = vunpack.c.l.b16 %v1364
    %v2841 = vunpack.c.h.b16 %v1364
    %v2842 = vunpack.c.l.b16 %v1365
    %v2843 = vunpack.c.h.b16 %v1365
    %v2844 = vunpack.c.l.b16 %v1366
    %v2845 = vunpack.c.h.b16 %v1366
    %v2846 = vunpack.c.l.b16 %v1367
    %v2847 = vunpack.c.h.b16 %v1367
    %v2848 = vunpack.c.l.b16 %v1368
    %v2849 = vunpack.c.h.b16 %v1368
    %v2850 = vunpack.c.l.b16 %v1369
    %v2851 = vunpack.c.h.b16 %v1369
    %v2852 = vunpack.c.l.b16 %v1370
    %v2853 = vunpack.c.h.b16 %v1370
    %v2854 = vunpack.c.l.b16 %v1371
    %v2855 = vunpack.c.h.b16 %v1371
    %v2856 = vunpack.c.l.b16 %v1372
    %v2857 = vunpack.c.h.b16 %v1372
    %v2858 = vunpack.c.l.b16 %v1373
    %v2859 = vunpack.c.h.b16 %v1373
    %v2860 = vunpack.c.l.b16 %v1374
    %v2861 = vunpack.c.h.b16 %v1374
    %v2862 = vunpack.c.l.b16 %v1375
    %v2863 = vunpack.c.h.b16 %v1375
    %v2864 = vunpack.c.l.b16 %v1376
    %v2865 = vunpack.c.h.b16 %v1376
    %v2866 = vunpack.c.l.b16 %v1377
    %v2867 = vunpack.c.h.b16 %v1377
    %v2868 = vunpack.c.l.b16 %v1378
    %v2869 = vunpack.c.h.b16 %v1378
    %v2870 = vunpack.c.l.b16 %v1379
    %v2871 = vunpack.c.h.b16 %v1379
    %v2872 = vunpack.c.l.b16 %v1380
    %v2873 = vunpack.c.h.b16 %v1380
    %v2874 = vunpack.c.l.b16 %v1381
    %v2875 = vunpack.c.h.b16 %v1381
    %v2876 = vunpack.c.l.b16 %v1382
    %v2877 = vunpack.c.h.b16 %v1382
    %v2878 = vunpack.c.l.b16 %v1383
    %v2879 = vunpack.c.h.b16 %v1383
    %v2880 = vunpack.c.l.b16 %v1384
    %v2881 = vunpack.c.h.b16 %v1384
    %v2882 = vunpack.c.l.b16 %v1385
    %v2883 = vunpack.c.h.b16 %v1385
    %v2884 = vunpack.c.l.b16 %v1386
    %v2885 = vunpack.c.h.b16 %v1386
    %v2886 = vunpack.c.l.b16 %v1387
    %v2887 = vunpack.c.h.b16 %v1387
    %v2888 = vunpack.c.l.b16 %v1388
    %v2889 = vunpack.c.h.b16 %v1388
    %v2890 = vunpack.c.l.b16 %v1389
    %v2891 = vunpack.c.h.b16 %v1389
    %v2892 = vunpack.c.l.b16 %v1390
    %v2893 = vunpack.c.h.b16 %v1390
    %v2894 = vunpack.c.l.b16 %v1391
    %v2895 = vunpack.c.h.b16 %v1391
    %v2896 = vunpack.c.l.b16 %v1392
    %v2897 = vunpack.c.h.b16 %v1392
    %v2898 = vunpack.c.l.b16 %v1393
    %v2899 = vunpack.c.h.b16 %v1393
    %v2900 = vunpack.c.l.b16 %v1394
    %v2901 = vunpack.c.h.b16 %v1394
    %v2902 = vunpack.c.l.b16 %v1395
    %v2903 = vunpack.c.h.b16 %v1395
    %v2904 = vunpack.c.l.b16 %v1396
    %v2905 = vunpack.c.h.b16 %v1396
    %v2906 = vunpack.c.l.b16 %v1397
    %v2907 = vunpack.c.h.b16 %v1397
    %v2908 = vunpack.c.l.b16 %v1398
    %v2909 = vunpack.c.h.b16 %v1398
    %v2910 = vunpack.c.l.b16 %v1399
    %v2911 = vunpack.c.h.b16 %v1399
    %v2912 = vunpack.c.l.b16 %v1400
    %v2913 = vunpack.c.h.b16 %v1400
    %v2914 = vunpack.c.l.b16 %v1401
    %v2915 = vunpack.c.h.b16 %v1401
    %v2916 = vunpack.c.l.b16 %v1402
    %v2917 = vunpack.c.h.b16 %v1402
    %v2918 = vunpack.c.l.b16 %v1403
    %v2919 = vunpack.c.h.b16 %v1403
    %v2920 = vunpack.c.l.b16 %v1404
    %v2921 = vunpack.c.h.b16 %v1404
    %v2922 = vunpack.c.l.b16 %v1405
    %v2923 = vunpack.c.h.b16 %v1405
    %v2924 = vunpack.c.l.b16 %v1406
    %v2925 = vunpack.c.h.b16 %v1406
    %v2926 = vunpack.c.l.b16 %v1407
    %v2927 = vunpack.c.h.b16 %v1407
    %v2928 = vunpack.c.l.b16 %v1408
    %v2929 = vunpack.c.h.b16 %v1408
    %v2930 = vunpack.c.l.b16 %v1409
    %v2931 = vunpack.c.h.b16 %v1409
    %v2932 = vunpack.c.l.b16 %v1410
    %v2933 = vunpack.c.h.b16 %v1410
    %v2934 = vunpack.c.l.b16 %v1411
    %v2935 = vunpack.c.h.b16 %v1411
    %v2936 = vunpack.c.l.b16 %v1412
    %v2937 = vunpack.c.h.b16 %v1412
    %v2938 = vunpack.c.l.b16 %v1413
    %v2939 = vunpack.c.h.b16 %v1413
    %v2940 = vunpack.c.l.b16 %v1414
    %v2941 = vunpack.c.h.b16 %v1414
    %v2942 = vunpack.c.l.b16 %v1415
    %v2943 = vunpack.c.h.b16 %v1415
    %v2944 = vunpack.c.l.b16 %v1416
    %v2945 = vunpack.c.h.b16 %v1416
    %v2946 = vunpack.c.l.b16 %v1417
    %v2947 = vunpack.c.h.b16 %v1417
    %v2948 = vunpack.c.l.b16 %v1418
    %v2949 = vunpack.c.h.b16 %v1418
    %v2950 = vunpack.c.l.b16 %v1419
    %v2951 = vunpack.c.h.b16 %v1419
    %v2952 = vunpack.c.l.b16 %v1420
    %v2953 = vunpack.c.h.b16 %v1420
    %v2954 = vunpack.c.l.b16 %v1421
    %v2955 = vunpack.c.h.b16 %v1421
    %v2956 = vunpack.c.l.b16 %v1422
    %v2957 = vunpack.c.h.b16 %v1422
    %v2958 = vunpack.c.l.b16 %v1423
    %v2959 = vunpack.c.h.b16 %v1423
    %v2960 = vunpack.c.l.b16 %v1424
    %v2961 = vunpack.c.h.b16 %v1424
    %v2962 = vunpack.c.l.b16 %v1425
    %v2963 = vunpack.c.h.b16 %v1425
    %v2964 = vunpack.c.l.b16 %v1426
    %v2965 = vunpack.c.h.b16 %v1426
    %v2966 = vunpack.c.l.b16 %v1427
    %v2967 = vunpack.c.h.b16 %v1427
    %v2968 = vunpack.c.l.b16 %v1428
    %v2969 = vunpack.c.h.b16 %v1428
    %v2970 = vunpack.c.l.b16 %v1429
    %v2971 = vunpack.c.h.b16 %v1429
    %v2972 = vunpack.c.l.b16 %v1430
    %v2973 = vunpack.c.h.b16 %v1430
    %v2974 = vunpack.c.l.b16 %v1431
    %v2975 = vunpack.c.h.b16 %v1431
    %v2976 = vunpack.c.l.b16 %v1432
    %v2977 = vunpack.c.h.b16 %v1432
    %v2978 = vunpack.c.l.b16 %v1433
    %v2979 = vunpack.c.h.b16 %v1433
    %v2980 = vunpack.c.l.b16 %v1434
    %v2981 = vunpack.c.h.b16 %v1434
    %v2982 = vunpack.c.l.b16 %v1435
    %v2983 = vunpack.c.h.b16 %v1435
    %v2984 = vunpack.c.l.b16 %v1436
    %v2985 = vunpack.c.h.b16 %v1436
    %v2986 = vunpack.c.l.b16 %v1437
    %v2987 = vunpack.c.h.b16 %v1437
    %v2988 = vunpack.c.l.b16 %v1438
    %v2989 = vunpack.c.h.b16 %v1438
    %v2990 = vunpack.c.l.b16 %v1439
    %v2991 = vunpack.c.h.b16 %v1439
    %v2992 = vunpack.c.l.b16 %v1440
    %v2993 = vunpack.c.h.b16 %v1440
    %v2994 = vunpack.c.l.b16 %v1441
    %v2995 = vunpack.c.h.b16 %v1441
    %v2996 = vunpack.c.l.b16 %v1442
    %v2997 = vunpack.c.h.b16 %v1442
    %v2998 = vunpack.c.l.b16 %v1443
    %v2999 = vunpack.c.h.b16 %v1443
    %v3000 = vunpack.c.l.b16 %v1444
    %v3001 = vunpack.c.h.b16 %v1444
    %v3002 = vunpack.c.l.b16 %v1445
    %v3003 = vunpack.c.h.b16 %v1445
    %v3004 = vunpack.c.l.b16 %v1446
    %v3005 = vunpack.c.h.b16 %v1446
    %v3006 = vunpack.c.l.b16 %v1447
    %v3007 = vunpack.c.h.b16 %v1447
    %v3008 = vunpack.c.l.b16 %v1448
    %v3009 = vunpack.c.h.b16 %v1448
    %v3010 = vunpack.c.l.b16 %v1449
    %v3011 = vunpack.c.h.b16 %v1449
    %v3012 = vunpack.c.l.b16 %v1450
    %v3013 = vunpack.c.h.b16 %v1450
    %v3014 = vunpack.c.l.b16 %v1451
    %v3015 = vunpack.c.h.b16 %v1451
    %v3016 = vunpack.c.l.b16 %v1452
    %v3017 = vunpack.c.h.b16 %v1452
    %v3018 = vunpack.c.l.b16 %v1453
    %v3019 = vunpack.c.h.b16 %v1453
    %v3020 = vunpack.c.l.b16 %v1454
    %v3021 = vunpack.c.h.b16 %v1454
    %v3022 = vunpack.c.l.b16 %v1455
    %v3023 = vunpack.c.h.b16 %v1455
    %v3024 = vunpack.c.l.b16 %v1456
    %v3025 = vunpack.c.h.b16 %v1456
    %v3026 = vunpack.c.l.b16 %v1457
    %v3027 = vunpack.c.h.b16 %v1457
    %v3028 = vunpack.c.l.b16 %v1458
    %v3029 = vunpack.c.h.b16 %v1458
    %v3030 = vunpack.c.l.b16 %v1459
    %v3031 = vunpack.c.h.b16 %v1459
    %v3032 = vunpack.c.l.b16 %v1460
    %v3033 = vunpack.c.h.b16 %v1460
    %v3034 = vunpack.c.l.b16 %v1461
    %v3035 = vunpack.c.h.b16 %v1461
    %v3036 = vunpack.c.l.b16 %v1462
    %v3037 = vunpack.c.h.b16 %v1462
    %v3038 = vunpack.c.l.b16 %v1463
    %v3039 = vunpack.c.h.b16 %v1463
    %v3040 = vunpack.c.l.b16 %v1464
    %v3041 = vunpack.c.h.b16 %v1464
    %v3042 = vunpack.c.l.b16 %v1465
    %v3043 = vunpack.c.h.b16 %v1465
    %v3044 = vpack.c.b16 %v2028, %v2020
    %v3045 = vpack.c.b16 %v2029, %v2021
    %v3046 = vpack.c.b16 %v2030, %v2022
    %v3047 = vpack.c.b16 %v2031, %v2023
    %v3048 = vpack.c.b16 %v2032, %v2024
    %v3049 = vpack.c.b16 %v2033, %v2025
    %v3050 = vpack.c.b16 %v2034, %v2026
    %v3051 = vpack.c.b16 %v2035, %v2027
    %v3052 = vpack.c.b16 %v2044, %v2036
    %v3053 = vpack.c.b16 %v2045, %v2037
    %v3054 = vpack.c.b16 %v2046, %v2038
    %v3055 = vpack.c.b16 %v2047, %v2039
    %v3056 = vpack.c.b16 %v2048, %v2040
    %v3057 = vpack.c.b16 %v2049, %v2041
    %v3058 = vpack.c.b16 %v2050, %v2042
    %v3059 = vpack.c.b16 %v2051, %v2043
    %v3060 = vpack.c.b16 %v2060, %v2052
    %v3061 = vpack.c.b16 %v2061, %v2053
    %v3062 = vpack.c.b16 %v2062, %v2054
    %v3063 = vpack.c.b16 %v2063, %v2055
    %v3064 = vpack.c.b16 %v2064, %v2056
    %v3065 = vpack.c.b16 %v2065, %v2057
    %v3066 = vpack.c.b16 %v2066, %v2058
    %v3067 = vpack.c.b16 %v2067, %v2059
    %v3068 = vpack.c.b16 %v2076, %v2068
    %v3069 = vpack.c.b16 %v2077, %v2069
    %v3070 = vpack.c.b16 %v2078, %v2070
    %v3071 = vpack.c.b16 %v2079, %v2071
    %v3072 = vpack.c.b16 %v2080, %v2072
    %v3073 = vpack.c.b16 %v2081, %v2073
    %v3074 = vpack.c.b16 %v2082, %v2074
    %v3075 = vpack.c.b16 %v2083, %v2075
    %v3076 = vpack.c.b16 %v2092, %v2084
    %v3077 = vpack.c.b16 %v2093, %v2085
    %v3078 = vpack.c.b16 %v2094, %v2086
    %v3079 = vpack.c.b16 %v2095, %v2087
    %v3080 = vpack.c.b16 %v2096, %v2088
    %v3081 = vpack.c.b16 %v2097, %v2089
    %v3082 = vpack.c.b16 %v2098, %v2090
    %v3083 = vpack.c.b16 %v2099, %v2091
    %v3084 = vpack.c.b16 %v2108, %v2100
    %v3085 = vpack.c.b16 %v2109, %v2101
    %v3086 = vpack.c.b16 %v2110, %v2102
    %v3087 = vpack.c.b16 %v2111, %v2103
    %v3088 = vpack.c.b16 %v2112, %v2104
    %v3089 = vpack.c.b16 %v2113, %v2105
    %v3090 = vpack.c.b16 %v2114, %v2106
    %v3091 = vpack.c.b16 %v2115, %v2107
    %v3092 = vpack.c.b16 %v2124, %v2116
    %v3093 = vpack.c.b16 %v2125, %v2117
    %v3094 = vpack.c.b16 %v2126, %v2118
    %v3095 = vpack.c.b16 %v2127, %v2119
    %v3096 = vpack.c.b16 %v2128, %v2120
    %v3097 = vpack.c.b16 %v2129, %v2121
    %v3098 = vpack.c.b16 %v2130, %v2122
    %v3099 = vpack.c.b16 %v2131, %v2123
    %v3100 = vpack.c.b16 %v2140, %v2132
    %v3101 = vpack.c.b16 %v2141, %v2133
    %v3102 = vpack.c.b16 %v2142, %v2134
    %v3103 = vpack.c.b16 %v2143, %v2135
    %v3104 = vpack.c.b16 %v2144, %v2136
    %v3105 = vpack.c.b16 %v2145, %v2137
    %v3106 = vpack.c.b16 %v2146, %v2138
    %v3107 = vpack.c.b16 %v2147, %v2139
    %v3108 = vpack.c.b16 %v2156, %v2148
    %v3109 = vpack.c.b16 %v2157, %v2149
    %v3110 = vpack.c.b16 %v2158, %v2150
    %v3111 = vpack.c.b16 %v2159, %v2151
    %v3112 = vpack.c.b16 %v2160, %v2152
    %v3113 = vpack.c.b16 %v2161, %v2153
    %v3114 = vpack.c.b16 %v2162, %v2154
    %v3115 = vpack.c.b16 %v2163, %v2155
    %v3116 = vpack.c.b16 %v2172, %v2164
    %v3117 = vpack.c.b16 %v2173, %v2165
    %v3118 = vpack.c.b16 %v2174, %v2166
    %v3119 = vpack.c.b16 %v2175, %v2167
    %v3120 = vpack.c.b16 %v2176, %v2168
    %v3121 = vpack.c.b16 %v2177, %v2169
    %v3122 = vpack.c.b16 %v2178, %v2170
    %v3123 = vpack.c.b16 %v2179, %v2171
    %v3124 = vpack.c.b16 %v2188, %v2180
    %v3125 = vpack.c.b16 %v2189, %v2181
    %v3126 = vpack.c.b16 %v2190, %v2182
    %v3127 = vpack.c.b16 %v2191, %v2183
    %v3128 = vpack.c.b16 %v2192, %v2184
    %v3129 = vpack.c.b16 %v2193, %v2185
    %v3130 = vpack.c.b16 %v2194, %v2186
    %v3131 = vpack.c.b16 %v2195, %v2187
    %v3132 = vpack.c.b16 %v2204, %v2196
    %v3133 = vpack.c.b16 %v2205, %v2197
    %v3134 = vpack.c.b16 %v2206, %v2198
    %v3135 = vpack.c.b16 %v2207, %v2199
    %v3136 = vpack.c.b16 %v2208, %v2200
    %v3137 = vpack.c.b16 %v2209, %v2201
    %v3138 = vpack.c.b16 %v2210, %v2202
    %v3139 = vpack.c.b16 %v2211, %v2203
    %v3140 = vpack.c.b16 %v2220, %v2212
    %v3141 = vpack.c.b16 %v2221, %v2213
    %v3142 = vpack.c.b16 %v2222, %v2214
    %v3143 = vpack.c.b16 %v2223, %v2215
    %v3144 = vpack.c.b16 %v2224, %v2216
    %v3145 = vpack.c.b16 %v2225, %v2217
    %v3146 = vpack.c.b16 %v2226, %v2218
    %v3147 = vpack.c.b16 %v2227, %v2219
    %v3148 = vpack.c.b16 %v2236, %v2228
    %v3149 = vpack.c.b16 %v2237, %v2229
    %v3150 = vpack.c.b16 %v2238, %v2230
    %v3151 = vpack.c.b16 %v2239, %v2231
    %v3152 = vpack.c.b16 %v2240, %v2232
    %v3153 = vpack.c.b16 %v2241, %v2233
    %v3154 = vpack.c.b16 %v2242, %v2234
    %v3155 = vpack.c.b16 %v2243, %v2235
    %v3156 = vpack.c.b16 %v2252, %v2244
    %v3157 = vpack.c.b16 %v2253, %v2245
    %v3158 = vpack.c.b16 %v2254, %v2246
    %v3159 = vpack.c.b16 %v2255, %v2247
    %v3160 = vpack.c.b16 %v2256, %v2248
    %v3161 = vpack.c.b16 %v2257, %v2249
    %v3162 = vpack.c.b16 %v2258, %v2250
    %v3163 = vpack.c.b16 %v2259, %v2251
    %v3164 = vpack.c.b16 %v2268, %v2260
    %v3165 = vpack.c.b16 %v2269, %v2261
    %v3166 = vpack.c.b16 %v2270, %v2262
    %v3167 = vpack.c.b16 %v2271, %v2263
    %v3168 = vpack.c.b16 %v2272, %v2264
    %v3169 = vpack.c.b16 %v2273, %v2265
    %v3170 = vpack.c.b16 %v2274, %v2266
    %v3171 = vpack.c.b16 %v2275, %v2267
    %v3172 = vpack.c.b16 %v2284, %v2276
    %v3173 = vpack.c.b16 %v2285, %v2277
    %v3174 = vpack.c.b16 %v2286, %v2278
    %v3175 = vpack.c.b16 %v2287, %v2279
    %v3176 = vpack.c.b16 %v2288, %v2280
    %v3177 = vpack.c.b16 %v2289, %v2281
    %v3178 = vpack.c.b16 %v2290, %v2282
    %v3179 = vpack.c.b16 %v2291, %v2283
    %v3180 = vpack.c.b16 %v2300, %v2292
    %v3181 = vpack.c.b16 %v2301, %v2293
    %v3182 = vpack.c.b16 %v2302, %v2294
    %v3183 = vpack.c.b16 %v2303, %v2295
    %v3184 = vpack.c.b16 %v2304, %v2296
    %v3185 = vpack.c.b16 %v2305, %v2297
    %v3186 = vpack.c.b16 %v2306, %v2298
    %v3187 = vpack.c.b16 %v2307, %v2299
    %v3188 = vpack.c.b16 %v2316, %v2308
    %v3189 = vpack.c.b16 %v2317, %v2309
    %v3190 = vpack.c.b16 %v2318, %v2310
    %v3191 = vpack.c.b16 %v2319, %v2311
    %v3192 = vpack.c.b16 %v2320, %v2312
    %v3193 = vpack.c.b16 %v2321, %v2313
    %v3194 = vpack.c.b16 %v2322, %v2314
    %v3195 = vpack.c.b16 %v2323, %v2315
    %v3196 = vpack.c.b16 %v2332, %v2324
    %v3197 = vpack.c.b16 %v2333, %v2325
    %v3198 = vpack.c.b16 %v2334, %v2326
    %v3199 = vpack.c.b16 %v2335, %v2327
    %v3200 = vpack.c.b16 %v2336, %v2328
    %v3201 = vpack.c.b16 %v2337, %v2329
    %v3202 = vpack.c.b16 %v2338, %v2330
    %v3203 = vpack.c.b16 %v2339, %v2331
    %v3204 = vpack.c.b16 %v2348, %v2340
    %v3205 = vpack.c.b16 %v2349, %v2341
    %v3206 = vpack.c.b16 %v2350, %v2342
    %v3207 = vpack.c.b16 %v2351, %v2343
    %v3208 = vpack.c.b16 %v2352, %v2344
    %v3209 = vpack.c.b16 %v2353, %v2345
    %v3210 = vpack.c.b16 %v2354, %v2346
    %v3211 = vpack.c.b16 %v2355, %v2347
    %v3212 = vpack.c.b16 %v2364, %v2356
    %v3213 = vpack.c.b16 %v2365, %v2357
    %v3214 = vpack.c.b16 %v2366, %v2358
    %v3215 = vpack.c.b16 %v2367, %v2359
    %v3216 = vpack.c.b16 %v2368, %v2360
    %v3217 = vpack.c.b16 %v2369, %v2361
    %v3218 = vpack.c.b16 %v2370, %v2362
    %v3219 = vpack.c.b16 %v2371, %v2363
    %v3220 = vpack.c.b16 %v2380, %v2372
    %v3221 = vpack.c.b16 %v2381, %v2373
    %v3222 = vpack.c.b16 %v2382, %v2374
    %v3223 = vpack.c.b16 %v2383, %v2375
    %v3224 = vpack.c.b16 %v2384, %v2376
    %v3225 = vpack.c.b16 %v2385, %v2377
    %v3226 = vpack.c.b16 %v2386, %v2378
    %v3227 = vpack.c.b16 %v2387, %v2379
    %v3228 = vpack.c.b16 %v2396, %v2388
    %v3229 = vpack.c.b16 %v2397, %v2389
    %v3230 = vpack.c.b16 %v2398, %v2390
    %v3231 = vpack.c.b16 %v2399, %v2391
    %v3232 = vpack.c.b16 %v2400, %v2392
    %v3233 = vpack.c.b16 %v2401, %v2393
    %v3234 = vpack.c.b16 %v2402, %v2394
    %v3235 = vpack.c.b16 %v2403, %v2395
    %v3236 = vpack.c.b16 %v2412, %v2404
    %v3237 = vpack.c.b16 %v2413, %v2405
    %v3238 = vpack.c.b16 %v2414, %v2406
    %v3239 = vpack.c.b16 %v2415, %v2407
    %v3240 = vpack.c.b16 %v2416, %v2408
    %v3241 = vpack.c.b16 %v2417, %v2409
    %v3242 = vpack.c.b16 %v2418, %v2410
    %v3243 = vpack.c.b16 %v2419, %v2411
    %v3244 = vpack.c.b16 %v2428, %v2420
    %v3245 = vpack.c.b16 %v2429, %v2421
    %v3246 = vpack.c.b16 %v2430, %v2422
    %v3247 = vpack.c.b16 %v2431, %v2423
    %v3248 = vpack.c.b16 %v2432, %v2424
    %v3249 = vpack.c.b16 %v2433, %v2425
    %v3250 = vpack.c.b16 %v2434, %v2426
    %v3251 = vpack.c.b16 %v2435, %v2427
    %v3252 = vpack.c.b16 %v2444, %v2436
    %v3253 = vpack.c.b16 %v2445, %v2437
    %v3254 = vpack.c.b16 %v2446, %v2438
    %v3255 = vpack.c.b16 %v2447, %v2439
    %v3256 = vpack.c.b16 %v2448, %v2440
    %v3257 = vpack.c.b16 %v2449, %v2441
    %v3258 = vpack.c.b16 %v2450, %v2442
    %v3259 = vpack.c.b16 %v2451, %v2443
    %v3260 = vpack.c.b16 %v2460, %v2452
    %v3261 = vpack.c.b16 %v2461, %v2453
    %v3262 = vpack.c.b16 %v2462, %v2454
    %v3263 = vpack.c.b16 %v2463, %v2455
    %v3264 = vpack.c.b16 %v2464, %v2456
    %v3265 = vpack.c.b16 %v2465, %v2457
    %v3266 = vpack.c.b16 %v2466, %v2458
    %v3267 = vpack.c.b16 %v2467, %v2459
    %v3268 = vpack.c.b16 %v2476, %v2468
    %v3269 = vpack.c.b16 %v2477, %v2469
    %v3270 = vpack.c.b16 %v2478, %v2470
    %v3271 = vpack.c.b16 %v2479, %v2471
    %v3272 = vpack.c.b16 %v2480, %v2472
    %v3273 = vpack.c.b16 %v2481, %v2473
    %v3274 = vpack.c.b16 %v2482, %v2474
    %v3275 = vpack.c.b16 %v2483, %v2475
    %v3276 = vpack.c.b16 %v2492, %v2484
    %v3277 = vpack.c.b16 %v2493, %v2485
    %v3278 = vpack.c.b16 %v2494, %v2486
    %v3279 = vpack.c.b16 %v2495, %v2487
    %v3280 = vpack.c.b16 %v2496, %v2488
    %v3281 = vpack.c.b16 %v2497, %v2489
    %v3282 = vpack.c.b16 %v2498, %v2490
    %v3283 = vpack.c.b16 %v2499, %v2491
    %v3284 = vpack.c.b16 %v2508, %v2500
    %v3285 = vpack.c.b16 %v2509, %v2501
    %v3286 = vpack.c.b16 %v2510, %v2502
    %v3287 = vpack.c.b16 %v2511, %v2503
    %v3288 = vpack.c.b16 %v2512, %v2504
    %v3289 = vpack.c.b16 %v2513, %v2505
    %v3290 = vpack.c.b16 %v2514, %v2506
    %v3291 = vpack.c.b16 %v2515, %v2507
    %v3292 = vpack.c.b16 %v2524, %v2516
    %v3293 = vpack.c.b16 %v2525, %v2517
    %v3294 = vpack.c.b16 %v2526, %v2518
    %v3295 = vpack.c.b16 %v2527, %v2519
    %v3296 = vpack.c.b16 %v2528, %v2520
    %v3297 = vpack.c.b16 %v2529, %v2521
    %v3298 = vpack.c.b16 %v2530, %v2522
    %v3299 = vpack.c.b16 %v2531, %v2523
    %v3300 = vpack.c.b16 %v2540, %v2532
    %v3301 = vpack.c.b16 %v2541, %v2533
    %v3302 = vpack.c.b16 %v2542, %v2534
    %v3303 = vpack.c.b16 %v2543, %v2535
    %v3304 = vpack.c.b16 %v2544, %v2536
    %v3305 = vpack.c.b16 %v2545, %v2537
    %v3306 = vpack.c.b16 %v2546, %v2538
    %v3307 = vpack.c.b16 %v2547, %v2539
    %v3308 = vpack.c.b16 %v2556, %v2548
    %v3309 = vpack.c.b16 %v2557, %v2549
    %v3310 = vpack.c.b16 %v2558, %v2550
    %v3311 = vpack.c.b16 %v2559, %v2551
    %v3312 = vpack.c.b16 %v2560, %v2552
    %v3313 = vpack.c.b16 %v2561, %v2553
    %v3314 = vpack.c.b16 %v2562, %v2554
    %v3315 = vpack.c.b16 %v2563, %v2555
    %v3316 = vpack.c.b16 %v2572, %v2564
    %v3317 = vpack.c.b16 %v2573, %v2565
    %v3318 = vpack.c.b16 %v2574, %v2566
    %v3319 = vpack.c.b16 %v2575, %v2567
    %v3320 = vpack.c.b16 %v2576, %v2568
    %v3321 = vpack.c.b16 %v2577, %v2569
    %v3322 = vpack.c.b16 %v2578, %v2570
    %v3323 = vpack.c.b16 %v2579, %v2571
    %v3324 = vpack.c.b16 %v2588, %v2580
    %v3325 = vpack.c.b16 %v2589, %v2581
    %v3326 = vpack.c.b16 %v2590, %v2582
    %v3327 = vpack.c.b16 %v2591, %v2583
    %v3328 = vpack.c.b16 %v2592, %v2584
    %v3329 = vpack.c.b16 %v2593, %v2585
    %v3330 = vpack.c.b16 %v2594, %v2586
    %v3331 = vpack.c.b16 %v2595, %v2587
    %v3332 = vpack.c.b16 %v2604, %v2596
    %v3333 = vpack.c.b16 %v2605, %v2597
    %v3334 = vpack.c.b16 %v2606, %v2598
    %v3335 = vpack.c.b16 %v2607, %v2599
    %v3336 = vpack.c.b16 %v2608, %v2600
    %v3337 = vpack.c.b16 %v2609, %v2601
    %v3338 = vpack.c.b16 %v2610, %v2602
    %v3339 = vpack.c.b16 %v2611, %v2603
    %v3340 = vpack.c.b16 %v2620, %v2612
    %v3341 = vpack.c.b16 %v2621, %v2613
    %v3342 = vpack.c.b16 %v2622, %v2614
    %v3343 = vpack.c.b16 %v2623, %v2615
    %v3344 = vpack.c.b16 %v2624, %v2616
    %v3345 = vpack.c.b16 %v2625, %v2617
    %v3346 = vpack.c.b16 %v2626, %v2618
    %v3347 = vpack.c.b16 %v2627, %v2619
    %v3348 = vpack.c.b16 %v2636, %v2628
    %v3349 = vpack.c.b16 %v2637, %v2629
    %v3350 = vpack.c.b16 %v2638, %v2630
    %v3351 = vpack.c.b16 %v2639, %v2631
    %v3352 = vpack.c.b16 %v2640, %v2632
    %v3353 = vpack.c.b16 %v2641, %v2633
    %v3354 = vpack.c.b16 %v2642, %v2634
    %v3355 = vpack.c.b16 %v2643, %v2635
    %v3356 = vpack.c.b16 %v2652, %v2644
    %v3357 = vpack.c.b16 %v2653, %v2645
    %v3358 = vpack.c.b16 %v2654, %v2646
    %v3359 = vpack.c.b16 %v2655, %v2647
    %v3360 = vpack.c.b16 %v2656, %v2648
    %v3361 = vpack.c.b16 %v2657, %v2649
    %v3362 = vpack.c.b16 %v2658, %v2650
    %v3363 = vpack.c.b16 %v2659, %v2651
    %v3364 = vpack.c.b16 %v2668, %v2660
    %v3365 = vpack.c.b16 %v2669, %v2661
    %v3366 = vpack.c.b16 %v2670, %v2662
    %v3367 = vpack.c.b16 %v2671, %v2663
    %v3368 = vpack.c.b16 %v2672, %v2664
    %v3369 = vpack.c.b16 %v2673, %v2665
    %v3370 = vpack.c.b16 %v2674, %v2666
    %v3371 = vpack.c.b16 %v2675, %v2667
    %v3372 = vpack.c.b16 %v2684, %v2676
    %v3373 = vpack.c.b16 %v2685, %v2677
    %v3374 = vpack.c.b16 %v2686, %v2678
    %v3375 = vpack.c.b16 %v2687, %v2679
    %v3376 = vpack.c.b16 %v2688, %v2680
    %v3377 = vpack.c.b16 %v2689, %v2681
    %v3378 = vpack.c.b16 %v2690, %v2682
    %v3379 = vpack.c.b16 %v2691, %v2683
    %v3380 = vpack.c.b16 %v2700, %v2692
    %v3381 = vpack.c.b16 %v2701, %v2693
    %v3382 = vpack.c.b16 %v2702, %v2694
    %v3383 = vpack.c.b16 %v2703, %v2695
    %v3384 = vpack.c.b16 %v2704, %v2696
    %v3385 = vpack.c.b16 %v2705, %v2697
    %v3386 = vpack.c.b16 %v2706, %v2698
    %v3387 = vpack.c.b16 %v2707, %v2699
    %v3388 = vpack.c.b16 %v2716, %v2708
    %v3389 = vpack.c.b16 %v2717, %v2709
    %v3390 = vpack.c.b16 %v2718, %v2710
    %v3391 = vpack.c.b16 %v2719, %v2711
    %v3392 = vpack.c.b16 %v2720, %v2712
    %v3393 = vpack.c.b16 %v2721, %v2713
    %v3394 = vpack.c.b16 %v2722, %v2714
    %v3395 = vpack.c.b16 %v2723, %v2715
    %v3396 = vpack.c.b16 %v2732, %v2724
    %v3397 = vpack.c.b16 %v2733, %v2725
    %v3398 = vpack.c.b16 %v2734, %v2726
    %v3399 = vpack.c.b16 %v2735, %v2727
    %v3400 = vpack.c.b16 %v2736, %v2728
    %v3401 = vpack.c.b16 %v2737, %v2729
    %v3402 = vpack.c.b16 %v2738, %v2730
    %v3403 = vpack.c.b16 %v2739, %v2731
    %v3404 = vpack.c.b16 %v2748, %v2740
    %v3405 = vpack.c.b16 %v2749, %v2741
    %v3406 = vpack.c.b16 %v2750, %v2742
    %v3407 = vpack.c.b16 %v2751, %v2743
    %v3408 = vpack.c.b16 %v2752, %v2744
    %v3409 = vpack.c.b16 %v2753, %v2745
    %v3410 = vpack.c.b16 %v2754, %v2746
    %v3411 = vpack.c.b16 %v2755, %v2747
    %v3412 = vpack.c.b16 %v2764, %v2756
    %v3413 = vpack.c.b16 %v2765, %v2757
    %v3414 = vpack.c.b16 %v2766, %v2758
    %v3415 = vpack.c.b16 %v2767, %v2759
    %v3416 = vpack.c.b16 %v2768, %v2760
    %v3417 = vpack.c.b16 %v2769, %v2761
    %v3418 = vpack.c.b16 %v2770, %v2762
    %v3419 = vpack.c.b16 %v2771, %v2763
    %v3420 = vpack.c.b16 %v2780, %v2772
    %v3421 = vpack.c.b16 %v2781, %v2773
    %v3422 = vpack.c.b16 %v2782, %v2774
    %v3423 = vpack.c.b16 %v2783, %v2775
    %v3424 = vpack.c.b16 %v2784, %v2776
    %v3425 = vpack.c.b16 %v2785, %v2777
    %v3426 = vpack.c.b16 %v2786, %v2778
    %v3427 = vpack.c.b16 %v2787, %v2779
    %v3428 = vpack.c.b16 %v2796, %v2788
    %v3429 = vpack.c.b16 %v2797, %v2789
    %v3430 = vpack.c.b16 %v2798, %v2790
    %v3431 = vpack.c.b16 %v2799, %v2791
    %v3432 = vpack.c.b16 %v2800, %v2792
    %v3433 = vpack.c.b16 %v2801, %v2793
    %v3434 = vpack.c.b16 %v2802, %v2794
    %v3435 = vpack.c.b16 %v2803, %v2795
    %v3436 = vpack.c.b16 %v2812, %v2804
    %v3437 = vpack.c.b16 %v2813, %v2805
    %v3438 = vpack.c.b16 %v2814, %v2806
    %v3439 = vpack.c.b16 %v2815, %v2807
    %v3440 = vpack.c.b16 %v2816, %v2808
    %v3441 = vpack.c.b16 %v2817, %v2809
    %v3442 = vpack.c.b16 %v2818, %v2810
    %v3443 = vpack.c.b16 %v2819, %v2811
    %v3444 = vpack.c.b16 %v2828, %v2820
    %v3445 = vpack.c.b16 %v2829, %v2821
    %v3446 = vpack.c.b16 %v2830, %v2822
    %v3447 = vpack.c.b16 %v2831, %v2823
    %v3448 = vpack.c.b16 %v2832, %v2824
    %v3449 = vpack.c.b16 %v2833, %v2825
    %v3450 = vpack.c.b16 %v2834, %v2826
    %v3451 = vpack.c.b16 %v2835, %v2827
    %v3452 = vpack.c.b16 %v2844, %v2836
    %v3453 = vpack.c.b16 %v2845, %v2837
    %v3454 = vpack.c.b16 %v2846, %v2838
    %v3455 = vpack.c.b16 %v2847, %v2839
    %v3456 = vpack.c.b16 %v2848, %v2840
    %v3457 = vpack.c.b16 %v2849, %v2841
    %v3458 = vpack.c.b16 %v2850, %v2842
    %v3459 = vpack.c.b16 %v2851, %v2843
    %v3460 = vpack.c.b16 %v2860, %v2852
    %v3461 = vpack.c.b16 %v2861, %v2853
    %v3462 = vpack.c.b16 %v2862, %v2854
    %v3463 = vpack.c.b16 %v2863, %v2855
    %v3464 = vpack.c.b16 %v2864, %v2856
    %v3465 = vpack.c.b16 %v2865, %v2857
    %v3466 = vpack.c.b16 %v2866, %v2858
    %v3467 = vpack.c.b16 %v2867, %v2859
    %v3468 = vpack.c.b16 %v2876, %v2868
    %v3469 = vpack.c.b16 %v2877, %v2869
    %v3470 = vpack.c.b16 %v2878, %v2870
    %v3471 = vpack.c.b16 %v2879, %v2871
    %v3472 = vpack.c.b16 %v2880, %v2872
    %v3473 = vpack.c.b16 %v2881, %v2873
    %v3474 = vpack.c.b16 %v2882, %v2874
    %v3475 = vpack.c.b16 %v2883, %v2875
    %v3476 = vpack.c.b16 %v2892, %v2884
    %v3477 = vpack.c.b16 %v2893, %v2885
    %v3478 = vpack.c.b16 %v2894, %v2886
    %v3479 = vpack.c.b16 %v2895, %v2887
    %v3480 = vpack.c.b16 %v2896, %v2888
    %v3481 = vpack.c.b16 %v2897, %v2889
    %v3482 = vpack.c.b16 %v2898, %v2890
    %v3483 = vpack.c.b16 %v2899, %v2891
    %v3484 = vpack.c.b16 %v2908, %v2900
    %v3485 = vpack.c.b16 %v2909, %v2901
    %v3486 = vpack.c.b16 %v2910, %v2902
    %v3487 = vpack.c.b16 %v2911, %v2903
    %v3488 = vpack.c.b16 %v2912, %v2904
    %v3489 = vpack.c.b16 %v2913, %v2905
    %v3490 = vpack.c.b16 %v2914, %v2906
    %v3491 = vpack.c.b16 %v2915, %v2907
    %v3492 = vpack.c.b16 %v2924, %v2916
    %v3493 = vpack.c.b16 %v2925, %v2917
    %v3494 = vpack.c.b16 %v2926, %v2918
    %v3495 = vpack.c.b16 %v2927, %v2919
    %v3496 = vpack.c.b16 %v2928, %v2920
    %v3497 = vpack.c.b16 %v2929, %v2921
    %v3498 = vpack.c.b16 %v2930, %v2922
    %v3499 = vpack.c.b16 %v2931, %v2923
    %v3500 = vpack.c.b16 %v2940, %v2932
    %v3501 = vpack.c.b16 %v2941, %v2933
    %v3502 = vpack.c.b16 %v2942, %v2934
    %v3503 = vpack.c.b16 %v2943, %v2935
    %v3504 = vpack.c.b16 %v2944, %v2936
    %v3505 = vpack.c.b16 %v2945, %v2937
    %v3506 = vpack.c.b16 %v2946, %v2938
    %v3507 = vpack.c.b16 %v2947, %v2939
    %v3508 = vpack.c.b16 %v2956, %v2948
    %v3509 = vpack.c.b16 %v2957, %v2949
    %v3510 = vpack.c.b16 %v2958, %v2950
    %v3511 = vpack.c.b16 %v2959, %v2951
    %v3512 = vpack.c.b16 %v2960, %v2952
    %v3513 = vpack.c.b16 %v2961, %v2953
    %v3514 = vpack.c.b16 %v2962, %v2954
    %v3515 = vpack.c.b16 %v2963, %v2955
    %v3516 = vpack.c.b16 %v2972, %v2964
    %v3517 = vpack.c.b16 %v2973, %v2965
    %v3518 = vpack.c.b16 %v2974, %v2966
    %v3519 = vpack.c.b16 %v2975, %v2967
    %v3520 = vpack.c.b16 %v2976, %v2968
    %v3521 = vpack.c.b16 %v2977, %v2969
    %v3522 = vpack.c.b16 %v2978, %v2970
    %v3523 = vpack.c.b16 %v2979, %v2971
    %v3524 = vpack.c.b16 %v2988, %v2980
    %v3525 = vpack.c.b16 %v2989, %v2981
    %v3526 = vpack.c.b16 %v2990, %v2982
    %v3527 = vpack.c.b16 %v2991, %v2983
    %v3528 = vpack.c.b16 %v2992, %v2984
    %v3529 = vpack.c.b16 %v2993, %v2985
    %v3530 = vpack.c.b16 %v2994, %v2986
    %v3531 = vpack.c.b16 %v2995, %v2987
    %v3532 = vpack.c.b16 %v3004, %v2996
    %v3533 = vpack.c.b16 %v3005, %v2997
    %v3534 = vpack.c.b16 %v3006, %v2998
    %v3535 = vpack.c.b16 %v3007, %v2999
    %v3536 = vpack.c.b16 %v3008, %v3000
    %v3537 = vpack.c.b16 %v3009, %v3001
    %v3538 = vpack.c.b16 %v3010, %v3002
    %v3539 = vpack.c.b16 %v3011, %v3003
    %v3540 = vpack.c.b16 %v3020, %v3012
    %v3541 = vpack.c.b16 %v3021, %v3013
    %v3542 = vpack.c.b16 %v3022, %v3014
    %v3543 = vpack.c.b16 %v3023, %v3015
    %v3544 = vpack.c.b16 %v3024, %v3016
    %v3545 = vpack.c.b16 %v3025, %v3017
    %v3546 = vpack.c.b16 %v3026, %v3018
    %v3547 = vpack.c.b16 %v3027, %v3019
    %v3548 = vpack.c.b16 %v3036, %v3028
    %v3549 = vpack.c.b16 %v3037, %v3029
    %v3550 = vpack.c.b16 %v3038, %v3030
    %v3551 = vpack.c.b16 %v3039, %v3031
    %v3552 = vpack.c.b16 %v3040, %v3032
    %v3553 = vpack.c.b16 %v3041, %v3033
    %v3554 = vpack.c.b16 %v3042, %v3034
    %v3555 = vpack.c.b16 %v3043, %v3035
    %4068 = vmatprep.subr.bf16.mxu0 %v3045
    %4069 = vmatpush1.bf16.msra.mxu0 %v3044
    %4070 = vmatprep.subr.bf16.mxu0 %v3053
    %4071 = vmatpush1.bf16.msra.mxu0 %v3052
    %4072 = vmatprep.subr.bf16.mxu0 %v3061
    %4073 = vmatpush1.bf16.msra.mxu0 %v3060
    %4074 = vmatprep.subr.bf16.mxu0 %v3069
    %4075 = vmatpush1.bf16.msra.mxu0 %v3068
    %4076 = vmatprep.subr.bf16.mxu0 %v3077
    %4077 = vmatpush1.bf16.msra.mxu0 %v3076
    %4078 = vmatprep.subr.bf16.mxu0 %v3085
    %4079 = vmatpush1.bf16.msra.mxu0 %v3084
    %4080 = vmatprep.subr.bf16.mxu0 %v3093
    %4081 = vmatpush1.bf16.msra.mxu0 %v3092
    %4082 = vmatprep.subr.bf16.mxu0 %v3101
    %4083 = vmatpush1.bf16.msra.mxu0 %v3100
    %4084 = vmatprep.subr.bf16.mxu0 %v3109
    %4085 = vmatpush1.bf16.msra.mxu0 %v3108
    %4086 = vmatprep.subr.bf16.mxu0 %v3117
    %4087 = vmatpush1.bf16.msra.mxu0 %v3116
    %4088 = vmatprep.subr.bf16.mxu0 %v3125
    %4089 = vmatpush1.bf16.msra.mxu0 %v3124
    %4090 = vmatprep.subr.bf16.mxu0 %v3133
    %4091 = vmatpush1.bf16.msra.mxu0 %v3132
    %4092 = vmatprep.subr.bf16.mxu0 %v3141
    %4093 = vmatpush1.bf16.msra.mxu0 %v3140
    %4094 = vmatprep.subr.bf16.mxu0 %v3149
    %4095 = vmatpush1.bf16.msra.mxu0 %v3148
    %4096 = vmatprep.subr.bf16.mxu0 %v3157
    %4097 = vmatpush1.bf16.msra.mxu0 %v3156
    %4098 = vmatprep.subr.bf16.mxu0 %v3165
    %4099 = vmatpush1.bf16.msra.mxu0 %v3164
    %4100 = vmatprep.mubr.bf16.mxu0 %v947
    %4101 = vmatmul.mubr.bf16.gmra.mrb[0].mxu0 %v946
    %v4102 = vpop.f32.mrb[0].mxu0
    %v4103 = vadd.f32 %v1471, %v4102
    %v4104 = vpop.f32.mrb[0].mxu0
    %v4105 = vadd.f32 %v1475, %v4104
    %v4106 = vpop.f32.mrb[0].mxu0
    %v4107 = vpop.f32.mrb[0].mxu0
    %4108 = vdwg.mxu0
    %4109 = vmatprep.subr.bf16.mxu0 %v3173
    %4110 = vmatpush1.bf16.msra.mxu0 %v3172
    %4111 = vmatprep.subr.bf16.mxu0 %v3181
    %4112 = vmatpush1.bf16.msra.mxu0 %v3180
    %4113 = vmatprep.subr.bf16.mxu0 %v3189
    %4114 = vmatpush1.bf16.msra.mxu0 %v3188
    %4115 = vmatprep.subr.bf16.mxu0 %v3197
    %4116 = vmatpush1.bf16.msra.mxu0 %v3196
    %4117 = vmatprep.subr.bf16.mxu0 %v3205
    %4118 = vmatpush1.bf16.msra.mxu0 %v3204
    %4119 = vmatprep.subr.bf16.mxu0 %v3213
    %4120 = vmatpush1.bf16.msra.mxu0 %v3212
    %4121 = vmatprep.subr.bf16.mxu0 %v3221
    %4122 = vmatpush1.bf16.msra.mxu0 %v3220
    %4123 = vmatprep.subr.bf16.mxu0 %v3229
    %4124 = vmatpush1.bf16.msra.mxu0 %v3228
    %4125 = vmatprep.subr.bf16.mxu0 %v3237
    %4126 = vmatpush1.bf16.msra.mxu0 %v3236
    %4127 = vmatprep.subr.bf16.mxu0 %v3245
    %4128 = vmatpush1.bf16.msra.mxu0 %v3244
    %4129 = vmatprep.subr.bf16.mxu0 %v3253
    %4130 = vmatpush1.bf16.msra.mxu0 %v3252
    %4131 = vmatprep.subr.bf16.mxu0 %v3261
    %4132 = vmatpush1.bf16.msra.mxu0 %v3260
    %4133 = vmatprep.subr.bf16.mxu0 %v3269
    %4134 = vmatpush1.bf16.msra.mxu0 %v3268
    %4135 = vmatprep.subr.bf16.mxu0 %v3277
    %4136 = vmatpush1.bf16.msra.mxu0 %v3276
    %4137 = vmatprep.subr.bf16.mxu0 %v3285
    %4138 = vmatpush1.bf16.msra.mxu0 %v3284
    %4139 = vmatprep.subr.bf16.mxu0 %v3293
    %4140 = vmatpush1.bf16.msra.mxu0 %v3292
    %4141 = vmatprep.mubr.bf16.mxu0 %v949
    %4142 = vmatmul.mubr.bf16.gmra.mrb[0].mxu0 %v948
    %v4143 = vpop.f32.mrb[0].mxu0
    %v4144 = vadd.f32 %v4103, %v4143
    %v4145 = vpop.f32.mrb[0].mxu0
    %v4146 = vadd.f32 %v4105, %v4145
    %v4147 = vpop.f32.mrb[0].mxu0
    %v4148 = vpop.f32.mrb[0].mxu0
    %4149 = vdwg.mxu0
    %4150 = vmatprep.subr.bf16.mxu0 %v3301
    %4151 = vmatpush1.bf16.msra.mxu0 %v3300
    %4152 = vmatprep.subr.bf16.mxu0 %v3309
    %4153 = vmatpush1.bf16.msra.mxu0 %v3308
    %4154 = vmatprep.subr.bf16.mxu0 %v3317
    %4155 = vmatpush1.bf16.msra.mxu0 %v3316
    %4156 = vmatprep.subr.bf16.mxu0 %v3325
    %4157 = vmatpush1.bf16.msra.mxu0 %v3324
    %4158 = vmatprep.subr.bf16.mxu0 %v3333
    %4159 = vmatpush1.bf16.msra.mxu0 %v3332
    %4160 = vmatprep.subr.bf16.mxu0 %v3341
    %4161 = vmatpush1.bf16.msra.mxu0 %v3340
    %4162 = vmatprep.subr.bf16.mxu0 %v3349
    %4163 = vmatpush1.bf16.msra.mxu0 %v3348
    %4164 = vmatprep.subr.bf16.mxu0 %v3357
    %4165 = vmatpush1.bf16.msra.mxu0 %v3356
    %4166 = vmatprep.subr.bf16.mxu0 %v3365
    %4167 = vmatpush1.bf16.msra.mxu0 %v3364
    %4168 = vmatprep.subr.bf16.mxu0 %v3373
    %4169 = vmatpush1.bf16.msra.mxu0 %v3372
    %4170 = vmatprep.subr.bf16.mxu0 %v3381
    %4171 = vmatpush1.bf16.msra.mxu0 %v3380
    %4172 = vmatprep.subr.bf16.mxu0 %v3389
    %4173 = vmatpush1.bf16.msra.mxu0 %v3388
    %4174 = vmatprep.subr.bf16.mxu0 %v3397
    %4175 = vmatpush1.bf16.msra.mxu0 %v3396
    %4176 = vmatprep.subr.bf16.mxu0 %v3405
    %4177 = vmatpush1.bf16.msra.mxu0 %v3404
    %4178 = vmatprep.subr.bf16.mxu0 %v3413
    %4179 = vmatpush1.bf16.msra.mxu0 %v3412
    %4180 = vmatprep.subr.bf16.mxu0 %v3421
    %4181 = vmatpush1.bf16.msra.mxu0 %v3420
    %4182 = vmatprep.mubr.bf16.mxu0 %v951
    %4183 = vmatmul.mubr.bf16.gmra.mrb[0].mxu0 %v950
    %v4184 = vpop.f32.mrb[0].mxu0
    %v4185 = vadd.f32 %v4144, %v4184
    %v4186 = vpop.f32.mrb[0].mxu0
    %v4187 = vadd.f32 %v4146, %v4186
    %v4188 = vpop.f32.mrb[0].mxu0
    %v4189 = vpop.f32.mrb[0].mxu0
    %4190 = vdwg.mxu0
    %4191 = vmatprep.subr.bf16.mxu0 %v3429
    %4192 = vmatpush1.bf16.msra.mxu0 %v3428
    %4193 = vmatprep.subr.bf16.mxu0 %v3437
    %4194 = vmatpush1.bf16.msra.mxu0 %v3436
    %4195 = vmatprep.subr.bf16.mxu0 %v3445
    %4196 = vmatpush1.bf16.msra.mxu0 %v3444
    %4197 = vmatprep.subr.bf16.mxu0 %v3453
    %4198 = vmatpush1.bf16.msra.mxu0 %v3452
    %4199 = vmatprep.subr.bf16.mxu0 %v3461
    %4200 = vmatpush1.bf16.msra.mxu0 %v3460
    %4201 = vmatprep.subr.bf16.mxu0 %v3469
    %4202 = vmatpush1.bf16.msra.mxu0 %v3468
    %4203 = vmatprep.subr.bf16.mxu0 %v3477
    %4204 = vmatpush1.bf16.msra.mxu0 %v3476
    %4205 = vmatprep.subr.bf16.mxu0 %v3485
    %4206 = vmatpush1.bf16.msra.mxu0 %v3484
    %4207 = vmatprep.subr.bf16.mxu0 %v3493
    %4208 = vmatpush1.bf16.msra.mxu0 %v3492
    %4209 = vmatprep.subr.bf16.mxu0 %v3501
    %4210 = vmatpush1.bf16.msra.mxu0 %v3500
    %4211 = vmatprep.subr.bf16.mxu0 %v3509
    %4212 = vmatpush1.bf16.msra.mxu0 %v3508
    %4213 = vmatprep.subr.bf16.mxu0 %v3517
    %4214 = vmatpush1.bf16.msra.mxu0 %v3516
    %4215 = vmatprep.subr.bf16.mxu0 %v3525
    %4216 = vmatpush1.bf16.msra.mxu0 %v3524
    %4217 = vmatprep.subr.bf16.mxu0 %v3533
    %4218 = vmatpush1.bf16.msra.mxu0 %v3532
    %4219 = vmatprep.subr.bf16.mxu0 %v3541
    %4220 = vmatpush1.bf16.msra.mxu0 %v3540
    %4221 = vmatprep.subr.bf16.mxu0 %v3549
    %4222 = vmatpush1.bf16.msra.mxu0 %v3548
    %4223 = vmatprep.mubr.bf16.mxu0 %v953
    %4224 = vmatmul.mubr.bf16.gmra.mrb[0].mxu0 %v952
    %v4225 = vpop.f32.mrb[0].mxu0
    %v4226 = vadd.f32 %v4185, %v4225
    %v4227 = vpop.f32.mrb[0].mxu0
    %v4228 = vadd.f32 %v4187, %v4227
    %v4229 = vpop.f32.mrb[0].mxu0
    %v4230 = vpop.f32.mrb[0].mxu0
    %4231 = vdwg.mxu0
    %4232 = vmatprep.subr.bf16.mxu0 %v3047
    %4233 = vmatpush1.bf16.msra.mxu0 %v3046
    %4234 = vmatprep.subr.bf16.mxu0 %v3055
    %4235 = vmatpush1.bf16.msra.mxu0 %v3054
    %4236 = vmatprep.subr.bf16.mxu0 %v3063
    %4237 = vmatpush1.bf16.msra.mxu0 %v3062
    %4238 = vmatprep.subr.bf16.mxu0 %v3071
    %4239 = vmatpush1.bf16.msra.mxu0 %v3070
    %4240 = vmatprep.subr.bf16.mxu0 %v3079
    %4241 = vmatpush1.bf16.msra.mxu0 %v3078
    %4242 = vmatprep.subr.bf16.mxu0 %v3087
    %4243 = vmatpush1.bf16.msra.mxu0 %v3086
    %4244 = vmatprep.subr.bf16.mxu0 %v3095
    %4245 = vmatpush1.bf16.msra.mxu0 %v3094
    %4246 = vmatprep.subr.bf16.mxu0 %v3103
    %4247 = vmatpush1.bf16.msra.mxu0 %v3102
    %4248 = vmatprep.subr.bf16.mxu0 %v3111
    %4249 = vmatpush1.bf16.msra.mxu0 %v3110
    %4250 = vmatprep.subr.bf16.mxu0 %v3119
    %4251 = vmatpush1.bf16.msra.mxu0 %v3118
    %4252 = vmatprep.subr.bf16.mxu0 %v3127
    %4253 = vmatpush1.bf16.msra.mxu0 %v3126
    %4254 = vmatprep.subr.bf16.mxu0 %v3135
    %4255 = vmatpush1.bf16.msra.mxu0 %v3134
    %4256 = vmatprep.subr.bf16.mxu0 %v3143
    %4257 = vmatpush1.bf16.msra.mxu0 %v3142
    %4258 = vmatprep.subr.bf16.mxu0 %v3151
    %4259 = vmatpush1.bf16.msra.mxu0 %v3150
    %4260 = vmatprep.subr.bf16.mxu0 %v3159
    %4261 = vmatpush1.bf16.msra.mxu0 %v3158
    %4262 = vmatprep.subr.bf16.mxu0 %v3167
    %4263 = vmatpush1.bf16.msra.mxu0 %v3166
    %4264 = vmatprep.mubr.bf16.mxu0 %v947
    %4265 = vmatmul.mubr.bf16.gmra.mrb[0].mxu0 %v946
    %v4266 = vpop.f32.mrb[0].mxu0
    %v4267 = vadd.f32 %v1479, %v4266
    %v4268 = vpop.f32.mrb[0].mxu0
    %v4269 = vadd.f32 %v1483, %v4268
    %v4270 = vpop.f32.mrb[0].mxu0
    %v4271 = vpop.f32.mrb[0].mxu0
    %4272 = vdwg.mxu0
    %4273 = vmatprep.subr.bf16.mxu0 %v3175
    %4274 = vmatpush1.bf16.msra.mxu0 %v3174
    %4275 = vmatprep.subr.bf16.mxu0 %v3183
    %4276 = vmatpush1.bf16.msra.mxu0 %v3182
    %4277 = vmatprep.subr.bf16.mxu0 %v3191
    %4278 = vmatpush1.bf16.msra.mxu0 %v3190
    %4279 = vmatprep.subr.bf16.mxu0 %v3199
    %4280 = vmatpush1.bf16.msra.mxu0 %v3198
    %4281 = vmatprep.subr.bf16.mxu0 %v3207
    %4282 = vmatpush1.bf16.msra.mxu0 %v3206
    %4283 = vmatprep.subr.bf16.mxu0 %v3215
    %4284 = vmatpush1.bf16.msra.mxu0 %v3214
    %4285 = vmatprep.subr.bf16.mxu0 %v3223
    %4286 = vmatpush1.bf16.msra.mxu0 %v3222
    %4287 = vmatprep.subr.bf16.mxu0 %v3231
    %4288 = vmatpush1.bf16.msra.mxu0 %v3230
    %4289 = vmatprep.subr.bf16.mxu0 %v3239
    %4290 = vmatpush1.bf16.msra.mxu0 %v3238
    %4291 = vmatprep.subr.bf16.mxu0 %v3247
    %4292 = vmatpush1.bf16.msra.mxu0 %v3246
    %4293 = vmatprep.subr.bf16.mxu0 %v3255
    %4294 = vmatpush1.bf16.msra.mxu0 %v3254
    %4295 = vmatprep.subr.bf16.mxu0 %v3263
    %4296 = vmatpush1.bf16.msra.mxu0 %v3262
    %4297 = vmatprep.subr.bf16.mxu0 %v3271
    %4298 = vmatpush1.bf16.msra.mxu0 %v3270
    %4299 = vmatprep.subr.bf16.mxu0 %v3279
    %4300 = vmatpush1.bf16.msra.mxu0 %v3278
    %4301 = vmatprep.subr.bf16.mxu0 %v3287
    %4302 = vmatpush1.bf16.msra.mxu0 %v3286
    %4303 = vmatprep.subr.bf16.mxu0 %v3295
    %4304 = vmatpush1.bf16.msra.mxu0 %v3294
    %4305 = vmatprep.mubr.bf16.mxu0 %v949
    %4306 = vmatmul.mubr.bf16.gmra.mrb[0].mxu0 %v948
    %v4307 = vpop.f32.mrb[0].mxu0
    %v4308 = vadd.f32 %v4267, %v4307
    %v4309 = vpop.f32.mrb[0].mxu0
    %v4310 = vadd.f32 %v4269, %v4309
    %v4311 = vpop.f32.mrb[0].mxu0
    %v4312 = vpop.f32.mrb[0].mxu0
    %4313 = vdwg.mxu0
    %4314 = vmatprep.subr.bf16.mxu0 %v3303
    %4315 = vmatpush1.bf16.msra.mxu0 %v3302
    %4316 = vmatprep.subr.bf16.mxu0 %v3311
    %4317 = vmatpush1.bf16.msra.mxu0 %v3310
    %4318 = vmatprep.subr.bf16.mxu0 %v3319
    %4319 = vmatpush1.bf16.msra.mxu0 %v3318
    %4320 = vmatprep.subr.bf16.mxu0 %v3327
    %4321 = vmatpush1.bf16.msra.mxu0 %v3326
    %4322 = vmatprep.subr.bf16.mxu0 %v3335
    %4323 = vmatpush1.bf16.msra.mxu0 %v3334
    %4324 = vmatprep.subr.bf16.mxu0 %v3343
    %4325 = vmatpush1.bf16.msra.mxu0 %v3342
    %4326 = vmatprep.subr.bf16.mxu0 %v3351
    %4327 = vmatpush1.bf16.msra.mxu0 %v3350
    %4328 = vmatprep.subr.bf16.mxu0 %v3359
    %4329 = vmatpush1.bf16.msra.mxu0 %v3358
    %4330 = vmatprep.subr.bf16.mxu0 %v3367
    %4331 = vmatpush1.bf16.msra.mxu0 %v3366
    %4332 = vmatprep.subr.bf16.mxu0 %v3375
    %4333 = vmatpush1.bf16.msra.mxu0 %v3374
    %4334 = vmatprep.subr.bf16.mxu0 %v3383
    %4335 = vmatpush1.bf16.msra.mxu0 %v3382
    %4336 = vmatprep.subr.bf16.mxu0 %v3391
    %4337 = vmatpush1.bf16.msra.mxu0 %v3390
    %4338 = vmatprep.subr.bf16.mxu0 %v3399
    %4339 = vmatpush1.bf16.msra.mxu0 %v3398
    %4340 = vmatprep.subr.bf16.mxu0 %v3407
    %4341 = vmatpush1.bf16.msra.mxu0 %v3406
    %4342 = vmatprep.subr.bf16.mxu0 %v3415
    %4343 = vmatpush1.bf16.msra.mxu0 %v3414
    %4344 = vmatprep.subr.bf16.mxu0 %v3423
    %4345 = vmatpush1.bf16.msra.mxu0 %v3422
    %4346 = vmatprep.mubr.bf16.mxu0 %v951
    %4347 = vmatmul.mubr.bf16.gmra.mrb[0].mxu0 %v950
    %v4348 = vpop.f32.mrb[0].mxu0
    %v4349 = vadd.f32 %v4308, %v4348
    %v4350 = vpop.f32.mrb[0].mxu0
    %v4351 = vadd.f32 %v4310, %v4350
    %v4352 = vpop.f32.mrb[0].mxu0
    %v4353 = vpop.f32.mrb[0].mxu0
    %4354 = vdwg.mxu0
    %4355 = vmatprep.subr.bf16.mxu0 %v3431
    %4356 = vmatpush1.bf16.msra.mxu0 %v3430
    %4357 = vmatprep.subr.bf16.mxu0 %v3439
    %4358 = vmatpush1.bf16.msra.mxu0 %v3438
    %4359 = vmatprep.subr.bf16.mxu0 %v3447
    %4360 = vmatpush1.bf16.msra.mxu0 %v3446
    %4361 = vmatprep.subr.bf16.mxu0 %v3455
    %4362 = vmatpush1.bf16.msra.mxu0 %v3454
    %4363 = vmatprep.subr.bf16.mxu0 %v3463
    %4364 = vmatpush1.bf16.msra.mxu0 %v3462
    %4365 = vmatprep.subr.bf16.mxu0 %v3471
    %4366 = vmatpush1.bf16.msra.mxu0 %v3470
    %4367 = vmatprep.subr.bf16.mxu0 %v3479
    %4368 = vmatpush1.bf16.msra.mxu0 %v3478
    %4369 = vmatprep.subr.bf16.mxu0 %v3487
    %4370 = vmatpush1.bf16.msra.mxu0 %v3486
    %4371 = vmatprep.subr.bf16.mxu0 %v3495
    %4372 = vmatpush1.bf16.msra.mxu0 %v3494
    %4373 = vmatprep.subr.bf16.mxu0 %v3503
    %4374 = vmatpush1.bf16.msra.mxu0 %v3502
    %4375 = vmatprep.subr.bf16.mxu0 %v3511
    %4376 = vmatpush1.bf16.msra.mxu0 %v3510
    %4377 = vmatprep.subr.bf16.mxu0 %v3519
    %4378 = vmatpush1.bf16.msra.mxu0 %v3518
    %4379 = vmatprep.subr.bf16.mxu0 %v3527
    %4380 = vmatpush1.bf16.msra.mxu0 %v3526
    %4381 = vmatprep.subr.bf16.mxu0 %v3535
    %4382 = vmatpush1.bf16.msra.mxu0 %v3534
    %4383 = vmatprep.subr.bf16.mxu0 %v3543
    %4384 = vmatpush1.bf16.msra.mxu0 %v3542
    %4385 = vmatprep.subr.bf16.mxu0 %v3551
    %4386 = vmatpush1.bf16.msra.mxu0 %v3550
    %4387 = vmatprep.mubr.bf16.mxu0 %v953
    %4388 = vmatmul.mubr.bf16.gmra.mrb[0].mxu0 %v952
    %v4389 = vpop.f32.mrb[0].mxu0
    %v4390 = vadd.f32 %v4349, %v4389
    %v4391 = vpop.f32.mrb[0].mxu0
    %v4392 = vadd.f32 %v4351, %v4391
    %v4393 = vpop.f32.mrb[0].mxu0
    %v4394 = vpop.f32.mrb[0].mxu0
    %4395 = vdwg.mxu0
    %4396 = vmatprep.subr.bf16.mxu0 %v3049
    %4397 = vmatpush1.bf16.msra.mxu0 %v3048
    %4398 = vmatprep.subr.bf16.mxu0 %v3057
    %4399 = vmatpush1.bf16.msra.mxu0 %v3056
    %4400 = vmatprep.subr.bf16.mxu0 %v3065
    %4401 = vmatpush1.bf16.msra.mxu0 %v3064
    %4402 = vmatprep.subr.bf16.mxu0 %v3073
    %4403 = vmatpush1.bf16.msra.mxu0 %v3072
    %4404 = vmatprep.subr.bf16.mxu0 %v3081
    %4405 = vmatpush1.bf16.msra.mxu0 %v3080
    %4406 = vmatprep.subr.bf16.mxu0 %v3089
    %4407 = vmatpush1.bf16.msra.mxu0 %v3088
    %4408 = vmatprep.subr.bf16.mxu0 %v3097
    %4409 = vmatpush1.bf16.msra.mxu0 %v3096
    %4410 = vmatprep.subr.bf16.mxu0 %v3105
    %4411 = vmatpush1.bf16.msra.mxu0 %v3104
    %4412 = vmatprep.subr.bf16.mxu0 %v3113
    %4413 = vmatpush1.bf16.msra.mxu0 %v3112
    %4414 = vmatprep.subr.bf16.mxu0 %v3121
    %4415 = vmatpush1.bf16.msra.mxu0 %v3120
    %4416 = vmatprep.subr.bf16.mxu0 %v3129
    %4417 = vmatpush1.bf16.msra.mxu0 %v3128
    %4418 = vmatprep.subr.bf16.mxu0 %v3137
    %4419 = vmatpush1.bf16.msra.mxu0 %v3136
    %4420 = vmatprep.subr.bf16.mxu0 %v3145
    %4421 = vmatpush1.bf16.msra.mxu0 %v3144
    %4422 = vmatprep.subr.bf16.mxu0 %v3153
    %4423 = vmatpush1.bf16.msra.mxu0 %v3152
    %4424 = vmatprep.subr.bf16.mxu0 %v3161
    %4425 = vmatpush1.bf16.msra.mxu0 %v3160
    %4426 = vmatprep.subr.bf16.mxu0 %v3169
    %4427 = vmatpush1.bf16.msra.mxu0 %v3168
    %4428 = vmatprep.mubr.bf16.mxu0 %v947
    %4429 = vmatmul.mubr.bf16.gmra.mrb[0].mxu0 %v946
    %v4430 = vpop.f32.mrb[0].mxu0
    %v4431 = vadd.f32 %v1487, %v4430
    %v4432 = vpop.f32.mrb[0].mxu0
    %v4433 = vadd.f32 %v1491, %v4432
    %v4434 = vpop.f32.mrb[0].mxu0
    %v4435 = vpop.f32.mrb[0].mxu0
    %4436 = vdwg.mxu0
    %4437 = vmatprep.subr.bf16.mxu0 %v3177
    %4438 = vmatpush1.bf16.msra.mxu0 %v3176
    %4439 = vmatprep.subr.bf16.mxu0 %v3185
    %4440 = vmatpush1.bf16.msra.mxu0 %v3184
    %4441 = vmatprep.subr.bf16.mxu0 %v3193
    %4442 = vmatpush1.bf16.msra.mxu0 %v3192
    %4443 = vmatprep.subr.bf16.mxu0 %v3201
    %4444 = vmatpush1.bf16.msra.mxu0 %v3200
    %4445 = vmatprep.subr.bf16.mxu0 %v3209
    %4446 = vmatpush1.bf16.msra.mxu0 %v3208
    %4447 = vmatprep.subr.bf16.mxu0 %v3217
    %4448 = vmatpush1.bf16.msra.mxu0 %v3216
    %4449 = vmatprep.subr.bf16.mxu0 %v3225
    %4450 = vmatpush1.bf16.msra.mxu0 %v3224
    %4451 = vmatprep.subr.bf16.mxu0 %v3233
    %4452 = vmatpush1.bf16.msra.mxu0 %v3232
    %4453 = vmatprep.subr.bf16.mxu0 %v3241
    %4454 = vmatpush1.bf16.msra.mxu0 %v3240
    %4455 = vmatprep.subr.bf16.mxu0 %v3249
    %4456 = vmatpush1.bf16.msra.mxu0 %v3248
    %4457 = vmatprep.subr.bf16.mxu0 %v3257
    %4458 = vmatpush1.bf16.msra.mxu0 %v3256
    %4459 = vmatprep.subr.bf16.mxu0 %v3265
    %4460 = vmatpush1.bf16.msra.mxu0 %v3264
    %4461 = vmatprep.subr.bf16.mxu0 %v3273
    %4462 = vmatpush1.bf16.msra.mxu0 %v3272
    %4463 = vmatprep.subr.bf16.mxu0 %v3281
    %4464 = vmatpush1.bf16.msra.mxu0 %v3280
    %4465 = vmatprep.subr.bf16.mxu0 %v3289
    %4466 = vmatpush1.bf16.msra.mxu0 %v3288
    %4467 = vmatprep.subr.bf16.mxu0 %v3297
    %4468 = vmatpush1.bf16.msra.mxu0 %v3296
    %4469 = vmatprep.mubr.bf16.mxu0 %v949
    %4470 = vmatmul.mubr.bf16.gmra.mrb[0].mxu0 %v948
    %v4471 = vpop.f32.mrb[0].mxu0
    %v4472 = vadd.f32 %v4431, %v4471
    %v4473 = vpop.f32.mrb[0].mxu0
    %v4474 = vadd.f32 %v4433, %v4473
    %v4475 = vpop.f32.mrb[0].mxu0
    %v4476 = vpop.f32.mrb[0].mxu0
    %4477 = vdwg.mxu0
    %4478 = vmatprep.subr.bf16.mxu0 %v3305
    %4479 = vmatpush1.bf16.msra.mxu0 %v3304
    %4480 = vmatprep.subr.bf16.mxu0 %v3313
    %4481 = vmatpush1.bf16.msra.mxu0 %v3312
    %4482 = vmatprep.subr.bf16.mxu0 %v3321
    %4483 = vmatpush1.bf16.msra.mxu0 %v3320
    %4484 = vmatprep.subr.bf16.mxu0 %v3329
    %4485 = vmatpush1.bf16.msra.mxu0 %v3328
    %4486 = vmatprep.subr.bf16.mxu0 %v3337
    %4487 = vmatpush1.bf16.msra.mxu0 %v3336
    %4488 = vmatprep.subr.bf16.mxu0 %v3345
    %4489 = vmatpush1.bf16.msra.mxu0 %v3344
    %4490 = vmatprep.subr.bf16.mxu0 %v3353
    %4491 = vmatpush1.bf16.msra.mxu0 %v3352
    %4492 = vmatprep.subr.bf16.mxu0 %v3361
    %4493 = vmatpush1.bf16.msra.mxu0 %v3360
    %4494 = vmatprep.subr.bf16.mxu0 %v3369
    %4495 = vmatpush1.bf16.msra.mxu0 %v3368
    %4496 = vmatprep.subr.bf16.mxu0 %v3377
    %4497 = vmatpush1.bf16.msra.mxu0 %v3376
    %4498 = vmatprep.subr.bf16.mxu0 %v3385
    %4499 = vmatpush1.bf16.msra.mxu0 %v3384
    %4500 = vmatprep.subr.bf16.mxu0 %v3393
    %4501 = vmatpush1.bf16.msra.mxu0 %v3392
    %4502 = vmatprep.subr.bf16.mxu0 %v3401
    %4503 = vmatpush1.bf16.msra.mxu0 %v3400
    %4504 = vmatprep.subr.bf16.mxu0 %v3409
    %4505 = vmatpush1.bf16.msra.mxu0 %v3408
    %4506 = vmatprep.subr.bf16.mxu0 %v3417
    %4507 = vmatpush1.bf16.msra.mxu0 %v3416
    %4508 = vmatprep.subr.bf16.mxu0 %v3425
    %4509 = vmatpush1.bf16.msra.mxu0 %v3424
    %4510 = vmatprep.mubr.bf16.mxu0 %v951
    %4511 = vmatmul.mubr.bf16.gmra.mrb[0].mxu0 %v950
    %v4512 = vpop.f32.mrb[0].mxu0
    %v4513 = vadd.f32 %v4472, %v4512
    %v4514 = vpop.f32.mrb[0].mxu0
    %v4515 = vadd.f32 %v4474, %v4514
    %v4516 = vpop.f32.mrb[0].mxu0
    %v4517 = vpop.f32.mrb[0].mxu0
    %4518 = vdwg.mxu0
    %4519 = vmatprep.subr.bf16.mxu0 %v3433
    %4520 = vmatpush1.bf16.msra.mxu0 %v3432
    %4521 = vmatprep.subr.bf16.mxu0 %v3441
    %4522 = vmatpush1.bf16.msra.mxu0 %v3440
    %4523 = vmatprep.subr.bf16.mxu0 %v3449
    %4524 = vmatpush1.bf16.msra.mxu0 %v3448
    %4525 = vmatprep.subr.bf16.mxu0 %v3457
    %4526 = vmatpush1.bf16.msra.mxu0 %v3456
    %4527 = vmatprep.subr.bf16.mxu0 %v3465
    %4528 = vmatpush1.bf16.msra.mxu0 %v3464
    %4529 = vmatprep.subr.bf16.mxu0 %v3473
    %4530 = vmatpush1.bf16.msra.mxu0 %v3472
    %4531 = vmatprep.subr.bf16.mxu0 %v3481
    %4532 = vmatpush1.bf16.msra.mxu0 %v3480
    %4533 = vmatprep.subr.bf16.mxu0 %v3489
    %4534 = vmatpush1.bf16.msra.mxu0 %v3488
    %4535 = vmatprep.subr.bf16.mxu0 %v3497
    %4536 = vmatpush1.bf16.msra.mxu0 %v3496
    %4537 = vmatprep.subr.bf16.mxu0 %v3505
    %4538 = vmatpush1.bf16.msra.mxu0 %v3504
    %4539 = vmatprep.subr.bf16.mxu0 %v3513
    %4540 = vmatpush1.bf16.msra.mxu0 %v3512
    %4541 = vmatprep.subr.bf16.mxu0 %v3521
    %4542 = vmatpush1.bf16.msra.mxu0 %v3520
    %4543 = vmatprep.subr.bf16.mxu0 %v3529
    %4544 = vmatpush1.bf16.msra.mxu0 %v3528
    %4545 = vmatprep.subr.bf16.mxu0 %v3537
    %4546 = vmatpush1.bf16.msra.mxu0 %v3536
    %4547 = vmatprep.subr.bf16.mxu0 %v3545
    %4548 = vmatpush1.bf16.msra.mxu0 %v3544
    %4549 = vmatprep.subr.bf16.mxu0 %v3553
    %4550 = vmatpush1.bf16.msra.mxu0 %v3552
    %4551 = vmatprep.mubr.bf16.mxu0 %v953
    %4552 = vmatmul.mubr.bf16.gmra.mrb[0].mxu0 %v952
    %v4553 = vpop.f32.mrb[0].mxu0
    %v4554 = vadd.f32 %v4513, %v4553
    %v4555 = vpop.f32.mrb[0].mxu0
    %v4556 = vadd.f32 %v4515, %v4555
    %v4557 = vpop.f32.mrb[0].mxu0
    %v4558 = vpop.f32.mrb[0].mxu0
    %4559 = vdwg.mxu0
    %4560 = vmatprep.subr.bf16.mxu0 %v3051
    %4561 = vmatpush1.bf16.msra.mxu0 %v3050
    %4562 = vmatprep.subr.bf16.mxu0 %v3059
    %4563 = vmatpush1.bf16.msra.mxu0 %v3058
    %4564 = vmatprep.subr.bf16.mxu0 %v3067
    %4565 = vmatpush1.bf16.msra.mxu0 %v3066
    %4566 = vmatprep.subr.bf16.mxu0 %v3075
    %4567 = vmatpush1.bf16.msra.mxu0 %v3074
    %4568 = vmatprep.subr.bf16.mxu0 %v3083
    %4569 = vmatpush1.bf16.msra.mxu0 %v3082
    %4570 = vmatprep.subr.bf16.mxu0 %v3091
    %4571 = vmatpush1.bf16.msra.mxu0 %v3090
    %4572 = vmatprep.subr.bf16.mxu0 %v3099
    %4573 = vmatpush1.bf16.msra.mxu0 %v3098
    %4574 = vmatprep.subr.bf16.mxu0 %v3107
    %4575 = vmatpush1.bf16.msra.mxu0 %v3106
    %4576 = vmatprep.subr.bf16.mxu0 %v3115
    %4577 = vmatpush1.bf16.msra.mxu0 %v3114
    %4578 = vmatprep.subr.bf16.mxu0 %v3123
    %4579 = vmatpush1.bf16.msra.mxu0 %v3122
    %4580 = vmatprep.subr.bf16.mxu0 %v3131
    %4581 = vmatpush1.bf16.msra.mxu0 %v3130
    %4582 = vmatprep.subr.bf16.mxu0 %v3139
    %4583 = vmatpush1.bf16.msra.mxu0 %v3138
    %4584 = vmatprep.subr.bf16.mxu0 %v3147
    %4585 = vmatpush1.bf16.msra.mxu0 %v3146
    %4586 = vmatprep.subr.bf16.mxu0 %v3155
    %4587 = vmatpush1.bf16.msra.mxu0 %v3154
    %4588 = vmatprep.subr.bf16.mxu0 %v3163
    %4589 = vmatpush1.bf16.msra.mxu0 %v3162
    %4590 = vmatprep.subr.bf16.mxu0 %v3171
    %4591 = vmatpush1.bf16.msra.mxu0 %v3170
    %4592 = vmatprep.mubr.bf16.mxu0 %v947
    %4593 = vmatmul.mubr.bf16.gmra.mrb[0].mxu0 %v946
    %v4594 = vpop.f32.mrb[0].mxu0
    %v4595 = vadd.f32 %v1495, %v4594
    %v4596 = vpop.f32.mrb[0].mxu0
    %v4597 = vadd.f32 %v1499, %v4596
    %v4598 = vpop.f32.mrb[0].mxu0
    %v4599 = vpop.f32.mrb[0].mxu0
    %4600 = vdwg.mxu0
    %4601 = vmatprep.subr.bf16.mxu0 %v3179
    %4602 = vmatpush1.bf16.msra.mxu0 %v3178
    %4603 = vmatprep.subr.bf16.mxu0 %v3187
    %4604 = vmatpush1.bf16.msra.mxu0 %v3186
    %4605 = vmatprep.subr.bf16.mxu0 %v3195
    %4606 = vmatpush1.bf16.msra.mxu0 %v3194
    %4607 = vmatprep.subr.bf16.mxu0 %v3203
    %4608 = vmatpush1.bf16.msra.mxu0 %v3202
    %4609 = vmatprep.subr.bf16.mxu0 %v3211
    %4610 = vmatpush1.bf16.msra.mxu0 %v3210
    %4611 = vmatprep.subr.bf16.mxu0 %v3219
    %4612 = vmatpush1.bf16.msra.mxu0 %v3218
    %4613 = vmatprep.subr.bf16.mxu0 %v3227
    %4614 = vmatpush1.bf16.msra.mxu0 %v3226
    %4615 = vmatprep.subr.bf16.mxu0 %v3235
    %4616 = vmatpush1.bf16.msra.mxu0 %v3234
    %4617 = vmatprep.subr.bf16.mxu0 %v3243
    %4618 = vmatpush1.bf16.msra.mxu0 %v3242
    %4619 = vmatprep.subr.bf16.mxu0 %v3251
    %4620 = vmatpush1.bf16.msra.mxu0 %v3250
    %4621 = vmatprep.subr.bf16.mxu0 %v3259
    %4622 = vmatpush1.bf16.msra.mxu0 %v3258
    %4623 = vmatprep.subr.bf16.mxu0 %v3267
    %4624 = vmatpush1.bf16.msra.mxu0 %v3266
    %4625 = vmatprep.subr.bf16.mxu0 %v3275
    %4626 = vmatpush1.bf16.msra.mxu0 %v3274
    %4627 = vmatprep.subr.bf16.mxu0 %v3283
    %4628 = vmatpush1.bf16.msra.mxu0 %v3282
    %4629 = vmatprep.subr.bf16.mxu0 %v3291
    %4630 = vmatpush1.bf16.msra.mxu0 %v3290
    %4631 = vmatprep.subr.bf16.mxu0 %v3299
    %4632 = vmatpush1.bf16.msra.mxu0 %v3298
    %4633 = vmatprep.mubr.bf16.mxu0 %v949
    %4634 = vmatmul.mubr.bf16.gmra.mrb[0].mxu0 %v948
    %v4635 = vpop.f32.mrb[0].mxu0
    %v4636 = vadd.f32 %v4595, %v4635
    %v4637 = vpop.f32.mrb[0].mxu0
    %v4638 = vadd.f32 %v4597, %v4637
    %v4639 = vpop.f32.mrb[0].mxu0
    %v4640 = vpop.f32.mrb[0].mxu0
    %4641 = vdwg.mxu0
    %4642 = vmatprep.subr.bf16.mxu0 %v3307
    %4643 = vmatpush1.bf16.msra.mxu0 %v3306
    %4644 = vmatprep.subr.bf16.mxu0 %v3315
    %4645 = vmatpush1.bf16.msra.mxu0 %v3314
    %4646 = vmatprep.subr.bf16.mxu0 %v3323
    %4647 = vmatpush1.bf16.msra.mxu0 %v3322
    %4648 = vmatprep.subr.bf16.mxu0 %v3331
    %4649 = vmatpush1.bf16.msra.mxu0 %v3330
    %4650 = vmatprep.subr.bf16.mxu0 %v3339
    %4651 = vmatpush1.bf16.msra.mxu0 %v3338
    %4652 = vmatprep.subr.bf16.mxu0 %v3347
    %4653 = vmatpush1.bf16.msra.mxu0 %v3346
    %4654 = vmatprep.subr.bf16.mxu0 %v3355
    %4655 = vmatpush1.bf16.msra.mxu0 %v3354
    %4656 = vmatprep.subr.bf16.mxu0 %v3363
    %4657 = vmatpush1.bf16.msra.mxu0 %v3362
    %4658 = vmatprep.subr.bf16.mxu0 %v3371
    %4659 = vmatpush1.bf16.msra.mxu0 %v3370
    %4660 = vmatprep.subr.bf16.mxu0 %v3379
    %4661 = vmatpush1.bf16.msra.mxu0 %v3378
    %4662 = vmatprep.subr.bf16.mxu0 %v3387
    %4663 = vmatpush1.bf16.msra.mxu0 %v3386
    %4664 = vmatprep.subr.bf16.mxu0 %v3395
    %4665 = vmatpush1.bf16.msra.mxu0 %v3394
    %4666 = vmatprep.subr.bf16.mxu0 %v3403
    %4667 = vmatpush1.bf16.msra.mxu0 %v3402
    %4668 = vmatprep.subr.bf16.mxu0 %v3411
    %4669 = vmatpush1.bf16.msra.mxu0 %v3410
    %4670 = vmatprep.subr.bf16.mxu0 %v3419
    %4671 = vmatpush1.bf16.msra.mxu0 %v3418
    %4672 = vmatprep.subr.bf16.mxu0 %v3427
    %4673 = vmatpush1.bf16.msra.mxu0 %v3426
    %4674 = vmatprep.mubr.bf16.mxu0 %v951
    %4675 = vmatmul.mubr.bf16.gmra.mrb[0].mxu0 %v950
    %v4676 = vpop.f32.mrb[0].mxu0
    %v4677 = vadd.f32 %v4636, %v4676
    %v4678 = vpop.f32.mrb[0].mxu0
    %v4679 = vadd.f32 %v4638, %v4678
    %v4680 = vpop.f32.mrb[0].mxu0
    %v4681 = vpop.f32.mrb[0].mxu0
    %4682 = vdwg.mxu0
    %4683 = vmatprep.subr.bf16.mxu0 %v3435
    %4684 = vmatpush1.bf16.msra.mxu0 %v3434
    %4685 = vmatprep.subr.bf16.mxu0 %v3443
    %4686 = vmatpush1.bf16.msra.mxu0 %v3442
    %4687 = vmatprep.subr.bf16.mxu0 %v3451
    %4688 = vmatpush1.bf16.msra.mxu0 %v3450
    %4689 = vmatprep.subr.bf16.mxu0 %v3459
    %4690 = vmatpush1.bf16.msra.mxu0 %v3458
    %4691 = vmatprep.subr.bf16.mxu0 %v3467
    %4692 = vmatpush1.bf16.msra.mxu0 %v3466
    %4693 = vmatprep.subr.bf16.mxu0 %v3475
    %4694 = vmatpush1.bf16.msra.mxu0 %v3474
    %4695 = vmatprep.subr.bf16.mxu0 %v3483
    %4696 = vmatpush1.bf16.msra.mxu0 %v3482
    %4697 = vmatprep.subr.bf16.mxu0 %v3491
    %4698 = vmatpush1.bf16.msra.mxu0 %v3490
    %4699 = vmatprep.subr.bf16.mxu0 %v3499
    %4700 = vmatpush1.bf16.msra.mxu0 %v3498
    %4701 = vmatprep.subr.bf16.mxu0 %v3507
    %4702 = vmatpush1.bf16.msra.mxu0 %v3506
    %4703 = vmatprep.subr.bf16.mxu0 %v3515
    %4704 = vmatpush1.bf16.msra.mxu0 %v3514
    %4705 = vmatprep.subr.bf16.mxu0 %v3523
    %4706 = vmatpush1.bf16.msra.mxu0 %v3522
    %4707 = vmatprep.subr.bf16.mxu0 %v3531
    %4708 = vmatpush1.bf16.msra.mxu0 %v3530
    %4709 = vmatprep.subr.bf16.mxu0 %v3539
    %4710 = vmatpush1.bf16.msra.mxu0 %v3538
    %4711 = vmatprep.subr.bf16.mxu0 %v3547
    %4712 = vmatpush1.bf16.msra.mxu0 %v3546
    %4713 = vmatprep.subr.bf16.mxu0 %v3555
    %4714 = vmatpush1.bf16.msra.mxu0 %v3554
    %4715 = vmatprep.mubr.bf16.mxu0 %v953
    %4716 = vmatmul.mubr.bf16.gmra.mrb[0].mxu0 %v952
    %v4717 = vpop.f32.mrb[0].mxu0
    %v4718 = vadd.f32 %v4677, %v4717
    %v4719 = vpop.f32.mrb[0].mxu0
    %v4720 = vadd.f32 %v4679, %v4719
    %v4721 = vpop.f32.mrb[0].mxu0
    %v4722 = vpop.f32.mrb[0].mxu0
    %4723 = vdwg.mxu0
    %v4724 = vmax.f32 %v4226, 0.0
    %v4725 = vmax.f32 %v4228, 0.0
    %v4726 = vmax.f32 %v4390, 0.0
    %v4727 = vmax.f32 %v4392, 0.0
    %v4728 = vmax.f32 %v4554, 0.0
    %v4729 = vmax.f32 %v4556, 0.0
    %v4730 = vmax.f32 %v4718, 0.0
    %v4731 = vmax.f32 %v4720, 0.0
    %v4732 = vpack.c.bf16 %v4724, %v4724
    %v4733 = vpack.c.bf16 %v4725, %v4725
    %v4734 = vpack.c.bf16 %v4726, %v4726
    %v4735 = vpack.c.bf16 %v4727, %v4727
    %v4736 = vpack.c.bf16 %v4728, %v4728
    %v4737 = vpack.c.bf16 %v4729, %v4729
    %v4738 = vpack.c.bf16 %v4730, %v4730
    %v4739 = vpack.c.bf16 %v4731, %v4731
    %v4740 = vld [vmem:[#allocation15] sm:$0xff]
    %v4741 = vld [vmem:[#allocation15 + $0x8] sm:$0xff]
    %v4742 = vld [vmem:[#allocation15 + $0x10] sm:$0xff]
    %v4743 = vld [vmem:[#allocation15 + $0x18] sm:$0xff]
    %v4744 = vld [vmem:[#allocation15 + $0x20] sm:$0xff]
    %v4745 = vld [vmem:[#allocation15 + $0x28] sm:$0xff]
    %v4746 = vld [vmem:[#allocation15 + $0x30] sm:$0xff]
    %v4747 = vld [vmem:[#allocation15 + $0x38] sm:$0xff]
    %v4748 = vld [vmem:[#allocation15 + $0x40] sm:$0xff]
    %v4749 = vld [vmem:[#allocation15 + $0x48] sm:$0xff]
    %v4750 = vld [vmem:[#allocation15 + $0x50] sm:$0xff]
    %v4751 = vld [vmem:[#allocation15 + $0x58] sm:$0xff]
    %v4752 = vld [vmem:[#allocation15 + $0x60] sm:$0xff]
    %v4753 = vld [vmem:[#allocation15 + $0x68] sm:$0xff]
    %v4754 = vld [vmem:[#allocation15 + $0x70] sm:$0xff]
    %v4755 = vld [vmem:[#allocation15 + $0x78] sm:$0xff]
    %v4756 = vld [vmem:[#allocation15 + $0x80] sm:$0xff]
    %v4757 = vld [vmem:[#allocation15 + $0x88] sm:$0xff]
    %v4758 = vld [vmem:[#allocation15 + $0x90] sm:$0xff]
    %v4759 = vld [vmem:[#allocation15 + $0x98] sm:$0xff]
    %v4760 = vld [vmem:[#allocation15 + $0xa0] sm:$0xff]
    %v4761 = vld [vmem:[#allocation15 + $0xa8] sm:$0xff]
    %v4762 = vld [vmem:[#allocation15 + $0xb0] sm:$0xff]
    %v4763 = vld [vmem:[#allocation15 + $0xb8] sm:$0xff]
    %v4764 = vld [vmem:[#allocation15 + $0xc0] sm:$0xff]
    %v4765 = vld [vmem:[#allocation15 + $0xc8] sm:$0xff]
    %v4766 = vld [vmem:[#allocation15 + $0xd0] sm:$0xff]
    %v4767 = vld [vmem:[#allocation15 + $0xd8] sm:$0xff]
    %v4768 = vld [vmem:[#allocation15 + $0xe0] sm:$0xff]
    %v4769 = vld [vmem:[#allocation15 + $0xe8] sm:$0xff]
    %v4770 = vld [vmem:[#allocation15 + $0xf0] sm:$0xff]
    %v4771 = vld [vmem:[#allocation15 + $0xf8] sm:$0xff]
    %v4772 = vld [vmem:[#allocation15 + $0x100] sm:$0xff]
    %v4773 = vld [vmem:[#allocation15 + $0x108] sm:$0xff]
    %v4774 = vld [vmem:[#allocation15 + $0x110] sm:$0xff]
    %v4775 = vld [vmem:[#allocation15 + $0x118] sm:$0xff]
    %v4776 = vld [vmem:[#allocation15 + $0x120] sm:$0xff]
    %v4777 = vld [vmem:[#allocation15 + $0x128] sm:$0xff]
    %v4778 = vld [vmem:[#allocation15 + $0x130] sm:$0xff]
    %v4779 = vld [vmem:[#allocation15 + $0x138] sm:$0xff]
    %v4780 = vld [vmem:[#allocation15 + $0x140] sm:$0xff]
    %v4781 = vld [vmem:[#allocation15 + $0x148] sm:$0xff]
    %v4782 = vld [vmem:[#allocation15 + $0x150] sm:$0xff]
    %v4783 = vld [vmem:[#allocation15 + $0x158] sm:$0xff]
    %v4784 = vld [vmem:[#allocation15 + $0x160] sm:$0xff]
    %v4785 = vld [vmem:[#allocation15 + $0x168] sm:$0xff]
    %v4786 = vld [vmem:[#allocation15 + $0x170] sm:$0xff]
    %v4787 = vld [vmem:[#allocation15 + $0x178] sm:$0xff]
    %v4788 = vld [vmem:[#allocation15 + $0x180] sm:$0xff]
    %v4789 = vld [vmem:[#allocation15 + $0x188] sm:$0xff]
    %v4790 = vld [vmem:[#allocation15 + $0x190] sm:$0xff]
    %v4791 = vld [vmem:[#allocation15 + $0x198] sm:$0xff]
    %v4792 = vld [vmem:[#allocation15 + $0x1a0] sm:$0xff]
    %v4793 = vld [vmem:[#allocation15 + $0x1a8] sm:$0xff]
    %v4794 = vld [vmem:[#allocation15 + $0x1b0] sm:$0xff]
    %v4795 = vld [vmem:[#allocation15 + $0x1b8] sm:$0xff]
    %v4796 = vld [vmem:[#allocation15 + $0x1c0] sm:$0xff]
    %v4797 = vld [vmem:[#allocation15 + $0x1c8] sm:$0xff]
    %v4798 = vld [vmem:[#allocation15 + $0x1d0] sm:$0xff]
    %v4799 = vld [vmem:[#allocation15 + $0x1d8] sm:$0xff]
    %v4800 = vld [vmem:[#allocation15 + $0x1e0] sm:$0xff]
    %v4801 = vld [vmem:[#allocation15 + $0x1e8] sm:$0xff]
    %v4802 = vld [vmem:[#allocation15 + $0x1f0] sm:$0xff]
    %v4803 = vld [vmem:[#allocation15 + $0x1f8] sm:$0xff]
    %v4804 = vld [vmem:[#allocation15 + $0x200] sm:$0xff]
    %v4805 = vld [vmem:[#allocation15 + $0x208] sm:$0xff]
    %v4806 = vld [vmem:[#allocation15 + $0x210] sm:$0xff]
    %v4807 = vld [vmem:[#allocation15 + $0x218] sm:$0xff]
    %v4808 = vld [vmem:[#allocation15 + $0x220] sm:$0xff]
    %v4809 = vld [vmem:[#allocation15 + $0x228] sm:$0xff]
    %v4810 = vld [vmem:[#allocation15 + $0x230] sm:$0xff]
    %v4811 = vld [vmem:[#allocation15 + $0x238] sm:$0xff]
    %v4812 = vld [vmem:[#allocation15 + $0x240] sm:$0xff]
    %v4813 = vld [vmem:[#allocation15 + $0x248] sm:$0xff]
    %v4814 = vld [vmem:[#allocation15 + $0x250] sm:$0xff]
    %v4815 = vld [vmem:[#allocation15 + $0x258] sm:$0xff]
    %v4816 = vld [vmem:[#allocation15 + $0x260] sm:$0xff]
    %v4817 = vld [vmem:[#allocation15 + $0x268] sm:$0xff]
    %v4818 = vld [vmem:[#allocation15 + $0x270] sm:$0xff]
    %v4819 = vld [vmem:[#allocation15 + $0x278] sm:$0xff]
    %v4820 = vld [vmem:[#allocation15 + $0x280] sm:$0xff]
    %v4821 = vld [vmem:[#allocation15 + $0x288] sm:$0xff]
    %v4822 = vld [vmem:[#allocation15 + $0x290] sm:$0xff]
    %v4823 = vld [vmem:[#allocation15 + $0x298] sm:$0xff]
    %v4824 = vld [vmem:[#allocation15 + $0x2a0] sm:$0xff]
    %v4825 = vld [vmem:[#allocation15 + $0x2a8] sm:$0xff]
    %v4826 = vld [vmem:[#allocation15 + $0x2b0] sm:$0xff]
    %v4827 = vld [vmem:[#allocation15 + $0x2b8] sm:$0xff]
    %v4828 = vld [vmem:[#allocation15 + $0x2c0] sm:$0xff]
    %v4829 = vld [vmem:[#allocation15 + $0x2c8] sm:$0xff]
    %v4830 = vld [vmem:[#allocation15 + $0x2d0] sm:$0xff]
    %v4831 = vld [vmem:[#allocation15 + $0x2d8] sm:$0xff]
    %v4832 = vld [vmem:[#allocation15 + $0x2e0] sm:$0xff]
    %v4833 = vld [vmem:[#allocation15 + $0x2e8] sm:$0xff]
    %v4834 = vld [vmem:[#allocation15 + $0x2f0] sm:$0xff]
    %v4835 = vld [vmem:[#allocation15 + $0x2f8] sm:$0xff]
    %v4836 = vld [vmem:[#allocation15 + $0x300] sm:$0xff]
    %v4837 = vld [vmem:[#allocation15 + $0x308] sm:$0xff]
    %v4838 = vld [vmem:[#allocation15 + $0x310] sm:$0xff]
    %v4839 = vld [vmem:[#allocation15 + $0x318] sm:$0xff]
    %v4840 = vld [vmem:[#allocation15 + $0x320] sm:$0xff]
    %v4841 = vld [vmem:[#allocation15 + $0x328] sm:$0xff]
    %v4842 = vld [vmem:[#allocation15 + $0x330] sm:$0xff]
    %v4843 = vld [vmem:[#allocation15 + $0x338] sm:$0xff]
    %v4844 = vld [vmem:[#allocation15 + $0x340] sm:$0xff]
    %v4845 = vld [vmem:[#allocation15 + $0x348] sm:$0xff]
    %v4846 = vld [vmem:[#allocation15 + $0x350] sm:$0xff]
    %v4847 = vld [vmem:[#allocation15 + $0x358] sm:$0xff]
    %v4848 = vld [vmem:[#allocation15 + $0x360] sm:$0xff]
    %v4849 = vld [vmem:[#allocation15 + $0x368] sm:$0xff]
    %v4850 = vld [vmem:[#allocation15 + $0x370] sm:$0xff]
    %v4851 = vld [vmem:[#allocation15 + $0x378] sm:$0xff]
    %v4852 = vld [vmem:[#allocation15 + $0x380] sm:$0xff]
    %v4853 = vld [vmem:[#allocation15 + $0x388] sm:$0xff]
    %v4854 = vld [vmem:[#allocation15 + $0x390] sm:$0xff]
    %v4855 = vld [vmem:[#allocation15 + $0x398] sm:$0xff]
    %v4856 = vld [vmem:[#allocation15 + $0x3a0] sm:$0xff]
    %v4857 = vld [vmem:[#allocation15 + $0x3a8] sm:$0xff]
    %v4858 = vld [vmem:[#allocation15 + $0x3b0] sm:$0xff]
    %v4859 = vld [vmem:[#allocation15 + $0x3b8] sm:$0xff]
    %v4860 = vld [vmem:[#allocation15 + $0x3c0] sm:$0xff]
    %v4861 = vld [vmem:[#allocation15 + $0x3c8] sm:$0xff]
    %v4862 = vld [vmem:[#allocation15 + $0x3d0] sm:$0xff]
    %v4863 = vld [vmem:[#allocation15 + $0x3d8] sm:$0xff]
    %v4864 = vld [vmem:[#allocation15 + $0x3e0] sm:$0xff]
    %v4865 = vld [vmem:[#allocation15 + $0x3e8] sm:$0xff]
    %v4866 = vld [vmem:[#allocation15 + $0x3f0] sm:$0xff]
    %v4867 = vld [vmem:[#allocation15 + $0x3f8] sm:$0xff]
    %v4868 = vld [vmem:[#allocation15 + $0x400] sm:$0xff]
    %v4869 = vld [vmem:[#allocation15 + $0x408] sm:$0xff]
    %v4870 = vld [vmem:[#allocation15 + $0x410] sm:$0xff]
    %v4871 = vld [vmem:[#allocation15 + $0x418] sm:$0xff]
    %v4872 = vld [vmem:[#allocation15 + $0x420] sm:$0xff]
    %v4873 = vld [vmem:[#allocation15 + $0x428] sm:$0xff]
    %v4874 = vld [vmem:[#allocation15 + $0x430] sm:$0xff]
    %v4875 = vld [vmem:[#allocation15 + $0x438] sm:$0xff]
    %v4876 = vld [vmem:[#allocation15 + $0x440] sm:$0xff]
    %v4877 = vld [vmem:[#allocation15 + $0x448] sm:$0xff]
    %v4878 = vld [vmem:[#allocation15 + $0x450] sm:$0xff]
    %v4879 = vld [vmem:[#allocation15 + $0x458] sm:$0xff]
    %v4880 = vld [vmem:[#allocation15 + $0x460] sm:$0xff]
    %v4881 = vld [vmem:[#allocation15 + $0x468] sm:$0xff]
    %v4882 = vld [vmem:[#allocation15 + $0x470] sm:$0xff]
    %v4883 = vld [vmem:[#allocation15 + $0x478] sm:$0xff]
    %v4884 = vld [vmem:[#allocation15 + $0x480] sm:$0xff]
    %v4885 = vld [vmem:[#allocation15 + $0x488] sm:$0xff]
    %v4886 = vld [vmem:[#allocation15 + $0x490] sm:$0xff]
    %v4887 = vld [vmem:[#allocation15 + $0x498] sm:$0xff]
    %v4888 = vld [vmem:[#allocation15 + $0x4a0] sm:$0xff]
    %v4889 = vld [vmem:[#allocation15 + $0x4a8] sm:$0xff]
    %v4890 = vld [vmem:[#allocation15 + $0x4b0] sm:$0xff]
    %v4891 = vld [vmem:[#allocation15 + $0x4b8] sm:$0xff]
    %v4892 = vld [vmem:[#allocation15 + $0x4c0] sm:$0xff]
    %v4893 = vld [vmem:[#allocation15 + $0x4c8] sm:$0xff]
    %v4894 = vld [vmem:[#allocation15 + $0x4d0] sm:$0xff]
    %v4895 = vld [vmem:[#allocation15 + $0x4d8] sm:$0xff]
    %v4896 = vld [vmem:[#allocation15 + $0x4e0] sm:$0xff]
    %v4897 = vld [vmem:[#allocation15 + $0x4e8] sm:$0xff]
    %v4898 = vld [vmem:[#allocation15 + $0x4f0] sm:$0xff]
    %v4899 = vld [vmem:[#allocation15 + $0x4f8] sm:$0xff]
    %v4900 = vld [vmem:[#allocation15 + $0x500] sm:$0xff]
    %v4901 = vld [vmem:[#allocation15 + $0x508] sm:$0xff]
    %v4902 = vld [vmem:[#allocation15 + $0x510] sm:$0xff]
    %v4903 = vld [vmem:[#allocation15 + $0x518] sm:$0xff]
    %v4904 = vld [vmem:[#allocation15 + $0x520] sm:$0xff]
    %v4905 = vld [vmem:[#allocation15 + $0x528] sm:$0xff]
    %v4906 = vld [vmem:[#allocation15 + $0x530] sm:$0xff]
    %v4907 = vld [vmem:[#allocation15 + $0x538] sm:$0xff]
    %v4908 = vld [vmem:[#allocation15 + $0x540] sm:$0xff]
    %v4909 = vld [vmem:[#allocation15 + $0x548] sm:$0xff]
    %v4910 = vld [vmem:[#allocation15 + $0x550] sm:$0xff]
    %v4911 = vld [vmem:[#allocation15 + $0x558] sm:$0xff]
    %v4912 = vld [vmem:[#allocation15 + $0x560] sm:$0xff]
    %v4913 = vld [vmem:[#allocation15 + $0x568] sm:$0xff]
    %v4914 = vld [vmem:[#allocation15 + $0x570] sm:$0xff]
    %v4915 = vld [vmem:[#allocation15 + $0x578] sm:$0xff]
    %v4916 = vld [vmem:[#allocation15 + $0x580] sm:$0xff]
    %v4917 = vld [vmem:[#allocation15 + $0x588] sm:$0xff]
    %v4918 = vld [vmem:[#allocation15 + $0x590] sm:$0xff]
    %v4919 = vld [vmem:[#allocation15 + $0x598] sm:$0xff]
    %v4920 = vld [vmem:[#allocation15 + $0x5a0] sm:$0xff]
    %v4921 = vld [vmem:[#allocation15 + $0x5a8] sm:$0xff]
    %v4922 = vld [vmem:[#allocation15 + $0x5b0] sm:$0xff]
    %v4923 = vld [vmem:[#allocation15 + $0x5b8] sm:$0xff]
    %v4924 = vld [vmem:[#allocation15 + $0x5c0] sm:$0xff]
    %v4925 = vld [vmem:[#allocation15 + $0x5c8] sm:$0xff]
    %v4926 = vld [vmem:[#allocation15 + $0x5d0] sm:$0xff]
    %v4927 = vld [vmem:[#allocation15 + $0x5d8] sm:$0xff]
    %v4928 = vld [vmem:[#allocation15 + $0x5e0] sm:$0xff]
    %v4929 = vld [vmem:[#allocation15 + $0x5e8] sm:$0xff]
    %v4930 = vld [vmem:[#allocation15 + $0x5f0] sm:$0xff]
    %v4931 = vld [vmem:[#allocation15 + $0x5f8] sm:$0xff]
    %v4932 = vld [vmem:[#allocation15 + $0x600] sm:$0xff]
    %v4933 = vld [vmem:[#allocation15 + $0x608] sm:$0xff]
    %v4934 = vld [vmem:[#allocation15 + $0x610] sm:$0xff]
    %v4935 = vld [vmem:[#allocation15 + $0x618] sm:$0xff]
    %v4936 = vld [vmem:[#allocation15 + $0x620] sm:$0xff]
    %v4937 = vld [vmem:[#allocation15 + $0x628] sm:$0xff]
    %v4938 = vld [vmem:[#allocation15 + $0x630] sm:$0xff]
    %v4939 = vld [vmem:[#allocation15 + $0x638] sm:$0xff]
    %v4940 = vld [vmem:[#allocation15 + $0x640] sm:$0xff]
    %v4941 = vld [vmem:[#allocation15 + $0x648] sm:$0xff]
    %v4942 = vld [vmem:[#allocation15 + $0x650] sm:$0xff]
    %v4943 = vld [vmem:[#allocation15 + $0x658] sm:$0xff]
    %v4944 = vld [vmem:[#allocation15 + $0x660] sm:$0xff]
    %v4945 = vld [vmem:[#allocation15 + $0x668] sm:$0xff]
    %v4946 = vld [vmem:[#allocation15 + $0x670] sm:$0xff]
    %v4947 = vld [vmem:[#allocation15 + $0x678] sm:$0xff]
    %v4948 = vld [vmem:[#allocation15 + $0x680] sm:$0xff]
    %v4949 = vld [vmem:[#allocation15 + $0x688] sm:$0xff]
    %v4950 = vld [vmem:[#allocation15 + $0x690] sm:$0xff]
    %v4951 = vld [vmem:[#allocation15 + $0x698] sm:$0xff]
    %v4952 = vld [vmem:[#allocation15 + $0x6a0] sm:$0xff]
    %v4953 = vld [vmem:[#allocation15 + $0x6a8] sm:$0xff]
    %v4954 = vld [vmem:[#allocation15 + $0x6b0] sm:$0xff]
    %v4955 = vld [vmem:[#allocation15 + $0x6b8] sm:$0xff]
    %v4956 = vld [vmem:[#allocation15 + $0x6c0] sm:$0xff]
    %v4957 = vld [vmem:[#allocation15 + $0x6c8] sm:$0xff]
    %v4958 = vld [vmem:[#allocation15 + $0x6d0] sm:$0xff]
    %v4959 = vld [vmem:[#allocation15 + $0x6d8] sm:$0xff]
    %v4960 = vld [vmem:[#allocation15 + $0x6e0] sm:$0xff]
    %v4961 = vld [vmem:[#allocation15 + $0x6e8] sm:$0xff]
    %v4962 = vld [vmem:[#allocation15 + $0x6f0] sm:$0xff]
    %v4963 = vld [vmem:[#allocation15 + $0x6f8] sm:$0xff]
    %v4964 = vld [vmem:[#allocation15 + $0x700] sm:$0xff]
    %v4965 = vld [vmem:[#allocation15 + $0x708] sm:$0xff]
    %v4966 = vld [vmem:[#allocation15 + $0x710] sm:$0xff]
    %v4967 = vld [vmem:[#allocation15 + $0x718] sm:$0xff]
    %v4968 = vld [vmem:[#allocation15 + $0x720] sm:$0xff]
    %v4969 = vld [vmem:[#allocation15 + $0x728] sm:$0xff]
    %v4970 = vld [vmem:[#allocation15 + $0x730] sm:$0xff]
    %v4971 = vld [vmem:[#allocation15 + $0x738] sm:$0xff]
    %v4972 = vld [vmem:[#allocation15 + $0x740] sm:$0xff]
    %v4973 = vld [vmem:[#allocation15 + $0x748] sm:$0xff]
    %v4974 = vld [vmem:[#allocation15 + $0x750] sm:$0xff]
    %v4975 = vld [vmem:[#allocation15 + $0x758] sm:$0xff]
    %v4976 = vld [vmem:[#allocation15 + $0x760] sm:$0xff]
    %v4977 = vld [vmem:[#allocation15 + $0x768] sm:$0xff]
    %v4978 = vld [vmem:[#allocation15 + $0x770] sm:$0xff]
    %v4979 = vld [vmem:[#allocation15 + $0x778] sm:$0xff]
    %v4980 = vld [vmem:[#allocation15 + $0x780] sm:$0xff]
    %v4981 = vld [vmem:[#allocation15 + $0x788] sm:$0xff]
    %v4982 = vld [vmem:[#allocation15 + $0x790] sm:$0xff]
    %v4983 = vld [vmem:[#allocation15 + $0x798] sm:$0xff]
    %v4984 = vld [vmem:[#allocation15 + $0x7a0] sm:$0xff]
    %v4985 = vld [vmem:[#allocation15 + $0x7a8] sm:$0xff]
    %v4986 = vld [vmem:[#allocation15 + $0x7b0] sm:$0xff]
    %v4987 = vld [vmem:[#allocation15 + $0x7b8] sm:$0xff]
    %v4988 = vld [vmem:[#allocation15 + $0x7c0] sm:$0xff]
    %v4989 = vld [vmem:[#allocation15 + $0x7c8] sm:$0xff]
    %v4990 = vld [vmem:[#allocation15 + $0x7d0] sm:$0xff]
    %v4991 = vld [vmem:[#allocation15 + $0x7d8] sm:$0xff]
    %v4992 = vld [vmem:[#allocation15 + $0x7e0] sm:$0xff]
    %v4993 = vld [vmem:[#allocation15 + $0x7e8] sm:$0xff]
    %v4994 = vld [vmem:[#allocation15 + $0x7f0] sm:$0xff]
    %v4995 = vld [vmem:[#allocation15 + $0x7f8] sm:$0xff]
    %v4996 = vld [vmem:[#allocation17] sm:$0xf]
    %v4998 = vlaneseq
    %v4999 = vshrl.u32 %v4998, 7
    %v5000 = vsub.s32 0, %v4999
    %v5001 = vrot.slane %v4996, %v5000
    %v5002 = vlaneseq
    %v5003 = vshrl.u32 %v5002, 7
    %v5004 = vsub.s32 1, %v5003
    %v5005 = vrot.slane %v4996, %v5004
    %v5006 = vlaneseq
    %v5007 = vshrl.u32 %v5006, 7
    %v5008 = vsub.s32 2, %v5007
    %v5009 = vrot.slane %v4996, %v5008
    %v5010 = vlaneseq
    %v5011 = vshrl.u32 %v5010, 7
    %v5012 = vsub.s32 3, %v5011
    %v5013 = vrot.slane %v4996, %v5012
    %v5274 = vunpack.c.l.b16 %v4740
    %v5275 = vunpack.c.h.b16 %v4740
    %v5276 = vunpack.c.l.b16 %v4741
    %v5277 = vunpack.c.h.b16 %v4741
    %v5278 = vunpack.c.l.b16 %v4742
    %v5279 = vunpack.c.h.b16 %v4742
    %v5280 = vunpack.c.l.b16 %v4743
    %v5281 = vunpack.c.h.b16 %v4743
    %v5282 = vunpack.c.l.b16 %v4744
    %v5283 = vunpack.c.h.b16 %v4744
    %v5284 = vunpack.c.l.b16 %v4745
    %v5285 = vunpack.c.h.b16 %v4745
    %v5286 = vunpack.c.l.b16 %v4746
    %v5287 = vunpack.c.h.b16 %v4746
    %v5288 = vunpack.c.l.b16 %v4747
    %v5289 = vunpack.c.h.b16 %v4747
    %v5290 = vunpack.c.l.b16 %v4748
    %v5291 = vunpack.c.h.b16 %v4748
    %v5292 = vunpack.c.l.b16 %v4749
    %v5293 = vunpack.c.h.b16 %v4749
    %v5294 = vunpack.c.l.b16 %v4750
    %v5295 = vunpack.c.h.b16 %v4750
    %v5296 = vunpack.c.l.b16 %v4751
    %v5297 = vunpack.c.h.b16 %v4751
    %v5298 = vunpack.c.l.b16 %v4752
    %v5299 = vunpack.c.h.b16 %v4752
    %v5300 = vunpack.c.l.b16 %v4753
    %v5301 = vunpack.c.h.b16 %v4753
    %v5302 = vunpack.c.l.b16 %v4754
    %v5303 = vunpack.c.h.b16 %v4754
    %v5304 = vunpack.c.l.b16 %v4755
    %v5305 = vunpack.c.h.b16 %v4755
    %v5306 = vunpack.c.l.b16 %v4756
    %v5307 = vunpack.c.h.b16 %v4756
    %v5308 = vunpack.c.l.b16 %v4757
    %v5309 = vunpack.c.h.b16 %v4757
    %v5310 = vunpack.c.l.b16 %v4758
    %v5311 = vunpack.c.h.b16 %v4758
    %v5312 = vunpack.c.l.b16 %v4759
    %v5313 = vunpack.c.h.b16 %v4759
    %v5314 = vunpack.c.l.b16 %v4760
    %v5315 = vunpack.c.h.b16 %v4760
    %v5316 = vunpack.c.l.b16 %v4761
    %v5317 = vunpack.c.h.b16 %v4761
    %v5318 = vunpack.c.l.b16 %v4762
    %v5319 = vunpack.c.h.b16 %v4762
    %v5320 = vunpack.c.l.b16 %v4763
    %v5321 = vunpack.c.h.b16 %v4763
    %v5322 = vunpack.c.l.b16 %v4764
    %v5323 = vunpack.c.h.b16 %v4764
    %v5324 = vunpack.c.l.b16 %v4765
    %v5325 = vunpack.c.h.b16 %v4765
    %v5326 = vunpack.c.l.b16 %v4766
    %v5327 = vunpack.c.h.b16 %v4766
    %v5328 = vunpack.c.l.b16 %v4767
    %v5329 = vunpack.c.h.b16 %v4767
    %v5330 = vunpack.c.l.b16 %v4768
    %v5331 = vunpack.c.h.b16 %v4768
    %v5332 = vunpack.c.l.b16 %v4769
    %v5333 = vunpack.c.h.b16 %v4769
    %v5334 = vunpack.c.l.b16 %v4770
    %v5335 = vunpack.c.h.b16 %v4770
    %v5336 = vunpack.c.l.b16 %v4771
    %v5337 = vunpack.c.h.b16 %v4771
    %v5338 = vunpack.c.l.b16 %v4772
    %v5339 = vunpack.c.h.b16 %v4772
    %v5340 = vunpack.c.l.b16 %v4773
    %v5341 = vunpack.c.h.b16 %v4773
    %v5342 = vunpack.c.l.b16 %v4774
    %v5343 = vunpack.c.h.b16 %v4774
    %v5344 = vunpack.c.l.b16 %v4775
    %v5345 = vunpack.c.h.b16 %v4775
    %v5346 = vunpack.c.l.b16 %v4776
    %v5347 = vunpack.c.h.b16 %v4776
    %v5348 = vunpack.c.l.b16 %v4777
    %v5349 = vunpack.c.h.b16 %v4777
    %v5350 = vunpack.c.l.b16 %v4778
    %v5351 = vunpack.c.h.b16 %v4778
    %v5352 = vunpack.c.l.b16 %v4779
    %v5353 = vunpack.c.h.b16 %v4779
    %v5354 = vunpack.c.l.b16 %v4780
    %v5355 = vunpack.c.h.b16 %v4780
    %v5356 = vunpack.c.l.b16 %v4781
    %v5357 = vunpack.c.h.b16 %v4781
    %v5358 = vunpack.c.l.b16 %v4782
    %v5359 = vunpack.c.h.b16 %v4782
    %v5360 = vunpack.c.l.b16 %v4783
    %v5361 = vunpack.c.h.b16 %v4783
    %v5362 = vunpack.c.l.b16 %v4784
    %v5363 = vunpack.c.h.b16 %v4784
    %v5364 = vunpack.c.l.b16 %v4785
    %v5365 = vunpack.c.h.b16 %v4785
    %v5366 = vunpack.c.l.b16 %v4786
    %v5367 = vunpack.c.h.b16 %v4786
    %v5368 = vunpack.c.l.b16 %v4787
    %v5369 = vunpack.c.h.b16 %v4787
    %v5370 = vunpack.c.l.b16 %v4788
    %v5371 = vunpack.c.h.b16 %v4788
    %v5372 = vunpack.c.l.b16 %v4789
    %v5373 = vunpack.c.h.b16 %v4789
    %v5374 = vunpack.c.l.b16 %v4790
    %v5375 = vunpack.c.h.b16 %v4790
    %v5376 = vunpack.c.l.b16 %v4791
    %v5377 = vunpack.c.h.b16 %v4791
    %v5378 = vunpack.c.l.b16 %v4792
    %v5379 = vunpack.c.h.b16 %v4792
    %v5380 = vunpack.c.l.b16 %v4793
    %v5381 = vunpack.c.h.b16 %v4793
    %v5382 = vunpack.c.l.b16 %v4794
    %v5383 = vunpack.c.h.b16 %v4794
    %v5384 = vunpack.c.l.b16 %v4795
    %v5385 = vunpack.c.h.b16 %v4795
    %v5386 = vunpack.c.l.b16 %v4796
    %v5387 = vunpack.c.h.b16 %v4796
    %v5388 = vunpack.c.l.b16 %v4797
    %v5389 = vunpack.c.h.b16 %v4797
    %v5390 = vunpack.c.l.b16 %v4798
    %v5391 = vunpack.c.h.b16 %v4798
    %v5392 = vunpack.c.l.b16 %v4799
    %v5393 = vunpack.c.h.b16 %v4799
    %v5394 = vunpack.c.l.b16 %v4800
    %v5395 = vunpack.c.h.b16 %v4800
    %v5396 = vunpack.c.l.b16 %v4801
    %v5397 = vunpack.c.h.b16 %v4801
    %v5398 = vunpack.c.l.b16 %v4802
    %v5399 = vunpack.c.h.b16 %v4802
    %v5400 = vunpack.c.l.b16 %v4803
    %v5401 = vunpack.c.h.b16 %v4803
    %v5402 = vunpack.c.l.b16 %v4804
    %v5403 = vunpack.c.h.b16 %v4804
    %v5404 = vunpack.c.l.b16 %v4805
    %v5405 = vunpack.c.h.b16 %v4805
    %v5406 = vunpack.c.l.b16 %v4806
    %v5407 = vunpack.c.h.b16 %v4806
    %v5408 = vunpack.c.l.b16 %v4807
    %v5409 = vunpack.c.h.b16 %v4807
    %v5410 = vunpack.c.l.b16 %v4808
    %v5411 = vunpack.c.h.b16 %v4808
    %v5412 = vunpack.c.l.b16 %v4809
    %v5413 = vunpack.c.h.b16 %v4809
    %v5414 = vunpack.c.l.b16 %v4810
    %v5415 = vunpack.c.h.b16 %v4810
    %v5416 = vunpack.c.l.b16 %v4811
    %v5417 = vunpack.c.h.b16 %v4811
    %v5418 = vunpack.c.l.b16 %v4812
    %v5419 = vunpack.c.h.b16 %v4812
    %v5420 = vunpack.c.l.b16 %v4813
    %v5421 = vunpack.c.h.b16 %v4813
    %v5422 = vunpack.c.l.b16 %v4814
    %v5423 = vunpack.c.h.b16 %v4814
    %v5424 = vunpack.c.l.b16 %v4815
    %v5425 = vunpack.c.h.b16 %v4815
    %v5426 = vunpack.c.l.b16 %v4816
    %v5427 = vunpack.c.h.b16 %v4816
    %v5428 = vunpack.c.l.b16 %v4817
    %v5429 = vunpack.c.h.b16 %v4817
    %v5430 = vunpack.c.l.b16 %v4818
    %v5431 = vunpack.c.h.b16 %v4818
    %v5432 = vunpack.c.l.b16 %v4819
    %v5433 = vunpack.c.h.b16 %v4819
    %v5434 = vunpack.c.l.b16 %v4820
    %v5435 = vunpack.c.h.b16 %v4820
    %v5436 = vunpack.c.l.b16 %v4821
    %v5437 = vunpack.c.h.b16 %v4821
    %v5438 = vunpack.c.l.b16 %v4822
    %v5439 = vunpack.c.h.b16 %v4822
    %v5440 = vunpack.c.l.b16 %v4823
    %v5441 = vunpack.c.h.b16 %v4823
    %v5442 = vunpack.c.l.b16 %v4824
    %v5443 = vunpack.c.h.b16 %v4824
    %v5444 = vunpack.c.l.b16 %v4825
    %v5445 = vunpack.c.h.b16 %v4825
    %v5446 = vunpack.c.l.b16 %v4826
    %v5447 = vunpack.c.h.b16 %v4826
    %v5448 = vunpack.c.l.b16 %v4827
    %v5449 = vunpack.c.h.b16 %v4827
    %v5450 = vunpack.c.l.b16 %v4828
    %v5451 = vunpack.c.h.b16 %v4828
    %v5452 = vunpack.c.l.b16 %v4829
    %v5453 = vunpack.c.h.b16 %v4829
    %v5454 = vunpack.c.l.b16 %v4830
    %v5455 = vunpack.c.h.b16 %v4830
    %v5456 = vunpack.c.l.b16 %v4831
    %v5457 = vunpack.c.h.b16 %v4831
    %v5458 = vunpack.c.l.b16 %v4832
    %v5459 = vunpack.c.h.b16 %v4832
    %v5460 = vunpack.c.l.b16 %v4833
    %v5461 = vunpack.c.h.b16 %v4833
    %v5462 = vunpack.c.l.b16 %v4834
    %v5463 = vunpack.c.h.b16 %v4834
    %v5464 = vunpack.c.l.b16 %v4835
    %v5465 = vunpack.c.h.b16 %v4835
    %v5466 = vunpack.c.l.b16 %v4836
    %v5467 = vunpack.c.h.b16 %v4836
    %v5468 = vunpack.c.l.b16 %v4837
    %v5469 = vunpack.c.h.b16 %v4837
    %v5470 = vunpack.c.l.b16 %v4838
    %v5471 = vunpack.c.h.b16 %v4838
    %v5472 = vunpack.c.l.b16 %v4839
    %v5473 = vunpack.c.h.b16 %v4839
    %v5474 = vunpack.c.l.b16 %v4840
    %v5475 = vunpack.c.h.b16 %v4840
    %v5476 = vunpack.c.l.b16 %v4841
    %v5477 = vunpack.c.h.b16 %v4841
    %v5478 = vunpack.c.l.b16 %v4842
    %v5479 = vunpack.c.h.b16 %v4842
    %v5480 = vunpack.c.l.b16 %v4843
    %v5481 = vunpack.c.h.b16 %v4843
    %v5482 = vunpack.c.l.b16 %v4844
    %v5483 = vunpack.c.h.b16 %v4844
    %v5484 = vunpack.c.l.b16 %v4845
    %v5485 = vunpack.c.h.b16 %v4845
    %v5486 = vunpack.c.l.b16 %v4846
    %v5487 = vunpack.c.h.b16 %v4846
    %v5488 = vunpack.c.l.b16 %v4847
    %v5489 = vunpack.c.h.b16 %v4847
    %v5490 = vunpack.c.l.b16 %v4848
    %v5491 = vunpack.c.h.b16 %v4848
    %v5492 = vunpack.c.l.b16 %v4849
    %v5493 = vunpack.c.h.b16 %v4849
    %v5494 = vunpack.c.l.b16 %v4850
    %v5495 = vunpack.c.h.b16 %v4850
    %v5496 = vunpack.c.l.b16 %v4851
    %v5497 = vunpack.c.h.b16 %v4851
    %v5498 = vunpack.c.l.b16 %v4852
    %v5499 = vunpack.c.h.b16 %v4852
    %v5500 = vunpack.c.l.b16 %v4853
    %v5501 = vunpack.c.h.b16 %v4853
    %v5502 = vunpack.c.l.b16 %v4854
    %v5503 = vunpack.c.h.b16 %v4854
    %v5504 = vunpack.c.l.b16 %v4855
    %v5505 = vunpack.c.h.b16 %v4855
    %v5506 = vunpack.c.l.b16 %v4856
    %v5507 = vunpack.c.h.b16 %v4856
    %v5508 = vunpack.c.l.b16 %v4857
    %v5509 = vunpack.c.h.b16 %v4857
    %v5510 = vunpack.c.l.b16 %v4858
    %v5511 = vunpack.c.h.b16 %v4858
    %v5512 = vunpack.c.l.b16 %v4859
    %v5513 = vunpack.c.h.b16 %v4859
    %v5514 = vunpack.c.l.b16 %v4860
    %v5515 = vunpack.c.h.b16 %v4860
    %v5516 = vunpack.c.l.b16 %v4861
    %v5517 = vunpack.c.h.b16 %v4861
    %v5518 = vunpack.c.l.b16 %v4862
    %v5519 = vunpack.c.h.b16 %v4862
    %v5520 = vunpack.c.l.b16 %v4863
    %v5521 = vunpack.c.h.b16 %v4863
    %v5522 = vunpack.c.l.b16 %v4864
    %v5523 = vunpack.c.h.b16 %v4864
    %v5524 = vunpack.c.l.b16 %v4865
    %v5525 = vunpack.c.h.b16 %v4865
    %v5526 = vunpack.c.l.b16 %v4866
    %v5527 = vunpack.c.h.b16 %v4866
    %v5528 = vunpack.c.l.b16 %v4867
    %v5529 = vunpack.c.h.b16 %v4867
    %v5530 = vunpack.c.l.b16 %v4868
    %v5531 = vunpack.c.h.b16 %v4868
    %v5532 = vunpack.c.l.b16 %v4869
    %v5533 = vunpack.c.h.b16 %v4869
    %v5534 = vunpack.c.l.b16 %v4870
    %v5535 = vunpack.c.h.b16 %v4870
    %v5536 = vunpack.c.l.b16 %v4871
    %v5537 = vunpack.c.h.b16 %v4871
    %v5538 = vunpack.c.l.b16 %v4872
    %v5539 = vunpack.c.h.b16 %v4872
    %v5540 = vunpack.c.l.b16 %v4873
    %v5541 = vunpack.c.h.b16 %v4873
    %v5542 = vunpack.c.l.b16 %v4874
    %v5543 = vunpack.c.h.b16 %v4874
    %v5544 = vunpack.c.l.b16 %v4875
    %v5545 = vunpack.c.h.b16 %v4875
    %v5546 = vunpack.c.l.b16 %v4876
    %v5547 = vunpack.c.h.b16 %v4876
    %v5548 = vunpack.c.l.b16 %v4877
    %v5549 = vunpack.c.h.b16 %v4877
    %v5550 = vunpack.c.l.b16 %v4878
    %v5551 = vunpack.c.h.b16 %v4878
    %v5552 = vunpack.c.l.b16 %v4879
    %v5553 = vunpack.c.h.b16 %v4879
    %v5554 = vunpack.c.l.b16 %v4880
    %v5555 = vunpack.c.h.b16 %v4880
    %v5556 = vunpack.c.l.b16 %v4881
    %v5557 = vunpack.c.h.b16 %v4881
    %v5558 = vunpack.c.l.b16 %v4882
    %v5559 = vunpack.c.h.b16 %v4882
    %v5560 = vunpack.c.l.b16 %v4883
    %v5561 = vunpack.c.h.b16 %v4883
    %v5562 = vunpack.c.l.b16 %v4884
    %v5563 = vunpack.c.h.b16 %v4884
    %v5564 = vunpack.c.l.b16 %v4885
    %v5565 = vunpack.c.h.b16 %v4885
    %v5566 = vunpack.c.l.b16 %v4886
    %v5567 = vunpack.c.h.b16 %v4886
    %v5568 = vunpack.c.l.b16 %v4887
    %v5569 = vunpack.c.h.b16 %v4887
    %v5570 = vunpack.c.l.b16 %v4888
    %v5571 = vunpack.c.h.b16 %v4888
    %v5572 = vunpack.c.l.b16 %v4889
    %v5573 = vunpack.c.h.b16 %v4889
    %v5574 = vunpack.c.l.b16 %v4890
    %v5575 = vunpack.c.h.b16 %v4890
    %v5576 = vunpack.c.l.b16 %v4891
    %v5577 = vunpack.c.h.b16 %v4891
    %v5578 = vunpack.c.l.b16 %v4892
    %v5579 = vunpack.c.h.b16 %v4892
    %v5580 = vunpack.c.l.b16 %v4893
    %v5581 = vunpack.c.h.b16 %v4893
    %v5582 = vunpack.c.l.b16 %v4894
    %v5583 = vunpack.c.h.b16 %v4894
    %v5584 = vunpack.c.l.b16 %v4895
    %v5585 = vunpack.c.h.b16 %v4895
    %v5586 = vunpack.c.l.b16 %v4896
    %v5587 = vunpack.c.h.b16 %v4896
    %v5588 = vunpack.c.l.b16 %v4897
    %v5589 = vunpack.c.h.b16 %v4897
    %v5590 = vunpack.c.l.b16 %v4898
    %v5591 = vunpack.c.h.b16 %v4898
    %v5592 = vunpack.c.l.b16 %v4899
    %v5593 = vunpack.c.h.b16 %v4899
    %v5594 = vunpack.c.l.b16 %v4900
    %v5595 = vunpack.c.h.b16 %v4900
    %v5596 = vunpack.c.l.b16 %v4901
    %v5597 = vunpack.c.h.b16 %v4901
    %v5598 = vunpack.c.l.b16 %v4902
    %v5599 = vunpack.c.h.b16 %v4902
    %v5600 = vunpack.c.l.b16 %v4903
    %v5601 = vunpack.c.h.b16 %v4903
    %v5602 = vunpack.c.l.b16 %v4904
    %v5603 = vunpack.c.h.b16 %v4904
    %v5604 = vunpack.c.l.b16 %v4905
    %v5605 = vunpack.c.h.b16 %v4905
    %v5606 = vunpack.c.l.b16 %v4906
    %v5607 = vunpack.c.h.b16 %v4906
    %v5608 = vunpack.c.l.b16 %v4907
    %v5609 = vunpack.c.h.b16 %v4907
    %v5610 = vunpack.c.l.b16 %v4908
    %v5611 = vunpack.c.h.b16 %v4908
    %v5612 = vunpack.c.l.b16 %v4909
    %v5613 = vunpack.c.h.b16 %v4909
    %v5614 = vunpack.c.l.b16 %v4910
    %v5615 = vunpack.c.h.b16 %v4910
    %v5616 = vunpack.c.l.b16 %v4911
    %v5617 = vunpack.c.h.b16 %v4911
    %v5618 = vunpack.c.l.b16 %v4912
    %v5619 = vunpack.c.h.b16 %v4912
    %v5620 = vunpack.c.l.b16 %v4913
    %v5621 = vunpack.c.h.b16 %v4913
    %v5622 = vunpack.c.l.b16 %v4914
    %v5623 = vunpack.c.h.b16 %v4914
    %v5624 = vunpack.c.l.b16 %v4915
    %v5625 = vunpack.c.h.b16 %v4915
    %v5626 = vunpack.c.l.b16 %v4916
    %v5627 = vunpack.c.h.b16 %v4916
    %v5628 = vunpack.c.l.b16 %v4917
    %v5629 = vunpack.c.h.b16 %v4917
    %v5630 = vunpack.c.l.b16 %v4918
    %v5631 = vunpack.c.h.b16 %v4918
    %v5632 = vunpack.c.l.b16 %v4919
    %v5633 = vunpack.c.h.b16 %v4919
    %v5634 = vunpack.c.l.b16 %v4920
    %v5635 = vunpack.c.h.b16 %v4920
    %v5636 = vunpack.c.l.b16 %v4921
    %v5637 = vunpack.c.h.b16 %v4921
    %v5638 = vunpack.c.l.b16 %v4922
    %v5639 = vunpack.c.h.b16 %v4922
    %v5640 = vunpack.c.l.b16 %v4923
    %v5641 = vunpack.c.h.b16 %v4923
    %v5642 = vunpack.c.l.b16 %v4924
    %v5643 = vunpack.c.h.b16 %v4924
    %v5644 = vunpack.c.l.b16 %v4925
    %v5645 = vunpack.c.h.b16 %v4925
    %v5646 = vunpack.c.l.b16 %v4926
    %v5647 = vunpack.c.h.b16 %v4926
    %v5648 = vunpack.c.l.b16 %v4927
    %v5649 = vunpack.c.h.b16 %v4927
    %v5650 = vunpack.c.l.b16 %v4928
    %v5651 = vunpack.c.h.b16 %v4928
    %v5652 = vunpack.c.l.b16 %v4929
    %v5653 = vunpack.c.h.b16 %v4929
    %v5654 = vunpack.c.l.b16 %v4930
    %v5655 = vunpack.c.h.b16 %v4930
    %v5656 = vunpack.c.l.b16 %v4931
    %v5657 = vunpack.c.h.b16 %v4931
    %v5658 = vunpack.c.l.b16 %v4932
    %v5659 = vunpack.c.h.b16 %v4932
    %v5660 = vunpack.c.l.b16 %v4933
    %v5661 = vunpack.c.h.b16 %v4933
    %v5662 = vunpack.c.l.b16 %v4934
    %v5663 = vunpack.c.h.b16 %v4934
    %v5664 = vunpack.c.l.b16 %v4935
    %v5665 = vunpack.c.h.b16 %v4935
    %v5666 = vunpack.c.l.b16 %v4936
    %v5667 = vunpack.c.h.b16 %v4936
    %v5668 = vunpack.c.l.b16 %v4937
    %v5669 = vunpack.c.h.b16 %v4937
    %v5670 = vunpack.c.l.b16 %v4938
    %v5671 = vunpack.c.h.b16 %v4938
    %v5672 = vunpack.c.l.b16 %v4939
    %v5673 = vunpack.c.h.b16 %v4939
    %v5674 = vunpack.c.l.b16 %v4940
    %v5675 = vunpack.c.h.b16 %v4940
    %v5676 = vunpack.c.l.b16 %v4941
    %v5677 = vunpack.c.h.b16 %v4941
    %v5678 = vunpack.c.l.b16 %v4942
    %v5679 = vunpack.c.h.b16 %v4942
    %v5680 = vunpack.c.l.b16 %v4943
    %v5681 = vunpack.c.h.b16 %v4943
    %v5682 = vunpack.c.l.b16 %v4944
    %v5683 = vunpack.c.h.b16 %v4944
    %v5684 = vunpack.c.l.b16 %v4945
    %v5685 = vunpack.c.h.b16 %v4945
    %v5686 = vunpack.c.l.b16 %v4946
    %v5687 = vunpack.c.h.b16 %v4946
    %v5688 = vunpack.c.l.b16 %v4947
    %v5689 = vunpack.c.h.b16 %v4947
    %v5690 = vunpack.c.l.b16 %v4948
    %v5691 = vunpack.c.h.b16 %v4948
    %v5692 = vunpack.c.l.b16 %v4949
    %v5693 = vunpack.c.h.b16 %v4949
    %v5694 = vunpack.c.l.b16 %v4950
    %v5695 = vunpack.c.h.b16 %v4950
    %v5696 = vunpack.c.l.b16 %v4951
    %v5697 = vunpack.c.h.b16 %v4951
    %v5698 = vunpack.c.l.b16 %v4952
    %v5699 = vunpack.c.h.b16 %v4952
    %v5700 = vunpack.c.l.b16 %v4953
    %v5701 = vunpack.c.h.b16 %v4953
    %v5702 = vunpack.c.l.b16 %v4954
    %v5703 = vunpack.c.h.b16 %v4954
    %v5704 = vunpack.c.l.b16 %v4955
    %v5705 = vunpack.c.h.b16 %v4955
    %v5706 = vunpack.c.l.b16 %v4956
    %v5707 = vunpack.c.h.b16 %v4956
    %v5708 = vunpack.c.l.b16 %v4957
    %v5709 = vunpack.c.h.b16 %v4957
    %v5710 = vunpack.c.l.b16 %v4958
    %v5711 = vunpack.c.h.b16 %v4958
    %v5712 = vunpack.c.l.b16 %v4959
    %v5713 = vunpack.c.h.b16 %v4959
    %v5714 = vunpack.c.l.b16 %v4960
    %v5715 = vunpack.c.h.b16 %v4960
    %v5716 = vunpack.c.l.b16 %v4961
    %v5717 = vunpack.c.h.b16 %v4961
    %v5718 = vunpack.c.l.b16 %v4962
    %v5719 = vunpack.c.h.b16 %v4962
    %v5720 = vunpack.c.l.b16 %v4963
    %v5721 = vunpack.c.h.b16 %v4963
    %v5722 = vunpack.c.l.b16 %v4964
    %v5723 = vunpack.c.h.b16 %v4964
    %v5724 = vunpack.c.l.b16 %v4965
    %v5725 = vunpack.c.h.b16 %v4965
    %v5726 = vunpack.c.l.b16 %v4966
    %v5727 = vunpack.c.h.b16 %v4966
    %v5728 = vunpack.c.l.b16 %v4967
    %v5729 = vunpack.c.h.b16 %v4967
    %v5730 = vunpack.c.l.b16 %v4968
    %v5731 = vunpack.c.h.b16 %v4968
    %v5732 = vunpack.c.l.b16 %v4969
    %v5733 = vunpack.c.h.b16 %v4969
    %v5734 = vunpack.c.l.b16 %v4970
    %v5735 = vunpack.c.h.b16 %v4970
    %v5736 = vunpack.c.l.b16 %v4971
    %v5737 = vunpack.c.h.b16 %v4971
    %v5738 = vunpack.c.l.b16 %v4972
    %v5739 = vunpack.c.h.b16 %v4972
    %v5740 = vunpack.c.l.b16 %v4973
    %v5741 = vunpack.c.h.b16 %v4973
    %v5742 = vunpack.c.l.b16 %v4974
    %v5743 = vunpack.c.h.b16 %v4974
    %v5744 = vunpack.c.l.b16 %v4975
    %v5745 = vunpack.c.h.b16 %v4975
    %v5746 = vunpack.c.l.b16 %v4976
    %v5747 = vunpack.c.h.b16 %v4976
    %v5748 = vunpack.c.l.b16 %v4977
    %v5749 = vunpack.c.h.b16 %v4977
    %v5750 = vunpack.c.l.b16 %v4978
    %v5751 = vunpack.c.h.b16 %v4978
    %v5752 = vunpack.c.l.b16 %v4979
    %v5753 = vunpack.c.h.b16 %v4979
    %v5754 = vunpack.c.l.b16 %v4980
    %v5755 = vunpack.c.h.b16 %v4980
    %v5756 = vunpack.c.l.b16 %v4981
    %v5757 = vunpack.c.h.b16 %v4981
    %v5758 = vunpack.c.l.b16 %v4982
    %v5759 = vunpack.c.h.b16 %v4982
    %v5760 = vunpack.c.l.b16 %v4983
    %v5761 = vunpack.c.h.b16 %v4983
    %v5762 = vunpack.c.l.b16 %v4984
    %v5763 = vunpack.c.h.b16 %v4984
    %v5764 = vunpack.c.l.b16 %v4985
    %v5765 = vunpack.c.h.b16 %v4985
    %v5766 = vunpack.c.l.b16 %v4986
    %v5767 = vunpack.c.h.b16 %v4986
    %v5768 = vunpack.c.l.b16 %v4987
    %v5769 = vunpack.c.h.b16 %v4987
    %v5770 = vunpack.c.l.b16 %v4988
    %v5771 = vunpack.c.h.b16 %v4988
    %v5772 = vunpack.c.l.b16 %v4989
    %v5773 = vunpack.c.h.b16 %v4989
    %v5774 = vunpack.c.l.b16 %v4990
    %v5775 = vunpack.c.h.b16 %v4990
    %v5776 = vunpack.c.l.b16 %v4991
    %v5777 = vunpack.c.h.b16 %v4991
    %v5778 = vunpack.c.l.b16 %v4992
    %v5779 = vunpack.c.h.b16 %v4992
    %v5780 = vunpack.c.l.b16 %v4993
    %v5781 = vunpack.c.h.b16 %v4993
    %v5782 = vunpack.c.l.b16 %v4994
    %v5783 = vunpack.c.h.b16 %v4994
    %v5784 = vunpack.c.l.b16 %v4995
    %v5785 = vunpack.c.h.b16 %v4995
    %v5786 = vpack.c.b16 %v5278, %v5274
    %v5787 = vpack.c.b16 %v5279, %v5275
    %v5788 = vpack.c.b16 %v5280, %v5276
    %v5789 = vpack.c.b16 %v5281, %v5277
    %v5790 = vpack.c.b16 %v5286, %v5282
    %v5791 = vpack.c.b16 %v5287, %v5283
    %v5792 = vpack.c.b16 %v5288, %v5284
    %v5793 = vpack.c.b16 %v5289, %v5285
    %v5794 = vpack.c.b16 %v5294, %v5290
    %v5795 = vpack.c.b16 %v5295, %v5291
    %v5796 = vpack.c.b16 %v5296, %v5292
    %v5797 = vpack.c.b16 %v5297, %v5293
    %v5798 = vpack.c.b16 %v5302, %v5298
    %v5799 = vpack.c.b16 %v5303, %v5299
    %v5800 = vpack.c.b16 %v5304, %v5300
    %v5801 = vpack.c.b16 %v5305, %v5301
    %v5802 = vpack.c.b16 %v5310, %v5306
    %v5803 = vpack.c.b16 %v5311, %v5307
    %v5804 = vpack.c.b16 %v5312, %v5308
    %v5805 = vpack.c.b16 %v5313, %v5309
    %v5806 = vpack.c.b16 %v5318, %v5314
    %v5807 = vpack.c.b16 %v5319, %v5315
    %v5808 = vpack.c.b16 %v5320, %v5316
    %v5809 = vpack.c.b16 %v5321, %v5317
    %v5810 = vpack.c.b16 %v5326, %v5322
    %v5811 = vpack.c.b16 %v5327, %v5323
    %v5812 = vpack.c.b16 %v5328, %v5324
    %v5813 = vpack.c.b16 %v5329, %v5325
    %v5814 = vpack.c.b16 %v5334, %v5330
    %v5815 = vpack.c.b16 %v5335, %v5331
    %v5816 = vpack.c.b16 %v5336, %v5332
    %v5817 = vpack.c.b16 %v5337, %v5333
    %v5818 = vpack.c.b16 %v5342, %v5338
    %v5819 = vpack.c.b16 %v5343, %v5339
    %v5820 = vpack.c.b16 %v5344, %v5340
    %v5821 = vpack.c.b16 %v5345, %v5341
    %v5822 = vpack.c.b16 %v5350, %v5346
    %v5823 = vpack.c.b16 %v5351, %v5347
    %v5824 = vpack.c.b16 %v5352, %v5348
    %v5825 = vpack.c.b16 %v5353, %v5349
    %v5826 = vpack.c.b16 %v5358, %v5354
    %v5827 = vpack.c.b16 %v5359, %v5355
    %v5828 = vpack.c.b16 %v5360, %v5356
    %v5829 = vpack.c.b16 %v5361, %v5357
    %v5830 = vpack.c.b16 %v5366, %v5362
    %v5831 = vpack.c.b16 %v5367, %v5363
    %v5832 = vpack.c.b16 %v5368, %v5364
    %v5833 = vpack.c.b16 %v5369, %v5365
    %v5834 = vpack.c.b16 %v5374, %v5370
    %v5835 = vpack.c.b16 %v5375, %v5371
    %v5836 = vpack.c.b16 %v5376, %v5372
    %v5837 = vpack.c.b16 %v5377, %v5373
    %v5838 = vpack.c.b16 %v5382, %v5378
    %v5839 = vpack.c.b16 %v5383, %v5379
    %v5840 = vpack.c.b16 %v5384, %v5380
    %v5841 = vpack.c.b16 %v5385, %v5381
    %v5842 = vpack.c.b16 %v5390, %v5386
    %v5843 = vpack.c.b16 %v5391, %v5387
    %v5844 = vpack.c.b16 %v5392, %v5388
    %v5845 = vpack.c.b16 %v5393, %v5389
    %v5846 = vpack.c.b16 %v5398, %v5394
    %v5847 = vpack.c.b16 %v5399, %v5395
    %v5848 = vpack.c.b16 %v5400, %v5396
    %v5849 = vpack.c.b16 %v5401, %v5397
    %v5850 = vpack.c.b16 %v5406, %v5402
    %v5851 = vpack.c.b16 %v5407, %v5403
    %v5852 = vpack.c.b16 %v5408, %v5404
    %v5853 = vpack.c.b16 %v5409, %v5405
    %v5854 = vpack.c.b16 %v5414, %v5410
    %v5855 = vpack.c.b16 %v5415, %v5411
    %v5856 = vpack.c.b16 %v5416, %v5412
    %v5857 = vpack.c.b16 %v5417, %v5413
    %v5858 = vpack.c.b16 %v5422, %v5418
    %v5859 = vpack.c.b16 %v5423, %v5419
    %v5860 = vpack.c.b16 %v5424, %v5420
    %v5861 = vpack.c.b16 %v5425, %v5421
    %v5862 = vpack.c.b16 %v5430, %v5426
    %v5863 = vpack.c.b16 %v5431, %v5427
    %v5864 = vpack.c.b16 %v5432, %v5428
    %v5865 = vpack.c.b16 %v5433, %v5429
    %v5866 = vpack.c.b16 %v5438, %v5434
    %v5867 = vpack.c.b16 %v5439, %v5435
    %v5868 = vpack.c.b16 %v5440, %v5436
    %v5869 = vpack.c.b16 %v5441, %v5437
    %v5870 = vpack.c.b16 %v5446, %v5442
    %v5871 = vpack.c.b16 %v5447, %v5443
    %v5872 = vpack.c.b16 %v5448, %v5444
    %v5873 = vpack.c.b16 %v5449, %v5445
    %v5874 = vpack.c.b16 %v5454, %v5450
    %v5875 = vpack.c.b16 %v5455, %v5451
    %v5876 = vpack.c.b16 %v5456, %v5452
    %v5877 = vpack.c.b16 %v5457, %v5453
    %v5878 = vpack.c.b16 %v5462, %v5458
    %v5879 = vpack.c.b16 %v5463, %v5459
    %v5880 = vpack.c.b16 %v5464, %v5460
    %v5881 = vpack.c.b16 %v5465, %v5461
    %v5882 = vpack.c.b16 %v5470, %v5466
    %v5883 = vpack.c.b16 %v5471, %v5467
    %v5884 = vpack.c.b16 %v5472, %v5468
    %v5885 = vpack.c.b16 %v5473, %v5469
    %v5886 = vpack.c.b16 %v5478, %v5474
    %v5887 = vpack.c.b16 %v5479, %v5475
    %v5888 = vpack.c.b16 %v5480, %v5476
    %v5889 = vpack.c.b16 %v5481, %v5477
    %v5890 = vpack.c.b16 %v5486, %v5482
    %v5891 = vpack.c.b16 %v5487, %v5483
    %v5892 = vpack.c.b16 %v5488, %v5484
    %v5893 = vpack.c.b16 %v5489, %v5485
    %v5894 = vpack.c.b16 %v5494, %v5490
    %v5895 = vpack.c.b16 %v5495, %v5491
    %v5896 = vpack.c.b16 %v5496, %v5492
    %v5897 = vpack.c.b16 %v5497, %v5493
    %v5898 = vpack.c.b16 %v5502, %v5498
    %v5899 = vpack.c.b16 %v5503, %v5499
    %v5900 = vpack.c.b16 %v5504, %v5500
    %v5901 = vpack.c.b16 %v5505, %v5501
    %v5902 = vpack.c.b16 %v5510, %v5506
    %v5903 = vpack.c.b16 %v5511, %v5507
    %v5904 = vpack.c.b16 %v5512, %v5508
    %v5905 = vpack.c.b16 %v5513, %v5509
    %v5906 = vpack.c.b16 %v5518, %v5514
    %v5907 = vpack.c.b16 %v5519, %v5515
    %v5908 = vpack.c.b16 %v5520, %v5516
    %v5909 = vpack.c.b16 %v5521, %v5517
    %v5910 = vpack.c.b16 %v5526, %v5522
    %v5911 = vpack.c.b16 %v5527, %v5523
    %v5912 = vpack.c.b16 %v5528, %v5524
    %v5913 = vpack.c.b16 %v5529, %v5525
    %v5914 = vpack.c.b16 %v5534, %v5530
    %v5915 = vpack.c.b16 %v5535, %v5531
    %v5916 = vpack.c.b16 %v5536, %v5532
    %v5917 = vpack.c.b16 %v5537, %v5533
    %v5918 = vpack.c.b16 %v5542, %v5538
    %v5919 = vpack.c.b16 %v5543, %v5539
    %v5920 = vpack.c.b16 %v5544, %v5540
    %v5921 = vpack.c.b16 %v5545, %v5541
    %v5922 = vpack.c.b16 %v5550, %v5546
    %v5923 = vpack.c.b16 %v5551, %v5547
    %v5924 = vpack.c.b16 %v5552, %v5548
    %v5925 = vpack.c.b16 %v5553, %v5549
    %v5926 = vpack.c.b16 %v5558, %v5554
    %v5927 = vpack.c.b16 %v5559, %v5555
    %v5928 = vpack.c.b16 %v5560, %v5556
    %v5929 = vpack.c.b16 %v5561, %v5557
    %v5930 = vpack.c.b16 %v5566, %v5562
    %v5931 = vpack.c.b16 %v5567, %v5563
    %v5932 = vpack.c.b16 %v5568, %v5564
    %v5933 = vpack.c.b16 %v5569, %v5565
    %v5934 = vpack.c.b16 %v5574, %v5570
    %v5935 = vpack.c.b16 %v5575, %v5571
    %v5936 = vpack.c.b16 %v5576, %v5572
    %v5937 = vpack.c.b16 %v5577, %v5573
    %v5938 = vpack.c.b16 %v5582, %v5578
    %v5939 = vpack.c.b16 %v5583, %v5579
    %v5940 = vpack.c.b16 %v5584, %v5580
    %v5941 = vpack.c.b16 %v5585, %v5581
    %v5942 = vpack.c.b16 %v5590, %v5586
    %v5943 = vpack.c.b16 %v5591, %v5587
    %v5944 = vpack.c.b16 %v5592, %v5588
    %v5945 = vpack.c.b16 %v5593, %v5589
    %v5946 = vpack.c.b16 %v5598, %v5594
    %v5947 = vpack.c.b16 %v5599, %v5595
    %v5948 = vpack.c.b16 %v5600, %v5596
    %v5949 = vpack.c.b16 %v5601, %v5597
    %v5950 = vpack.c.b16 %v5606, %v5602
    %v5951 = vpack.c.b16 %v5607, %v5603
    %v5952 = vpack.c.b16 %v5608, %v5604
    %v5953 = vpack.c.b16 %v5609, %v5605
    %v5954 = vpack.c.b16 %v5614, %v5610
    %v5955 = vpack.c.b16 %v5615, %v5611
    %v5956 = vpack.c.b16 %v5616, %v5612
    %v5957 = vpack.c.b16 %v5617, %v5613
    %v5958 = vpack.c.b16 %v5622, %v5618
    %v5959 = vpack.c.b16 %v5623, %v5619
    %v5960 = vpack.c.b16 %v5624, %v5620
    %v5961 = vpack.c.b16 %v5625, %v5621
    %v5962 = vpack.c.b16 %v5630, %v5626
    %v5963 = vpack.c.b16 %v5631, %v5627
    %v5964 = vpack.c.b16 %v5632, %v5628
    %v5965 = vpack.c.b16 %v5633, %v5629
    %v5966 = vpack.c.b16 %v5638, %v5634
    %v5967 = vpack.c.b16 %v5639, %v5635
    %v5968 = vpack.c.b16 %v5640, %v5636
    %v5969 = vpack.c.b16 %v5641, %v5637
    %v5970 = vpack.c.b16 %v5646, %v5642
    %v5971 = vpack.c.b16 %v5647, %v5643
    %v5972 = vpack.c.b16 %v5648, %v5644
    %v5973 = vpack.c.b16 %v5649, %v5645
    %v5974 = vpack.c.b16 %v5654, %v5650
    %v5975 = vpack.c.b16 %v5655, %v5651
    %v5976 = vpack.c.b16 %v5656, %v5652
    %v5977 = vpack.c.b16 %v5657, %v5653
    %v5978 = vpack.c.b16 %v5662, %v5658
    %v5979 = vpack.c.b16 %v5663, %v5659
    %v5980 = vpack.c.b16 %v5664, %v5660
    %v5981 = vpack.c.b16 %v5665, %v5661
    %v5982 = vpack.c.b16 %v5670, %v5666
    %v5983 = vpack.c.b16 %v5671, %v5667
    %v5984 = vpack.c.b16 %v5672, %v5668
    %v5985 = vpack.c.b16 %v5673, %v5669
    %v5986 = vpack.c.b16 %v5678, %v5674
    %v5987 = vpack.c.b16 %v5679, %v5675
    %v5988 = vpack.c.b16 %v5680, %v5676
    %v5989 = vpack.c.b16 %v5681, %v5677
    %v5990 = vpack.c.b16 %v5686, %v5682
    %v5991 = vpack.c.b16 %v5687, %v5683
    %v5992 = vpack.c.b16 %v5688, %v5684
    %v5993 = vpack.c.b16 %v5689, %v5685
    %v5994 = vpack.c.b16 %v5694, %v5690
    %v5995 = vpack.c.b16 %v5695, %v5691
    %v5996 = vpack.c.b16 %v5696, %v5692
    %v5997 = vpack.c.b16 %v5697, %v5693
    %v5998 = vpack.c.b16 %v5702, %v5698
    %v5999 = vpack.c.b16 %v5703, %v5699
    %v6000 = vpack.c.b16 %v5704, %v5700
    %v6001 = vpack.c.b16 %v5705, %v5701
    %v6002 = vpack.c.b16 %v5710, %v5706
    %v6003 = vpack.c.b16 %v5711, %v5707
    %v6004 = vpack.c.b16 %v5712, %v5708
    %v6005 = vpack.c.b16 %v5713, %v5709
    %v6006 = vpack.c.b16 %v5718, %v5714
    %v6007 = vpack.c.b16 %v5719, %v5715
    %v6008 = vpack.c.b16 %v5720, %v5716
    %v6009 = vpack.c.b16 %v5721, %v5717
    %v6010 = vpack.c.b16 %v5726, %v5722
    %v6011 = vpack.c.b16 %v5727, %v5723
    %v6012 = vpack.c.b16 %v5728, %v5724
    %v6013 = vpack.c.b16 %v5729, %v5725
    %v6014 = vpack.c.b16 %v5734, %v5730
    %v6015 = vpack.c.b16 %v5735, %v5731
    %v6016 = vpack.c.b16 %v5736, %v5732
    %v6017 = vpack.c.b16 %v5737, %v5733
    %v6018 = vpack.c.b16 %v5742, %v5738
    %v6019 = vpack.c.b16 %v5743, %v5739
    %v6020 = vpack.c.b16 %v5744, %v5740
    %v6021 = vpack.c.b16 %v5745, %v5741
    %v6022 = vpack.c.b16 %v5750, %v5746
    %v6023 = vpack.c.b16 %v5751, %v5747
    %v6024 = vpack.c.b16 %v5752, %v5748
    %v6025 = vpack.c.b16 %v5753, %v5749
    %v6026 = vpack.c.b16 %v5758, %v5754
    %v6027 = vpack.c.b16 %v5759, %v5755
    %v6028 = vpack.c.b16 %v5760, %v5756
    %v6029 = vpack.c.b16 %v5761, %v5757
    %v6030 = vpack.c.b16 %v5766, %v5762
    %v6031 = vpack.c.b16 %v5767, %v5763
    %v6032 = vpack.c.b16 %v5768, %v5764
    %v6033 = vpack.c.b16 %v5769, %v5765
    %v6034 = vpack.c.b16 %v5774, %v5770
    %v6035 = vpack.c.b16 %v5775, %v5771
    %v6036 = vpack.c.b16 %v5776, %v5772
    %v6037 = vpack.c.b16 %v5777, %v5773
    %v6038 = vpack.c.b16 %v5782, %v5778
    %v6039 = vpack.c.b16 %v5783, %v5779
    %v6040 = vpack.c.b16 %v5784, %v5780
    %v6041 = vpack.c.b16 %v5785, %v5781
    %6298 = vmatprep.subr.bf16.mxu0 %v5787
    %6299 = vmatpush1.bf16.msra.mxu0 %v5786
    %6300 = vmatprep.subr.bf16.mxu0 %v5791
    %6301 = vmatpush1.bf16.msra.mxu0 %v5790
    %6302 = vmatprep.subr.bf16.mxu0 %v5795
    %6303 = vmatpush1.bf16.msra.mxu0 %v5794
    %6304 = vmatprep.subr.bf16.mxu0 %v5799
    %6305 = vmatpush1.bf16.msra.mxu0 %v5798
    %6306 = vmatprep.subr.bf16.mxu0 %v5803
    %6307 = vmatpush1.bf16.msra.mxu0 %v5802
    %6308 = vmatprep.subr.bf16.mxu0 %v5807
    %6309 = vmatpush1.bf16.msra.mxu0 %v5806
    %6310 = vmatprep.subr.bf16.mxu0 %v5811
    %6311 = vmatpush1.bf16.msra.mxu0 %v5810
    %6312 = vmatprep.subr.bf16.mxu0 %v5815
    %6313 = vmatpush1.bf16.msra.mxu0 %v5814
    %6314 = vmatprep.subr.bf16.mxu0 %v5819
    %6315 = vmatpush1.bf16.msra.mxu0 %v5818
    %6316 = vmatprep.subr.bf16.mxu0 %v5823
    %6317 = vmatpush1.bf16.msra.mxu0 %v5822
    %6318 = vmatprep.subr.bf16.mxu0 %v5827
    %6319 = vmatpush1.bf16.msra.mxu0 %v5826
    %6320 = vmatprep.subr.bf16.mxu0 %v5831
    %6321 = vmatpush1.bf16.msra.mxu0 %v5830
    %6322 = vmatprep.subr.bf16.mxu0 %v5835
    %6323 = vmatpush1.bf16.msra.mxu0 %v5834
    %6324 = vmatprep.subr.bf16.mxu0 %v5839
    %6325 = vmatpush1.bf16.msra.mxu0 %v5838
    %6326 = vmatprep.subr.bf16.mxu0 %v5843
    %6327 = vmatpush1.bf16.msra.mxu0 %v5842
    %6328 = vmatprep.subr.bf16.mxu0 %v5847
    %6329 = vmatpush1.bf16.msra.mxu0 %v5846
    %6330 = vmatprep.mubr.bf16.mxu0 %v4733
    %6331 = vmatmul.mubr.bf16.gmra.mrb[0].mxu0 %v4732
    %v6332 = vpop.f32.mrb[0].mxu0
    %v6333 = vadd.f32 %v5001, %v6332
    %v6334 = vpop.f32.mrb[0].mxu0
    %v6335 = vadd.f32 %v5005, %v6334
    %v6336 = vpop.f32.mrb[0].mxu0
    %v6337 = vpop.f32.mrb[0].mxu0
    %6338 = vdwg.mxu0
    %6339 = vmatprep.subr.bf16.mxu0 %v5851
    %6340 = vmatpush1.bf16.msra.mxu0 %v5850
    %6341 = vmatprep.subr.bf16.mxu0 %v5855
    %6342 = vmatpush1.bf16.msra.mxu0 %v5854
    %6343 = vmatprep.subr.bf16.mxu0 %v5859
    %6344 = vmatpush1.bf16.msra.mxu0 %v5858
    %6345 = vmatprep.subr.bf16.mxu0 %v5863
    %6346 = vmatpush1.bf16.msra.mxu0 %v5862
    %6347 = vmatprep.subr.bf16.mxu0 %v5867
    %6348 = vmatpush1.bf16.msra.mxu0 %v5866
    %6349 = vmatprep.subr.bf16.mxu0 %v5871
    %6350 = vmatpush1.bf16.msra.mxu0 %v5870
    %6351 = vmatprep.subr.bf16.mxu0 %v5875
    %6352 = vmatpush1.bf16.msra.mxu0 %v5874
    %6353 = vmatprep.subr.bf16.mxu0 %v5879
    %6354 = vmatpush1.bf16.msra.mxu0 %v5878
    %6355 = vmatprep.subr.bf16.mxu0 %v5883
    %6356 = vmatpush1.bf16.msra.mxu0 %v5882
    %6357 = vmatprep.subr.bf16.mxu0 %v5887
    %6358 = vmatpush1.bf16.msra.mxu0 %v5886
    %6359 = vmatprep.subr.bf16.mxu0 %v5891
    %6360 = vmatpush1.bf16.msra.mxu0 %v5890
    %6361 = vmatprep.subr.bf16.mxu0 %v5895
    %6362 = vmatpush1.bf16.msra.mxu0 %v5894
    %6363 = vmatprep.subr.bf16.mxu0 %v5899
    %6364 = vmatpush1.bf16.msra.mxu0 %v5898
    %6365 = vmatprep.subr.bf16.mxu0 %v5903
    %6366 = vmatpush1.bf16.msra.mxu0 %v5902
    %6367 = vmatprep.subr.bf16.mxu0 %v5907
    %6368 = vmatpush1.bf16.msra.mxu0 %v5906
    %6369 = vmatprep.subr.bf16.mxu0 %v5911
    %6370 = vmatpush1.bf16.msra.mxu0 %v5910
    %6371 = vmatprep.mubr.bf16.mxu0 %v4735
    %6372 = vmatmul.mubr.bf16.gmra.mrb[0].mxu0 %v4734
    %v6373 = vpop.f32.mrb[0].mxu0
    %v6374 = vadd.f32 %v6333, %v6373
    %v6375 = vpop.f32.mrb[0].mxu0
    %v6376 = vadd.f32 %v6335, %v6375
    %v6377 = vpop.f32.mrb[0].mxu0
    %v6378 = vpop.f32.mrb[0].mxu0
    %6379 = vdwg.mxu0
    %6380 = vmatprep.subr.bf16.mxu0 %v5915
    %6381 = vmatpush1.bf16.msra.mxu0 %v5914
    %6382 = vmatprep.subr.bf16.mxu0 %v5919
    %6383 = vmatpush1.bf16.msra.mxu0 %v5918
    %6384 = vmatprep.subr.bf16.mxu0 %v5923
    %6385 = vmatpush1.bf16.msra.mxu0 %v5922
    %6386 = vmatprep.subr.bf16.mxu0 %v5927
    %6387 = vmatpush1.bf16.msra.mxu0 %v5926
    %6388 = vmatprep.subr.bf16.mxu0 %v5931
    %6389 = vmatpush1.bf16.msra.mxu0 %v5930
    %6390 = vmatprep.subr.bf16.mxu0 %v5935
    %6391 = vmatpush1.bf16.msra.mxu0 %v5934
    %6392 = vmatprep.subr.bf16.mxu0 %v5939
    %6393 = vmatpush1.bf16.msra.mxu0 %v5938
    %6394 = vmatprep.subr.bf16.mxu0 %v5943
    %6395 = vmatpush1.bf16.msra.mxu0 %v5942
    %6396 = vmatprep.subr.bf16.mxu0 %v5947
    %6397 = vmatpush1.bf16.msra.mxu0 %v5946
    %6398 = vmatprep.subr.bf16.mxu0 %v5951
    %6399 = vmatpush1.bf16.msra.mxu0 %v5950
    %6400 = vmatprep.subr.bf16.mxu0 %v5955
    %6401 = vmatpush1.bf16.msra.mxu0 %v5954
    %6402 = vmatprep.subr.bf16.mxu0 %v5959
    %6403 = vmatpush1.bf16.msra.mxu0 %v5958
    %6404 = vmatprep.subr.bf16.mxu0 %v5963
    %6405 = vmatpush1.bf16.msra.mxu0 %v5962
    %6406 = vmatprep.subr.bf16.mxu0 %v5967
    %6407 = vmatpush1.bf16.msra.mxu0 %v5966
    %6408 = vmatprep.subr.bf16.mxu0 %v5971
    %6409 = vmatpush1.bf16.msra.mxu0 %v5970
    %6410 = vmatprep.subr.bf16.mxu0 %v5975
    %6411 = vmatpush1.bf16.msra.mxu0 %v5974
    %6412 = vmatprep.mubr.bf16.mxu0 %v4737
    %6413 = vmatmul.mubr.bf16.gmra.mrb[0].mxu0 %v4736
    %v6414 = vpop.f32.mrb[0].mxu0
    %v6415 = vadd.f32 %v6374, %v6414
    %v6416 = vpop.f32.mrb[0].mxu0
    %v6417 = vadd.f32 %v6376, %v6416
    %v6418 = vpop.f32.mrb[0].mxu0
    %v6419 = vpop.f32.mrb[0].mxu0
    %6420 = vdwg.mxu0
    %6421 = vmatprep.subr.bf16.mxu0 %v5979
    %6422 = vmatpush1.bf16.msra.mxu0 %v5978
    %6423 = vmatprep.subr.bf16.mxu0 %v5983
    %6424 = vmatpush1.bf16.msra.mxu0 %v5982
    %6425 = vmatprep.subr.bf16.mxu0 %v5987
    %6426 = vmatpush1.bf16.msra.mxu0 %v5986
    %6427 = vmatprep.subr.bf16.mxu0 %v5991
    %6428 = vmatpush1.bf16.msra.mxu0 %v5990
    %6429 = vmatprep.subr.bf16.mxu0 %v5995
    %6430 = vmatpush1.bf16.msra.mxu0 %v5994
    %6431 = vmatprep.subr.bf16.mxu0 %v5999
    %6432 = vmatpush1.bf16.msra.mxu0 %v5998
    %6433 = vmatprep.subr.bf16.mxu0 %v6003
    %6434 = vmatpush1.bf16.msra.mxu0 %v6002
    %6435 = vmatprep.subr.bf16.mxu0 %v6007
    %6436 = vmatpush1.bf16.msra.mxu0 %v6006
    %6437 = vmatprep.subr.bf16.mxu0 %v6011
    %6438 = vmatpush1.bf16.msra.mxu0 %v6010
    %6439 = vmatprep.subr.bf16.mxu0 %v6015
    %6440 = vmatpush1.bf16.msra.mxu0 %v6014
    %6441 = vmatprep.subr.bf16.mxu0 %v6019
    %6442 = vmatpush1.bf16.msra.mxu0 %v6018
    %6443 = vmatprep.subr.bf16.mxu0 %v6023
    %6444 = vmatpush1.bf16.msra.mxu0 %v6022
    %6445 = vmatprep.subr.bf16.mxu0 %v6027
    %6446 = vmatpush1.bf16.msra.mxu0 %v6026
    %6447 = vmatprep.subr.bf16.mxu0 %v6031
    %6448 = vmatpush1.bf16.msra.mxu0 %v6030
    %6449 = vmatprep.subr.bf16.mxu0 %v6035
    %6450 = vmatpush1.bf16.msra.mxu0 %v6034
    %6451 = vmatprep.subr.bf16.mxu0 %v6039
    %6452 = vmatpush1.bf16.msra.mxu0 %v6038
    %6453 = vmatprep.mubr.bf16.mxu0 %v4739
    %6454 = vmatmul.mubr.bf16.gmra.mrb[0].mxu0 %v4738
    %v6455 = vpop.f32.mrb[0].mxu0
    %v6456 = vadd.f32 %v6415, %v6455
    %v6457 = vpop.f32.mrb[0].mxu0
    %v6458 = vadd.f32 %v6417, %v6457
    %v6459 = vpop.f32.mrb[0].mxu0
    %v6460 = vpop.f32.mrb[0].mxu0
    %6461 = vdwg.mxu0
    %6462 = vmatprep.subr.bf16.mxu0 %v5789
    %6463 = vmatpush1.bf16.msra.mxu0 %v5788
    %6464 = vmatprep.subr.bf16.mxu0 %v5793
    %6465 = vmatpush1.bf16.msra.mxu0 %v5792
    %6466 = vmatprep.subr.bf16.mxu0 %v5797
    %6467 = vmatpush1.bf16.msra.mxu0 %v5796
    %6468 = vmatprep.subr.bf16.mxu0 %v5801
    %6469 = vmatpush1.bf16.msra.mxu0 %v5800
    %6470 = vmatprep.subr.bf16.mxu0 %v5805
    %6471 = vmatpush1.bf16.msra.mxu0 %v5804
    %6472 = vmatprep.subr.bf16.mxu0 %v5809
    %6473 = vmatpush1.bf16.msra.mxu0 %v5808
    %6474 = vmatprep.subr.bf16.mxu0 %v5813
    %6475 = vmatpush1.bf16.msra.mxu0 %v5812
    %6476 = vmatprep.subr.bf16.mxu0 %v5817
    %6477 = vmatpush1.bf16.msra.mxu0 %v5816
    %6478 = vmatprep.subr.bf16.mxu0 %v5821
    %6479 = vmatpush1.bf16.msra.mxu0 %v5820
    %6480 = vmatprep.subr.bf16.mxu0 %v5825
    %6481 = vmatpush1.bf16.msra.mxu0 %v5824
    %6482 = vmatprep.subr.bf16.mxu0 %v5829
    %6483 = vmatpush1.bf16.msra.mxu0 %v5828
    %6484 = vmatprep.subr.bf16.mxu0 %v5833
    %6485 = vmatpush1.bf16.msra.mxu0 %v5832
    %6486 = vmatprep.subr.bf16.mxu0 %v5837
    %6487 = vmatpush1.bf16.msra.mxu0 %v5836
    %6488 = vmatprep.subr.bf16.mxu0 %v5841
    %6489 = vmatpush1.bf16.msra.mxu0 %v5840
    %6490 = vmatprep.subr.bf16.mxu0 %v5845
    %6491 = vmatpush1.bf16.msra.mxu0 %v5844
    %6492 = vmatprep.subr.bf16.mxu0 %v5849
    %6493 = vmatpush1.bf16.msra.mxu0 %v5848
    %6494 = vmatprep.mubr.bf16.mxu0 %v4733
    %6495 = vmatmul.mubr.bf16.gmra.mrb[0].mxu0 %v4732
    %v6496 = vpop.f32.mrb[0].mxu0
    %v6497 = vadd.f32 %v5009, %v6496
    %v6498 = vpop.f32.mrb[0].mxu0
    %v6499 = vadd.f32 %v5013, %v6498
    %v6500 = vpop.f32.mrb[0].mxu0
    %v6501 = vpop.f32.mrb[0].mxu0
    %6502 = vdwg.mxu0
    %6503 = vmatprep.subr.bf16.mxu0 %v5853
    %6504 = vmatpush1.bf16.msra.mxu0 %v5852
    %6505 = vmatprep.subr.bf16.mxu0 %v5857
    %6506 = vmatpush1.bf16.msra.mxu0 %v5856
    %6507 = vmatprep.subr.bf16.mxu0 %v5861
    %6508 = vmatpush1.bf16.msra.mxu0 %v5860
    %6509 = vmatprep.subr.bf16.mxu0 %v5865
    %6510 = vmatpush1.bf16.msra.mxu0 %v5864
    %6511 = vmatprep.subr.bf16.mxu0 %v5869
    %6512 = vmatpush1.bf16.msra.mxu0 %v5868
    %6513 = vmatprep.subr.bf16.mxu0 %v5873
    %6514 = vmatpush1.bf16.msra.mxu0 %v5872
    %6515 = vmatprep.subr.bf16.mxu0 %v5877
    %6516 = vmatpush1.bf16.msra.mxu0 %v5876
    %6517 = vmatprep.subr.bf16.mxu0 %v5881
    %6518 = vmatpush1.bf16.msra.mxu0 %v5880
    %6519 = vmatprep.subr.bf16.mxu0 %v5885
    %6520 = vmatpush1.bf16.msra.mxu0 %v5884
    %6521 = vmatprep.subr.bf16.mxu0 %v5889
    %6522 = vmatpush1.bf16.msra.mxu0 %v5888
    %6523 = vmatprep.subr.bf16.mxu0 %v5893
    %6524 = vmatpush1.bf16.msra.mxu0 %v5892
    %6525 = vmatprep.subr.bf16.mxu0 %v5897
    %6526 = vmatpush1.bf16.msra.mxu0 %v5896
    %6527 = vmatprep.subr.bf16.mxu0 %v5901
    %6528 = vmatpush1.bf16.msra.mxu0 %v5900
    %6529 = vmatprep.subr.bf16.mxu0 %v5905
    %6530 = vmatpush1.bf16.msra.mxu0 %v5904
    %6531 = vmatprep.subr.bf16.mxu0 %v5909
    %6532 = vmatpush1.bf16.msra.mxu0 %v5908
    %6533 = vmatprep.subr.bf16.mxu0 %v5913
    %6534 = vmatpush1.bf16.msra.mxu0 %v5912
    %6535 = vmatprep.mubr.bf16.mxu0 %v4735
    %6536 = vmatmul.mubr.bf16.gmra.mrb[0].mxu0 %v4734
    %v6537 = vpop.f32.mrb[0].mxu0
    %v6538 = vadd.f32 %v6497, %v6537
    %v6539 = vpop.f32.mrb[0].mxu0
    %v6540 = vadd.f32 %v6499, %v6539
    %v6541 = vpop.f32.mrb[0].mxu0
    %v6542 = vpop.f32.mrb[0].mxu0
    %6543 = vdwg.mxu0
    %6544 = vmatprep.subr.bf16.mxu0 %v5917
    %6545 = vmatpush1.bf16.msra.mxu0 %v5916
    %6546 = vmatprep.subr.bf16.mxu0 %v5921
    %6547 = vmatpush1.bf16.msra.mxu0 %v5920
    %6548 = vmatprep.subr.bf16.mxu0 %v5925
    %6549 = vmatpush1.bf16.msra.mxu0 %v5924
    %6550 = vmatprep.subr.bf16.mxu0 %v5929
    %6551 = vmatpush1.bf16.msra.mxu0 %v5928
    %6552 = vmatprep.subr.bf16.mxu0 %v5933
    %6553 = vmatpush1.bf16.msra.mxu0 %v5932
    %6554 = vmatprep.subr.bf16.mxu0 %v5937
    %6555 = vmatpush1.bf16.msra.mxu0 %v5936
    %6556 = vmatprep.subr.bf16.mxu0 %v5941
    %6557 = vmatpush1.bf16.msra.mxu0 %v5940
    %6558 = vmatprep.subr.bf16.mxu0 %v5945
    %6559 = vmatpush1.bf16.msra.mxu0 %v5944
    %6560 = vmatprep.subr.bf16.mxu0 %v5949
    %6561 = vmatpush1.bf16.msra.mxu0 %v5948
    %6562 = vmatprep.subr.bf16.mxu0 %v5953
    %6563 = vmatpush1.bf16.msra.mxu0 %v5952
    %6564 = vmatprep.subr.bf16.mxu0 %v5957
    %6565 = vmatpush1.bf16.msra.mxu0 %v5956
    %6566 = vmatprep.subr.bf16.mxu0 %v5961
    %6567 = vmatpush1.bf16.msra.mxu0 %v5960
    %6568 = vmatprep.subr.bf16.mxu0 %v5965
    %6569 = vmatpush1.bf16.msra.mxu0 %v5964
    %6570 = vmatprep.subr.bf16.mxu0 %v5969
    %6571 = vmatpush1.bf16.msra.mxu0 %v5968
    %6572 = vmatprep.subr.bf16.mxu0 %v5973
    %6573 = vmatpush1.bf16.msra.mxu0 %v5972
    %6574 = vmatprep.subr.bf16.mxu0 %v5977
    %6575 = vmatpush1.bf16.msra.mxu0 %v5976
    %6576 = vmatprep.mubr.bf16.mxu0 %v4737
    %6577 = vmatmul.mubr.bf16.gmra.mrb[0].mxu0 %v4736
    %v6578 = vpop.f32.mrb[0].mxu0
    %v6579 = vadd.f32 %v6538, %v6578
    %v6580 = vpop.f32.mrb[0].mxu0
    %v6581 = vadd.f32 %v6540, %v6580
    %v6582 = vpop.f32.mrb[0].mxu0
    %v6583 = vpop.f32.mrb[0].mxu0
    %6584 = vdwg.mxu0
    %6585 = vmatprep.subr.bf16.mxu0 %v5981
    %6586 = vmatpush1.bf16.msra.mxu0 %v5980
    %6587 = vmatprep.subr.bf16.mxu0 %v5985
    %6588 = vmatpush1.bf16.msra.mxu0 %v5984
    %6589 = vmatprep.subr.bf16.mxu0 %v5989
    %6590 = vmatpush1.bf16.msra.mxu0 %v5988
    %6591 = vmatprep.subr.bf16.mxu0 %v5993
    %6592 = vmatpush1.bf16.msra.mxu0 %v5992
    %6593 = vmatprep.subr.bf16.mxu0 %v5997
    %6594 = vmatpush1.bf16.msra.mxu0 %v5996
    %6595 = vmatprep.subr.bf16.mxu0 %v6001
    %6596 = vmatpush1.bf16.msra.mxu0 %v6000
    %6597 = vmatprep.subr.bf16.mxu0 %v6005
    %6598 = vmatpush1.bf16.msra.mxu0 %v6004
    %6599 = vmatprep.subr.bf16.mxu0 %v6009
    %6600 = vmatpush1.bf16.msra.mxu0 %v6008
    %6601 = vmatprep.subr.bf16.mxu0 %v6013
    %6602 = vmatpush1.bf16.msra.mxu0 %v6012
    %6603 = vmatprep.subr.bf16.mxu0 %v6017
    %6604 = vmatpush1.bf16.msra.mxu0 %v6016
    %6605 = vmatprep.subr.bf16.mxu0 %v6021
    %6606 = vmatpush1.bf16.msra.mxu0 %v6020
    %6607 = vmatprep.subr.bf16.mxu0 %v6025
    %6608 = vmatpush1.bf16.msra.mxu0 %v6024
    %6609 = vmatprep.subr.bf16.mxu0 %v6029
    %6610 = vmatpush1.bf16.msra.mxu0 %v6028
    %6611 = vmatprep.subr.bf16.mxu0 %v6033
    %6612 = vmatpush1.bf16.msra.mxu0 %v6032
    %6613 = vmatprep.subr.bf16.mxu0 %v6037
    %6614 = vmatpush1.bf16.msra.mxu0 %v6036
    %6615 = vmatprep.subr.bf16.mxu0 %v6041
    %6616 = vmatpush1.bf16.msra.mxu0 %v6040
    %6617 = vmatprep.mubr.bf16.mxu0 %v4739
    %6618 = vmatmul.mubr.bf16.gmra.mrb[0].mxu0 %v4738
    %v6619 = vpop.f32.mrb[0].mxu0
    %v6620 = vadd.f32 %v6579, %v6619
    %v6621 = vpop.f32.mrb[0].mxu0
    %v6622 = vadd.f32 %v6581, %v6621
    %v6623 = vpop.f32.mrb[0].mxu0
    %v6624 = vpop.f32.mrb[0].mxu0
    %6625 = vdwg.mxu0
    %v6626 = vmax.f32 %v6456, 0.0
    %v6627 = vmax.f32 %v6458, 0.0
    %v6628 = vmax.f32 %v6620, 0.0
    %v6629 = vmax.f32 %v6622, 0.0
    %v6630 = vld [vmem:[#allocation18] sm:$0xf]
    %v6632 = vlaneseq
    %v6633 = vshrl.u32 %v6632, 7
    %v6634 = vsub.s32 0, %v6633
    %v6635 = vrot.slane %v6630, %v6634
    %v6636 = vlaneseq
    %v6637 = vshrl.u32 %v6636, 7
    %v6638 = vsub.s32 1, %v6637
    %v6639 = vrot.slane %v6630, %v6638
    %v6640 = vlaneseq
    %v6641 = vshrl.u32 %v6640, 7
    %v6642 = vsub.s32 2, %v6641
    %v6643 = vrot.slane %v6630, %v6642
    %v6644 = vlaneseq
    %v6645 = vshrl.u32 %v6644, 7
    %v6646 = vsub.s32 3, %v6645
    %v6647 = vrot.slane %v6630, %v6646
    %v6652 = vmul.f32 %v6626, %v6635
    %v6653 = vmul.f32 %v6627, %v6639
    %v6654 = vmul.f32 %v6628, %v6643
    %v6655 = vmul.f32 %v6629, %v6647
    %v6656 = vadd.f32 %v6652, %v6653
    %v6657 = vadd.f32 %v6656, %v6654
    %v6658 = vadd.f32 %v6657, %v6655
    %6659 = vadd.xlane.f32.xlu0 %v6658
    %v6660 = vpop.xlane.xlu0 %6659
    %s6661 = sld [smem:[#allocation2]]
    %v6662 = vstv %s6661
    %v6663 = vadd.f32 %v6660, %v6662
    %6664 = vst [vmem:[#allocation20] sm:$0xff] %v6663
    // Predicated region
    $region86: #{tpu_custom_call.1} parent=1 // pred_check
      _
    $region87: #{tpu_custom_call.1} parent=1 // pred_check_branch
      %6666 = sbr.rel (0) target = $region89
    $region88: #{tpu_custom_call.1} parent=1 // pred_region
      %s6668 = ssub.s32 128, 128
      %6669 = vsyncadd [#allocation5], %s6668
      %s6671 = sshll.u32 [#allocation20], 4
      %s6672 = int_to_ptr.vmem [resolvable:$true] %s6671
      %6674 = dma.vmem_to_hbm [thread:$0]  %s6672, 128, %s11, [#allocation5]
    $region89: #{tpu_custom_call.1} parent=1 // pred_fallthru
      _
    // Predicated region
    $region90: #{tpu_custom_call.1} parent=1 // pred_check
      _
    $region91: #{tpu_custom_call.1} parent=1 // pred_check_branch
      %6676 = sbr.rel (0) target = $region93
    $region92: #{tpu_custom_call.1} parent=1 // pred_region
      %6677 = dma.done [#allocation5], 128
    $region93: #{tpu_custom_call.1} parent=1 // pred_fallthru
      _
    %6678 = vsyncpa [#allocation4], 1
    %6679 = vsyncpa [#allocation7], 1
    %6680 = vsyncpa [#allocation10], 1
    %6681 = vsyncpa [#allocation13], 1
    %6682 = vsyncpa [#allocation16], 1
    %6683 = vsyncpa [#allocation19], 1
    %6684 = vsyncpa [#allocation5], 1

</llo_original>
